<compile_context>
chip_gen: v6e
topology: v6e:2x2x1
jax: 0.10.0
libtpu: 0.0.40
codegen_flags: <defaults>
</compile_context>

<pallas_src>
import jax
import jax.numpy as jnp
from jax.experimental import pallas as pl
from jax.experimental.pallas import tpu as pltpu


def _round_up(x, m):
    return (x + m - 1) // m * m


def vae_forward_kernel(
    x_ref,
    w1_ref, b1_ref,
    w23_ref, b23_ref,
    w4_ref, b4_ref,
    w5_ref, b5_ref,
    eps_ref,
    xhat_ref, mulv_ref,
):
    z = eps_ref.shape[1]

    x = x_ref[...]                                                   # [TB, 784] f32

    # encode: h1 = relu(x @ W1 + b1)  (bf16 operands, f32 accumulate on MXU)
    h1 = jnp.dot(x.astype(jnp.bfloat16), w1_ref[...],
                 preferred_element_type=jnp.float32) + b1_ref[...]
    h1 = jnp.maximum(h1, 0.0)                                        # [TB, 512]

    # fused mu/logvar head: one matmul into [TB, 2z]
    head = jnp.dot(h1.astype(jnp.bfloat16), w23_ref[...],
                   preferred_element_type=jnp.float32) + b23_ref[...]
    mu = head[:, :z]
    logvar = head[:, z:]

    # sample: z = mu + eps * exp(0.5 * logvar)  (eps ~ U[0,1), torch.rand_like)
    zval = mu + eps_ref[...] * jnp.exp(0.5 * logvar)                 # [TB, z]

    # decode: h3 = relu(z @ W4 + b4); x_ = sigmoid(h3 @ W5 + b5)
    h3 = jnp.dot(zval.astype(jnp.bfloat16), w4_ref[...],
                 preferred_element_type=jnp.float32) + b4_ref[...]
    h3 = jnp.maximum(h3, 0.0)                                        # [TB, 512]
    logits = jnp.dot(h3.astype(jnp.bfloat16), w5_ref[...],
                     preferred_element_type=jnp.float32) + b5_ref[...]

    xhat_ref[...] = jax.nn.sigmoid(logits)                           # [TB, 784]
    mulv_ref[...] = head                                             # [TB, 2z]


def mnist_vae_forward(x, params, eps, *, block_b=256):
    """x: [B, 784] f32; params: dict (bf16 weights [in,out], f32 biases [1,out]);
    eps: [B, z] f32 uniform noise.  Returns (x_hat, mu, logvar)."""
    B, f_in = x.shape
    hid = params["w1"].shape[1]
    z2 = params["w23"].shape[1]
    z = z2 // 2
    f_out = params["w5"].shape[1]

    # Batch tile: multiple of 8 (sublane), capped by block_b; pad B if needed.
    TB = min(block_b, _round_up(B, 8))
    Bp = _round_up(B, TB)
    if Bp != B:
        x = jnp.pad(x, ((0, Bp - B), (0, 0)))
        eps = jnp.pad(eps, ((0, Bp - B), (0, 0)))
    grid = (Bp // TB,)

    def rows(shape):          # tiled over the batch grid axis
        return pl.BlockSpec(shape, lambda i: (i, 0))

    def resident(shape):      # constant block index -> stays in VMEM across steps
        return pl.BlockSpec(shape, lambda i: (0, 0))

    in_specs = [
        rows((TB, f_in)),                                   # x
        resident((f_in, hid)), resident((1, hid)),          # w1, b1
        resident((hid, z2)),   resident((1, z2)),           # w23, b23
        resident((z, hid)),    resident((1, hid)),          # w4, b4
        resident((hid, f_out)), resident((1, f_out)),       # w5, b5
        rows((TB, z)),                                      # eps
    ]
    out_specs = (rows((TB, f_out)), rows((TB, z2)))
    out_shape = (
        jax.ShapeDtypeStruct((Bp, f_out), jnp.float32),     # x_
        jax.ShapeDtypeStruct((Bp, z2), jnp.float32),        # [mu | logvar]
    )

    weight_bytes = sum(int(params[k].size) * params[k].dtype.itemsize
                       for k in ("w1", "w23", "w4", "w5"))
    bias_bytes = sum(int(params[k].size) * 4 for k in ("b1", "b23", "b4", "b5"))
    io_bytes = 4 * Bp * (f_in + z + f_out + z2)
    cost = pl.CostEstimate(
        flops=2 * Bp * (f_in * hid + hid * z2 + z * hid + hid * f_out),
        transcendentals=Bp * (z + f_out),
        bytes_accessed=weight_bytes + bias_bytes + io_bytes,
    )

    xhat, mulv = pl.pallas_call(
        vae_forward_kernel,
        grid=grid,
        in_specs=in_specs,
        out_specs=out_specs,
        out_shape=out_shape,
        compiler_params=pltpu.CompilerParams(
            dimension_semantics=("parallel",),              # shards batch across TCs (v7x)
        ),
        cost_estimate=cost,
    )(
        x,
        params["w1"], params["b1"],
        params["w23"], params["b23"],
        params["w4"], params["b4"],
        params["w5"], params["b5"],
        eps,
    )

    return xhat[:B], mulv[:B, :z], mulv[:B, z:]


def init_params(key, z_size=4):
    """Deterministic synthetic init. Weights bf16 [in, out]; biases f32 [1, out].
    fc2/fc3 are pre-fused into w23/b23 ([512, 2z] / [1, 2z])."""
    ks = jax.random.split(key, 10)

    def lin(kw, kb, fin, fout):
        # match PyTorch's default U(-1/sqrt(fin), 1/sqrt(fin)) scale
        bound = 1.0 / (fin ** 0.5)
        w = jax.random.uniform(kw, (fin, fout), jnp.float32, -bound, bound)
        b = jax.random.uniform(kb, (1, fout), jnp.float32, -bound, bound)
        return w, b

    w1, b1 = lin(ks[0], ks[1], 784, 512)
    w2, b2 = lin(ks[2], ks[3], 512, z_size)
    w3, b3 = lin(ks[4], ks[5], 512, z_size)
    w4, b4 = lin(ks[6], ks[7], z_size, 512)
    w5, b5 = lin(ks[8], ks[9], 512, 784)

    w23 = jnp.concatenate([w2, w3], axis=1)
    b23 = jnp.concatenate([b2, b3], axis=1)

    bf = lambda a: a.astype(jnp.bfloat16)
    return dict(
        w1=bf(w1), b1=b1,
        w23=bf(w23), b23=b23,
        w4=bf(w4), b4=b4,
        w5=bf(w5), b5=b5,
    )


if __name__ == "__main__":
    key = jax.random.PRNGKey(0)
    k_param, k_x, k_eps = jax.random.split(key, 3)

    B, z_size = 64, 4
    params = init_params(k_param, z_size=z_size)
    x = jax.random.uniform(k_x, (B, 784), jnp.float32)          # MNIST-like in [0,1)
    eps = jax.random.uniform(k_eps, (B, z_size), jnp.float32)   # matches torch.rand_like (uniform)

    # block_b=32 -> grid=(2,) at B=64, exercising the batch-tiled pipeline.
    x_hat, mu, logvar = mnist_vae_forward(x, params, eps, block_b=32)
    jax.block_until_ready((x_hat, mu, logvar))

    # pure-JAX reference using the same bf16-weight / f32-accumulate arithmetic
    def mm(a, w):
        return jnp.dot(a.astype(jnp.bfloat16), w, preferred_element_type=jnp.float32)

    h1 = jnp.maximum(mm(x, params["w1"]) + params["b1"], 0.0)
    head = mm(h1, params["w23"]) + params["b23"]
    mu_r, lv_r = head[:, :z_size], head[:, z_size:]
    z_r = mu_r + eps * jnp.exp(0.5 * lv_r)
    h3 = jnp.maximum(mm(z_r, params["w4"]) + params["b4"], 0.0)
    xh_r = jax.nn.sigmoid(mm(h3, params["w5"]) + params["b5"])

    assert x_hat.shape == (B, 784) and mu.shape == (B, z_size) and logvar.shape == (B, z_size)
    assert jnp.allclose(mu, mu_r, atol=2e-2, rtol=2e-2)
    assert jnp.allclose(logvar, lv_r, atol=2e-2, rtol=2e-2)
    assert jnp.allclose(x_hat, xh_r, atol=2e-2, rtol=2e-2)

    print("KERNEL_OK")
</pallas_src>

<mosaic_0001>
module attributes {stable_mosaic.version = 11 : i64} {
  func.func @vae_forward_kernel(%arg0: i32, %arg1: memref<32x784xf32, #tpu.memory_space<vmem>>, %arg2: memref<784x512xbf16, #tpu.memory_space<vmem>>, %arg3: memref<1x512xf32, #tpu.memory_space<vmem>>, %arg4: memref<512x8xbf16, #tpu.memory_space<vmem>>, %arg5: memref<1x8xf32, #tpu.memory_space<vmem>>, %arg6: memref<4x512xbf16, #tpu.memory_space<vmem>>, %arg7: memref<1x512xf32, #tpu.memory_space<vmem>>, %arg8: memref<512x784xbf16, #tpu.memory_space<vmem>>, %arg9: memref<1x784xf32, #tpu.memory_space<vmem>>, %arg10: memref<32x4xf32, #tpu.memory_space<vmem>>, %arg11: memref<32x784xf32, #tpu.memory_space<vmem>>, %arg12: memref<32x8xf32, #tpu.memory_space<vmem>>) attributes {dimension_semantics = [#tpu.dimension_semantics<parallel>], iteration_bounds = array<i64: 2>, scalar_prefetch = 0 : i64, scratch_operands = 0 : i64, tpu.core_type = #tpu.core_type<tc>, window_params = [{transform_indices = @transform_0, window_bounds = array<i64: 32, 784>}, {pipeline_mode = #tpu.pipeline_mode<synchronous>, transform_indices = @transform_1, window_bounds = array<i64: 784, 512>}, {pipeline_mode = #tpu.pipeline_mode<synchronous>, transform_indices = @transform_2, window_bounds = array<i64: 1, 512>}, {pipeline_mode = #tpu.pipeline_mode<synchronous>, transform_indices = @transform_3, window_bounds = array<i64: 512, 8>}, {pipeline_mode = #tpu.pipeline_mode<synchronous>, transform_indices = @transform_4, window_bounds = array<i64: 1, 8>}, {pipeline_mode = #tpu.pipeline_mode<synchronous>, transform_indices = @transform_5, window_bounds = array<i64: 4, 512>}, {pipeline_mode = #tpu.pipeline_mode<synchronous>, transform_indices = @transform_6, window_bounds = array<i64: 1, 512>}, {pipeline_mode = #tpu.pipeline_mode<synchronous>, transform_indices = @transform_7, window_bounds = array<i64: 512, 784>}, {pipeline_mode = #tpu.pipeline_mode<synchronous>, transform_indices = @transform_8, window_bounds = array<i64: 1, 784>}, {transform_indices = @transform_9, window_bounds = array<i64: 32, 4>}, {transform_indices = @transform_10, window_bounds = array<i64: 32, 784>}, {transform_indices = @transform_11, window_bounds = array<i64: 32, 8>}]} {
    %c0 = arith.constant 0 : index
    %c0_0 = arith.constant 0 : index
    %0 = vector.load %arg1[%c0, %c0_0] : memref<32x784xf32, #tpu.memory_space<vmem>>, vector<32x784xf32>
    %1 = arith.truncf %0 : vector<32x784xf32> to vector<32x784xbf16>
    %c0_1 = arith.constant 0 : index
    %c0_2 = arith.constant 0 : index
    %2 = vector.load %arg2[%c0_1, %c0_2] : memref<784x512xbf16, #tpu.memory_space<vmem>>, vector<784x512xbf16>
    %cst = arith.constant dense<0.000000e+00> : vector<32x512xf32>
    %3 = tpu.matmul %1, %2, %cst {dimension_numbers = #tpu.dot_dimension_numbers<[1], [0], [0], [1], [0, 0, 1, 1], [], []>} : vector<32x784xbf16>, vector<784x512xbf16>, vector<32x512xf32> -> vector<32x512xf32>
    %c0_3 = arith.constant 0 : index
    %c0_4 = arith.constant 0 : index
    %4 = vector.load %arg3[%c0_3, %c0_4] : memref<1x512xf32, #tpu.memory_space<vmem>>, vector<1x512xf32>
    %5 = vector.broadcast %4 : vector<1x512xf32> to vector<32x512xf32>
    %6 = arith.addf %3, %5 : vector<32x512xf32>
    %cst_5 = arith.constant 0.000000e+00 : f32
    %7 = vector.broadcast %cst_5 : f32 to vector<32x512xf32>
    %8 = arith.maximumf %6, %7 : vector<32x512xf32>
    %9 = arith.truncf %8 : vector<32x512xf32> to vector<32x512xbf16>
    %c0_6 = arith.constant 0 : index
    %c0_7 = arith.constant 0 : index
    %10 = vector.load %arg4[%c0_6, %c0_7] : memref<512x8xbf16, #tpu.memory_space<vmem>>, vector<512x8xbf16>
    %cst_8 = arith.constant dense<0.000000e+00> : vector<32x8xf32>
    %11 = tpu.matmul %9, %10, %cst_8 {dimension_numbers = #tpu.dot_dimension_numbers<[1], [0], [0], [1], [0, 0, 1, 1], [], []>} : vector<32x512xbf16>, vector<512x8xbf16>, vector<32x8xf32> -> vector<32x8xf32>
    %c0_9 = arith.constant 0 : index
    %c0_10 = arith.constant 0 : index
    %12 = vector.load %arg5[%c0_9, %c0_10] : memref<1x8xf32, #tpu.memory_space<vmem>>, vector<1x8xf32>
    %13 = vector.broadcast %12 : vector<1x8xf32> to vector<32x8xf32>
    %14 = arith.addf %11, %13 : vector<32x8xf32>
    %15 = vector.extract_strided_slice %14 {offsets = [0, 0], sizes = [32, 4], strides = [1, 1]} : vector<32x8xf32> to vector<32x4xf32>
    %16 = vector.extract_strided_slice %14 {offsets = [0, 4], sizes = [32, 4], strides = [1, 1]} : vector<32x8xf32> to vector<32x4xf32>
    %c0_11 = arith.constant 0 : index
    %c0_12 = arith.constant 0 : index
    %17 = vector.load %arg10[%c0_11, %c0_12] : memref<32x4xf32, #tpu.memory_space<vmem>>, vector<32x4xf32>
    %cst_13 = arith.constant 5.000000e-01 : f32
    %18 = vector.broadcast %cst_13 : f32 to vector<32x4xf32>
    %19 = arith.mulf %18, %16 : vector<32x4xf32>
    %20 = math.exp %19 : vector<32x4xf32>
    %21 = arith.mulf %17, %20 : vector<32x4xf32>
    %22 = arith.addf %15, %21 : vector<32x4xf32>
    %23 = arith.truncf %22 : vector<32x4xf32> to vector<32x4xbf16>
    %c0_14 = arith.constant 0 : index
    %c0_15 = arith.constant 0 : index
    %24 = vector.load %arg6[%c0_14, %c0_15] : memref<4x512xbf16, #tpu.memory_space<vmem>>, vector<4x512xbf16>
    %cst_16 = arith.constant dense<0.000000e+00> : vector<32x512xf32>
    %25 = tpu.matmul %23, %24, %cst_16 {dimension_numbers = #tpu.dot_dimension_numbers<[1], [0], [0], [1], [0, 0, 1, 1], [], []>} : vector<32x4xbf16>, vector<4x512xbf16>, vector<32x512xf32> -> vector<32x512xf32>
    %c0_17 = arith.constant 0 : index
    %c0_18 = arith.constant 0 : index
    %26 = vector.load %arg7[%c0_17, %c0_18] : memref<1x512xf32, #tpu.memory_space<vmem>>, vector<1x512xf32>
    %27 = vector.broadcast %26 : vector<1x512xf32> to vector<32x512xf32>
    %28 = arith.addf %25, %27 : vector<32x512xf32>
    %cst_19 = arith.constant 0.000000e+00 : f32
    %29 = vector.broadcast %cst_19 : f32 to vector<32x512xf32>
    %30 = arith.maximumf %28, %29 : vector<32x512xf32>
    %31 = arith.truncf %30 : vector<32x512xf32> to vector<32x512xbf16>
    %c0_20 = arith.constant 0 : index
    %c0_21 = arith.constant 0 : index
    %32 = vector.load %arg8[%c0_20, %c0_21] : memref<512x784xbf16, #tpu.memory_space<vmem>>, vector<512x784xbf16>
    %cst_22 = arith.constant dense<0.000000e+00> : vector<32x784xf32>
    %33 = tpu.matmul %31, %32, %cst_22 {dimension_numbers = #tpu.dot_dimension_numbers<[1], [0], [0], [1], [0, 0, 1, 1], [], []>} : vector<32x512xbf16>, vector<512x784xbf16>, vector<32x784xf32> -> vector<32x784xf32>
    %c0_23 = arith.constant 0 : index
    %c0_24 = arith.constant 0 : index
    %34 = vector.load %arg9[%c0_23, %c0_24] : memref<1x784xf32, #tpu.memory_space<vmem>>, vector<1x784xf32>
    %35 = vector.broadcast %34 : vector<1x784xf32> to vector<32x784xf32>
    %36 = arith.addf %33, %35 : vector<32x784xf32>
    %37 = arith.negf %36 : vector<32x784xf32>
    %38 = math.exp %37 : vector<32x784xf32>
    %cst_25 = arith.constant 1.000000e+00 : f32
    %39 = vector.broadcast %cst_25 : f32 to vector<32x784xf32>
    %40 = arith.addf %39, %38 : vector<32x784xf32>
    %41 = arith.divf %39, %40 : vector<32x784xf32>
    %c0_26 = arith.constant 0 : index
    %c0_27 = arith.constant 0 : index
    %42 = vector.load %arg11[%c0_26, %c0_27] : memref<32x784xf32, #tpu.memory_space<vmem>>, vector<32x784xf32>
    tpu.vector_store %arg11[%c0_26, %c0_27], %41 {strides = array<i32>} : memref<32x784xf32, #tpu.memory_space<vmem>>, vector<32x784xf32>,
    %c0_28 = arith.constant 0 : index
    %c0_29 = arith.constant 0 : index
    %43 = vector.load %arg12[%c0_28, %c0_29] : memref<32x8xf32, #tpu.memory_space<vmem>>, vector<32x8xf32>
    tpu.vector_store %arg12[%c0_28, %c0_29], %14 {strides = array<i32>} : memref<32x8xf32, #tpu.memory_space<vmem>>, vector<32x8xf32>,
    return
  }
  func.func @transform_0(%arg0: i32) -> (i32, i32) {
    %c0_i32 = arith.constant 0 : i32
    %c0_i32_0 = arith.constant 0 : i32
    return %arg0, %c0_i32 : i32, i32
  }
  func.func @transform_1(%arg0: i32) -> (i32, i32) {
    %c0_i32 = arith.constant 0 : i32
    %c0_i32_0 = arith.constant 0 : i32
    %c0_i32_1 = arith.constant 0 : i32
    return %c0_i32, %c0_i32_0 : i32, i32
  }
  func.func @transform_2(%arg0: i32) -> (i32, i32) {
    %c0_i32 = arith.constant 0 : i32
    %c0_i32_0 = arith.constant 0 : i32
    %c0_i32_1 = arith.constant 0 : i32
    return %c0_i32, %c0_i32_0 : i32, i32
  }
  func.func @transform_3(%arg0: i32) -> (i32, i32) {
    %c0_i32 = arith.constant 0 : i32
    %c0_i32_0 = arith.constant 0 : i32
    %c0_i32_1 = arith.constant 0 : i32
    return %c0_i32, %c0_i32_0 : i32, i32
  }
  func.func @transform_4(%arg0: i32) -> (i32, i32) {
    %c0_i32 = arith.constant 0 : i32
    %c0_i32_0 = arith.constant 0 : i32
    %c0_i32_1 = arith.constant 0 : i32
    return %c0_i32, %c0_i32_0 : i32, i32
  }
  func.func @transform_5(%arg0: i32) -> (i32, i32) {
    %c0_i32 = arith.constant 0 : i32
    %c0_i32_0 = arith.constant 0 : i32
    %c0_i32_1 = arith.constant 0 : i32
    return %c0_i32, %c0_i32_0 : i32, i32
  }
  func.func @transform_6(%arg0: i32) -> (i32, i32) {
    %c0_i32 = arith.constant 0 : i32
    %c0_i32_0 = arith.constant 0 : i32
    %c0_i32_1 = arith.constant 0 : i32
    return %c0_i32, %c0_i32_0 : i32, i32
  }
  func.func @transform_7(%arg0: i32) -> (i32, i32) {
    %c0_i32 = arith.constant 0 : i32
    %c0_i32_0 = arith.constant 0 : i32
    %c0_i32_1 = arith.constant 0 : i32
    return %c0_i32, %c0_i32_0 : i32, i32
  }
  func.func @transform_8(%arg0: i32) -> (i32, i32) {
    %c0_i32 = arith.constant 0 : i32
    %c0_i32_0 = arith.constant 0 : i32
    %c0_i32_1 = arith.constant 0 : i32
    return %c0_i32, %c0_i32_0 : i32, i32
  }
  func.func @transform_9(%arg0: i32) -> (i32, i32) {
    %c0_i32 = arith.constant 0 : i32
    %c0_i32_0 = arith.constant 0 : i32
    return %arg0, %c0_i32 : i32, i32
  }
  func.func @transform_10(%arg0: i32) -> (i32, i32) {
    %c0_i32 = arith.constant 0 : i32
    %c0_i32_0 = arith.constant 0 : i32
    return %arg0, %c0_i32 : i32, i32
  }
  func.func @transform_11(%arg0: i32) -> (i32, i32) {
    %c0_i32 = arith.constant 0 : i32
    %c0_i32_0 = arith.constant 0 : i32
    return %arg0, %c0_i32 : i32, i32
  }
}

</mosaic_0001>

<llo_original>
// kernel: tpu_custom_call.1
$region0: #{tpu_custom_call.1}
  #allocation0 [shape = 'u32[]', space=smem, size = 0x4, offset = 0x4, fixed_abs, tag = 'smem constant byte address 0x4 - core index']
  #allocation1 [shape = 'u32[144,128]{1,0:T(1,128)}', space=vmem, size = 0x12000, scoped, tag = 'internal scratch']
  %s0 = inlined_call_operand.vmem [shape: f32[64,784], index: 0, kind: input, shape index: {}]
  %s1 = inlined_call_operand.vmem [shape: bf16[784,512], index: 1, kind: input, shape index: {}]
  %s2 = inlined_call_operand.vmem [shape: f32[1,512], index: 2, kind: input, shape index: {}]
  %s3 = inlined_call_operand.vmem [shape: bf16[512,8], index: 3, kind: input, shape index: {}]
  %s4 = inlined_call_operand.vmem [shape: f32[1,8], index: 4, kind: input, shape index: {}]
  %s5 = inlined_call_operand.vmem [shape: bf16[4,512], index: 5, kind: input, shape index: {}]
  %s6 = inlined_call_operand.vmem [shape: f32[1,512], index: 6, kind: input, shape index: {}]
  %s7 = inlined_call_operand.vmem [shape: bf16[512,784], index: 7, kind: input, shape index: {}]
  %s8 = inlined_call_operand.vmem [shape: f32[1,784], index: 8, kind: input, shape index: {}]
  %s9 = inlined_call_operand.vmem [shape: f32[64,4], index: 9, kind: input, shape index: {}]
  %s10 = inlined_call_operand.hbm [shape: f32[64,784], index: 10, kind: output, shape index: {0}]
  %s11 = inlined_call_operand.vmem [shape: f32[64,8], index: 11, kind: output, shape index: {1}]
  %12 = xla_tuple %s10, %s11
  %s13 = sld [smem:[#allocation0]]
  $region81: #{tpu_custom_call.1} parent=0
    _
  %s15 = ssub.s32 1, %s13
  %s16 = scalar_select 0, %s15, %s13
  $region1: #{tpu_custom_call.1} parent=0
    #allocation2 [shape = 'u8[229376]{0}', space=vmem, size = 0x38000, scoped, tag = 'output window, operand 0']
    #allocation3 [shape = 's32[2]{0}', space=sflag, size = 0x8, scoped, tag = 'scoped memory for tpu_custom_call.1']
    %17 = vsyncpa [#allocation3], 0
    %s18 = scalar_lea.sflag [#allocation3], 1
    %19 = vsyncpa %s18, 0
    loop: start=0, step=1, limit=4
    $region2: #{tpu_custom_call.1} parent=1 // loop_pre_header
      _
    $region3: #{tpu_custom_call.1} parent=1 // loop_header
      %s21 = sphi 0, %s25
      %p22 = scmp.ge.s32.totalorder %s21, 4
      %s31 = sphi 0, %s33
      %s34 = sphi 0, %s31
      %s35 = sphi 0, %s34
      %s51 = sphi 0, %s35
      %s55 = sphi 0, %s55
      %s57 = sphi 0, %s55
      %s58 = sphi 0, %s57
      %s72 = sphi 0, %s58
      %s76 = sphi 0, %s76
      %s78 = sphi 0, %s76
      %s79 = sphi 0, %s78
      %s93 = sphi 0, %s79
      %s97 = sphi 0, %s97
      %s99 = sphi 0, %s97
      %s100 = sphi 0, %s99
      %s114 = sphi 0, %s100
      %s118 = sphi 0, %s118
      %s120 = sphi 0, %s118
      %s121 = sphi 0, %s120
      %s135 = sphi 0, %s121
      %s139 = sphi 0, %s139
      %s141 = sphi 0, %s139
      %s142 = sphi 0, %s141
      %s156 = sphi 0, %s142
      %s160 = sphi 0, %s160
      %s162 = sphi 0, %s160
      %s163 = sphi 0, %s162
      %s177 = sphi 0, %s163
      %s181 = sphi 0, %s181
      %s183 = sphi 0, %s181
      %s184 = sphi 0, %s183
      %s198 = sphi 0, %s184
      %s202 = sphi 0, %s202
      %s204 = sphi 0, %s202
      %s205 = sphi 0, %s204
      %s219 = sphi 0, %s205
      %s225 = sphi 0, %s227
      %s228 = sphi 0, %s225
      %s229 = sphi 0, %s228
      %s245 = sphi 0, %s229
      %s251 = sphi 0, %s253
      %s254 = sphi 0, %s251
      %s255 = sphi 0, %s254
      %s271 = sphi 0, %s255
      %s277 = sphi 0, %s279
      %s280 = sphi 0, %s277
      %s281 = sphi 0, %s280
      %s297 = sphi 0, %s281
    $region4: #{tpu_custom_call.1} parent=1 // loop_header_branch
      %24 = sbr.rel (%p22) target = $region8
    $region5: #{tpu_custom_call.1} parent=1 // loop_body
      %s26 = ssub.s32 %s21, 1
      %s27 = ssub.s32 %s21, 2
      %s28 = sadd.s32 %s21, 1
      %s29 = ssub.s32 %s21, %s28
      %p30 = scmp.eq.s32.totalorder %s29, 0
      %s32 = sadd.s32 %s31, 1
      %s33 = scalar_select %p30, %s31, %s32
      %p36 = pneg %p30
      %p37 = scmp.eq.s32.totalorder %s21, 1
      %p38 = por %p36, %p37
      %p39 = scmp.ne.s32.totalorder %s31, %s34
      %p40 = scmp.eq.s32.totalorder %s21, 0
      %p41 = por %p39, %p40
      %p42 = scmp.ne.s32.totalorder %s31, %s34
      %p43 = scmp.eq.s32.totalorder %s26, 1
      %p44 = por %p42, %p43
      %p45 = scmp.ne.s32.totalorder %s34, %s35
      %p46 = scmp.eq.s32.totalorder %s26, 0
      %p47 = por %p45, %p46
      %p48 = scmp.ne.s32.totalorder %s34, %s35
      %p49 = scmp.eq.s32.totalorder %s27, 1
      %p50 = por %p48, %p49
      %p52 = scmp.ne.s32.totalorder %s35, %s51
      %p53 = scmp.eq.s32.totalorder %s27, 0
      %p54 = por %p52, %p53
      %s56 = sadd.s32 %s55, 1
      %p59 = scmp.eq.s32.totalorder %s21, 1
      %p60 = scmp.ne.s32.totalorder %s55, %s57
      %p61 = scmp.eq.s32.totalorder %s21, 0
      %p62 = por %p60, %p61
      %p63 = scmp.ne.s32.totalorder %s55, %s57
      %p64 = scmp.eq.s32.totalorder %s26, 1
      %p65 = por %p63, %p64
      %p66 = scmp.ne.s32.totalorder %s57, %s58
      %p67 = scmp.eq.s32.totalorder %s26, 0
      %p68 = por %p66, %p67
      %p69 = scmp.ne.s32.totalorder %s57, %s58
      %p70 = scmp.eq.s32.totalorder %s27, 1
      %p71 = por %p69, %p70
      %p73 = scmp.ne.s32.totalorder %s58, %s72
      %p74 = scmp.eq.s32.totalorder %s27, 0
      %p75 = por %p73, %p74
      %s77 = sadd.s32 %s76, 1
      %p80 = scmp.eq.s32.totalorder %s21, 1
      %p81 = scmp.ne.s32.totalorder %s76, %s78
      %p82 = scmp.eq.s32.totalorder %s21, 0
      %p83 = por %p81, %p82
      %p84 = scmp.ne.s32.totalorder %s76, %s78
      %p85 = scmp.eq.s32.totalorder %s26, 1
      %p86 = por %p84, %p85
      %p87 = scmp.ne.s32.totalorder %s78, %s79
      %p88 = scmp.eq.s32.totalorder %s26, 0
      %p89 = por %p87, %p88
      %p90 = scmp.ne.s32.totalorder %s78, %s79
      %p91 = scmp.eq.s32.totalorder %s27, 1
      %p92 = por %p90, %p91
      %p94 = scmp.ne.s32.totalorder %s79, %s93
      %p95 = scmp.eq.s32.totalorder %s27, 0
      %p96 = por %p94, %p95
      %s98 = sadd.s32 %s97, 1
      %p101 = scmp.eq.s32.totalorder %s21, 1
      %p102 = scmp.ne.s32.totalorder %s97, %s99
      %p103 = scmp.eq.s32.totalorder %s21, 0
      %p104 = por %p102, %p103
      %p105 = scmp.ne.s32.totalorder %s97, %s99
      %p106 = scmp.eq.s32.totalorder %s26, 1
      %p107 = por %p105, %p106
      %p108 = scmp.ne.s32.totalorder %s99, %s100
      %p109 = scmp.eq.s32.totalorder %s26, 0
      %p110 = por %p108, %p109
      %p111 = scmp.ne.s32.totalorder %s99, %s100
      %p112 = scmp.eq.s32.totalorder %s27, 1
      %p113 = por %p111, %p112
      %p115 = scmp.ne.s32.totalorder %s100, %s114
      %p116 = scmp.eq.s32.totalorder %s27, 0
      %p117 = por %p115, %p116
      %s119 = sadd.s32 %s118, 1
      %p122 = scmp.eq.s32.totalorder %s21, 1
      %p123 = scmp.ne.s32.totalorder %s118, %s120
      %p124 = scmp.eq.s32.totalorder %s21, 0
      %p125 = por %p123, %p124
      %p126 = scmp.ne.s32.totalorder %s118, %s120
      %p127 = scmp.eq.s32.totalorder %s26, 1
      %p128 = por %p126, %p127
      %p129 = scmp.ne.s32.totalorder %s120, %s121
      %p130 = scmp.eq.s32.totalorder %s26, 0
      %p131 = por %p129, %p130
      %p132 = scmp.ne.s32.totalorder %s120, %s121
      %p133 = scmp.eq.s32.totalorder %s27, 1
      %p134 = por %p132, %p133
      %p136 = scmp.ne.s32.totalorder %s121, %s135
      %p137 = scmp.eq.s32.totalorder %s27, 0
      %p138 = por %p136, %p137
      %s140 = sadd.s32 %s139, 1
      %p143 = scmp.eq.s32.totalorder %s21, 1
      %p144 = scmp.ne.s32.totalorder %s139, %s141
      %p145 = scmp.eq.s32.totalorder %s21, 0
      %p146 = por %p144, %p145
      %p147 = scmp.ne.s32.totalorder %s139, %s141
      %p148 = scmp.eq.s32.totalorder %s26, 1
      %p149 = por %p147, %p148
      %p150 = scmp.ne.s32.totalorder %s141, %s142
      %p151 = scmp.eq.s32.totalorder %s26, 0
      %p152 = por %p150, %p151
      %p153 = scmp.ne.s32.totalorder %s141, %s142
      %p154 = scmp.eq.s32.totalorder %s27, 1
      %p155 = por %p153, %p154
      %p157 = scmp.ne.s32.totalorder %s142, %s156
      %p158 = scmp.eq.s32.totalorder %s27, 0
      %p159 = por %p157, %p158
      %s161 = sadd.s32 %s160, 1
      %p164 = scmp.eq.s32.totalorder %s21, 1
      %p165 = scmp.ne.s32.totalorder %s160, %s162
      %p166 = scmp.eq.s32.totalorder %s21, 0
      %p167 = por %p165, %p166
      %p168 = scmp.ne.s32.totalorder %s160, %s162
      %p169 = scmp.eq.s32.totalorder %s26, 1
      %p170 = por %p168, %p169
      %p171 = scmp.ne.s32.totalorder %s162, %s163
      %p172 = scmp.eq.s32.totalorder %s26, 0
      %p173 = por %p171, %p172
      %p174 = scmp.ne.s32.totalorder %s162, %s163
      %p175 = scmp.eq.s32.totalorder %s27, 1
      %p176 = por %p174, %p175
      %p178 = scmp.ne.s32.totalorder %s163, %s177
      %p179 = scmp.eq.s32.totalorder %s27, 0
      %p180 = por %p178, %p179
      %s182 = sadd.s32 %s181, 1
      %p185 = scmp.eq.s32.totalorder %s21, 1
      %p186 = scmp.ne.s32.totalorder %s181, %s183
      %p187 = scmp.eq.s32.totalorder %s21, 0
      %p188 = por %p186, %p187
      %p189 = scmp.ne.s32.totalorder %s181, %s183
      %p190 = scmp.eq.s32.totalorder %s26, 1
      %p191 = por %p189, %p190
      %p192 = scmp.ne.s32.totalorder %s183, %s184
      %p193 = scmp.eq.s32.totalorder %s26, 0
      %p194 = por %p192, %p193
      %p195 = scmp.ne.s32.totalorder %s183, %s184
      %p196 = scmp.eq.s32.totalorder %s27, 1
      %p197 = por %p195, %p196
      %p199 = scmp.ne.s32.totalorder %s184, %s198
      %p200 = scmp.eq.s32.totalorder %s27, 0
      %p201 = por %p199, %p200
      %s203 = sadd.s32 %s202, 1
      %p206 = scmp.eq.s32.totalorder %s21, 1
      %p207 = scmp.ne.s32.totalorder %s202, %s204
      %p208 = scmp.eq.s32.totalorder %s21, 0
      %p209 = por %p207, %p208
      %p210 = scmp.ne.s32.totalorder %s202, %s204
      %p211 = scmp.eq.s32.totalorder %s26, 1
      %p212 = por %p210, %p211
      %p213 = scmp.ne.s32.totalorder %s204, %s205
      %p214 = scmp.eq.s32.totalorder %s26, 0
      %p215 = por %p213, %p214
      %p216 = scmp.ne.s32.totalorder %s204, %s205
      %p217 = scmp.eq.s32.totalorder %s27, 1
      %p218 = por %p216, %p217
      %p220 = scmp.ne.s32.totalorder %s205, %s219
      %p221 = scmp.eq.s32.totalorder %s27, 0
      %p222 = por %p220, %p221
      %s223 = ssub.s32 %s21, %s28
      %p224 = scmp.eq.s32.totalorder %s223, 0
      %s226 = sadd.s32 %s225, 1
      %s227 = scalar_select %p224, %s225, %s226
      %p230 = pneg %p224
      %p231 = scmp.eq.s32.totalorder %s21, 1
      %p232 = por %p230, %p231
      %p233 = scmp.ne.s32.totalorder %s225, %s228
      %p234 = scmp.eq.s32.totalorder %s21, 0
      %p235 = por %p233, %p234
      %p236 = scmp.ne.s32.totalorder %s225, %s228
      %p237 = scmp.eq.s32.totalorder %s26, 1
      %p238 = por %p236, %p237
      %p239 = scmp.ne.s32.totalorder %s228, %s229
      %p240 = scmp.eq.s32.totalorder %s26, 0
      %p241 = por %p239, %p240
      %p242 = scmp.ne.s32.totalorder %s228, %s229
      %p243 = scmp.eq.s32.totalorder %s27, 1
      %p244 = por %p242, %p243
      %p246 = scmp.ne.s32.totalorder %s229, %s245
      %p247 = scmp.eq.s32.totalorder %s27, 0
      %p248 = por %p246, %p247
      %s249 = ssub.s32 %s21, %s28
      %p250 = scmp.eq.s32.totalorder %s249, 0
      %s252 = sadd.s32 %s251, 1
      %s253 = scalar_select %p250, %s251, %s252
      %p256 = pneg %p250
      %p257 = scmp.eq.s32.totalorder %s21, 1
      %p258 = por %p256, %p257
      %p259 = scmp.ne.s32.totalorder %s251, %s254
      %p260 = scmp.eq.s32.totalorder %s21, 0
      %p261 = por %p259, %p260
      %p262 = scmp.ne.s32.totalorder %s251, %s254
      %p263 = scmp.eq.s32.totalorder %s26, 1
      %p264 = por %p262, %p263
      %p265 = scmp.ne.s32.totalorder %s254, %s255
      %p266 = scmp.eq.s32.totalorder %s26, 0
      %p267 = por %p265, %p266
      %p268 = scmp.ne.s32.totalorder %s254, %s255
      %p269 = scmp.eq.s32.totalorder %s27, 1
      %p270 = por %p268, %p269
      %p272 = scmp.ne.s32.totalorder %s255, %s271
      %p273 = scmp.eq.s32.totalorder %s27, 0
      %p274 = por %p272, %p273
      %s275 = ssub.s32 %s21, %s28
      %p276 = scmp.eq.s32.totalorder %s275, 0
      %s278 = sadd.s32 %s277, 1
      %s279 = scalar_select %p276, %s277, %s278
      %p282 = pneg %p276
      %p283 = scmp.eq.s32.totalorder %s21, 1
      %p284 = por %p282, %p283
      %p285 = scmp.ne.s32.totalorder %s277, %s280
      %p286 = scmp.eq.s32.totalorder %s21, 0
      %p287 = por %p285, %p286
      %p288 = scmp.ne.s32.totalorder %s277, %s280
      %p289 = scmp.eq.s32.totalorder %s26, 1
      %p290 = por %p288, %p289
      %p291 = scmp.ne.s32.totalorder %s280, %s281
      %p292 = scmp.eq.s32.totalorder %s26, 0
      %p293 = por %p291, %p292
      %p294 = scmp.ne.s32.totalorder %s280, %s281
      %p295 = scmp.eq.s32.totalorder %s27, 1
      %p296 = por %p294, %p295
      %p298 = scmp.ne.s32.totalorder %s281, %s297
      %p299 = scmp.eq.s32.totalorder %s27, 0
      %p300 = por %p298, %p299
      %p301 = scmp.le.s32.totalorder 1, %s21
      %p302 = scmp.lt.s32.totalorder %s21, 3
      %p303 = pnand %p301, %p302
      %p304 = pneg %p303
      // Predicated region
      $region9: #{tpu_custom_call.1} parent=5 // pred_check
        _
      $region10: #{tpu_custom_call.1} parent=5 // pred_check_branch
        %306 = sbr.rel (%p303) target = $region12
      $region11: #{tpu_custom_call.1} parent=5 // pred_region
        %s307 = ssub.s32 %s21, 1
        // Predicated region
        $region13: #{tpu_custom_call.1} parent=11 // pred_check
          %p308 = pneg %p68
        $region14: #{tpu_custom_call.1} parent=11 // pred_check_branch
          %310 = sbr.rel (%p308) target = $region16
        $region15: #{tpu_custom_call.1} parent=11 // pred_region
          _
        $region16: #{tpu_custom_call.1} parent=11 // pred_fallthru
          _
        // Predicated region
        $region17: #{tpu_custom_call.1} parent=11 // pred_check
          %p311 = pneg %p89
        $region18: #{tpu_custom_call.1} parent=11 // pred_check_branch
          %313 = sbr.rel (%p311) target = $region20
        $region19: #{tpu_custom_call.1} parent=11 // pred_region
          _
        $region20: #{tpu_custom_call.1} parent=11 // pred_fallthru
          _
        // Predicated region
        $region21: #{tpu_custom_call.1} parent=11 // pred_check
          %p314 = pneg %p110
        $region22: #{tpu_custom_call.1} parent=11 // pred_check_branch
          %316 = sbr.rel (%p314) target = $region24
        $region23: #{tpu_custom_call.1} parent=11 // pred_region
          _
        $region24: #{tpu_custom_call.1} parent=11 // pred_fallthru
          _
        // Predicated region
        $region25: #{tpu_custom_call.1} parent=11 // pred_check
          %p317 = pneg %p131
        $region26: #{tpu_custom_call.1} parent=11 // pred_check_branch
          %319 = sbr.rel (%p317) target = $region28
        $region27: #{tpu_custom_call.1} parent=11 // pred_region
          _
        $region28: #{tpu_custom_call.1} parent=11 // pred_fallthru
          _
        // Predicated region
        $region29: #{tpu_custom_call.1} parent=11 // pred_check
          %p320 = pneg %p152
        $region30: #{tpu_custom_call.1} parent=11 // pred_check_branch
          %322 = sbr.rel (%p320) target = $region32
        $region31: #{tpu_custom_call.1} parent=11 // pred_region
          _
        $region32: #{tpu_custom_call.1} parent=11 // pred_fallthru
          _
        // Predicated region
        $region33: #{tpu_custom_call.1} parent=11 // pred_check
          %p323 = pneg %p173
        $region34: #{tpu_custom_call.1} parent=11 // pred_check_branch
          %325 = sbr.rel (%p323) target = $region36
        $region35: #{tpu_custom_call.1} parent=11 // pred_region
          _
        $region36: #{tpu_custom_call.1} parent=11 // pred_fallthru
          _
        // Predicated region
        $region37: #{tpu_custom_call.1} parent=11 // pred_check
          %p326 = pneg %p194
        $region38: #{tpu_custom_call.1} parent=11 // pred_check_branch
          %328 = sbr.rel (%p326) target = $region40
        $region39: #{tpu_custom_call.1} parent=11 // pred_region
          _
        $region40: #{tpu_custom_call.1} parent=11 // pred_fallthru
          _
        // Predicated region
        $region41: #{tpu_custom_call.1} parent=11 // pred_check
          %p329 = pneg %p215
        $region42: #{tpu_custom_call.1} parent=11 // pred_check_branch
          %331 = sbr.rel (%p329) target = $region44
        $region43: #{tpu_custom_call.1} parent=11 // pred_region
          _
        $region44: #{tpu_custom_call.1} parent=11 // pred_fallthru
          _
      $region12: #{tpu_custom_call.1} parent=5 // pred_fallthru
        _
      %p332 = scmp.lt.s32.totalorder %s21, 2
      // Predicated region
      $region45: #{tpu_custom_call.1} parent=5 // pred_check
        %p333 = pneg %p332
      $region46: #{tpu_custom_call.1} parent=5 // pred_check_branch
        %335 = sbr.rel (%p333) target = $region48
      $region47: #{tpu_custom_call.1} parent=5 // pred_region
        // Predicated region
        $region49: #{tpu_custom_call.1} parent=47 // pred_check
          %p336 = pneg %p41
        $region50: #{tpu_custom_call.1} parent=47 // pred_check_branch
          %338 = sbr.rel (%p336) target = $region52
        $region51: #{tpu_custom_call.1} parent=47 // pred_region
          %s339 = smul.u32 4, %s21
          %p340 = scmp.lt.s32.totalorder %s339, 7
          %s341 = scalar_select %p340, %s339, 7
          %s342 = smul.addr %s341, 7
          %s343 = smul.addr %s342, 8
          %s344 = scalar_lea.vmem %s0, %s343
          %s345 = smul.u32 4, %s21
        $region52: #{tpu_custom_call.1} parent=47 // pred_fallthru
          _
        // Predicated region
        $region53: #{tpu_custom_call.1} parent=47 // pred_check
          %p346 = pneg %p235
        $region54: #{tpu_custom_call.1} parent=47 // pred_check_branch
          %348 = sbr.rel (%p346) target = $region56
        $region55: #{tpu_custom_call.1} parent=47 // pred_region
          %s349 = smul.u32 4, %s21
          %p350 = scmp.lt.s32.totalorder %s349, 7
          %s351 = scalar_select %p350, %s349, 7
          %s352 = smul.addr %s351, 8
          %s353 = scalar_lea.vmem %s9, %s352
          %s354 = smul.u32 4, %s21
        $region56: #{tpu_custom_call.1} parent=47 // pred_fallthru
          _
      $region48: #{tpu_custom_call.1} parent=5 // pred_fallthru
        _
      %p355 = scmp.le.s32.totalorder 1, %s21
      %p356 = scmp.lt.s32.totalorder %s21, 3
      %p357 = pnand %p355, %p356
      %p358 = pneg %p357
      // Predicated region
      $region57: #{tpu_custom_call.1} parent=5 // pred_check
        _
      $region58: #{tpu_custom_call.1} parent=5 // pred_check_branch
        %360 = sbr.rel (%p357) target = $region60
      $region59: #{tpu_custom_call.1} parent=5 // pred_region
        %s361 = ssub.s32 %s21, 1
        %s362 = smul.u32 4, %s26
        %p363 = scmp.lt.s32.totalorder %s362, 7
        %s364 = scalar_select %p363, %s362, 7
        %s365 = smul.addr %s364, 7
        %s366 = smul.addr %s365, 8
        %s367 = scalar_lea.vmem %s0, %s366
        %p368 = pneg %p47
        %p369 = pneg %p44
        %p370 = pneg %p68
        %p371 = pneg %p65
        %p372 = pneg %p89
        %p373 = pneg %p86
        %p374 = pneg %p110
        %p375 = pneg %p107
        %p376 = pneg %p131
        %p377 = pneg %p128
        %p378 = pneg %p152
        %p379 = pneg %p149
        %p380 = pneg %p173
        %p381 = pneg %p170
        %p382 = pneg %p194
        %p383 = pneg %p191
        %p384 = pneg %p215
        %p385 = pneg %p212
        %s386 = smul.u32 4, %s26
        %p387 = scmp.lt.s32.totalorder %s386, 7
        %s388 = scalar_select %p387, %s386, 7
        %s389 = smul.addr %s388, 8
        %s390 = scalar_lea.vmem %s9, %s389
        %p391 = pneg %p241
        %p392 = pneg %p238
        %p393 = pneg %p267
        %p394 = pneg %p264
        %s395 = sand.u32 %s254, 1
        %s396 = scalar_lea.sflag [#allocation3], %s395
        %s397 = sand.u32 %s254, 1
        %s398 = smul.addr %s397, 224
        %s399 = scalar_lea.vmem [#allocation2], %s398
        %p400 = pneg %p293
        %p401 = pneg %p290
        %s402 = smul.u32 4, %s26
        %p403 = scmp.lt.s32.totalorder %s402, 7
        %s404 = scalar_select %p403, %s402, 7
        %s405 = smul.addr %s404, 8
        %s406 = scalar_lea.vmem %s11, %s405
        %s407 = smul.u32 4, %s26
        %p408 = scmp.lt.s32.totalorder %s407, 7
        %s409 = scalar_select %p408, %s407, 7
        %s410 = smul.addr %s409, 7
        %s411 = smul.addr %s410, 8
        %s412 = scalar_lea.vmem %s0, %s411
        %s413 = smul.u32 4, %s26
        %s414 = smul.u32 4, %s26
        %p415 = scmp.lt.s32.totalorder %s414, 7
        %s416 = scalar_select %p415, %s414, 7
        %s417 = smul.addr %s416, 8
        %s418 = scalar_lea.vmem %s9, %s417
        %s419 = smul.u32 4, %s26
        %s420 = smul.u32 4, %s26
        %s421 = smul.u32 4, %s26
        %p422 = scmp.lt.s32.totalorder %s421, 7
        %s423 = scalar_select %p422, %s421, 7
        %s424 = smul.addr %s423, 8
        %s425 = scalar_lea.vmem %s11, %s424
        %s426 = smul.u32 4, %s26
        %v428 = vld [vmem:[%s412] sm:$0xff]
        %v429 = vld [vmem:[%s412 + $0x8] sm:$0xff]
        %v430 = vld [vmem:[%s412 + $0x10] sm:$0xff]
        %v431 = vld [vmem:[%s412 + $0x18] sm:$0xff]
        %v432 = vld [vmem:[%s412 + $0x20] sm:$0xff]
        %v433 = vld [vmem:[%s412 + $0x28] sm:$0xff]
        %v434 = vld [vmem:[%s412 + $0x30] sm:$0xff]
        %v435 = vld [vmem:[%s412 + $0x38] sm:$0xff]
        %v436 = vld [vmem:[%s412 + $0x40] sm:$0xff]
        %v437 = vld [vmem:[%s412 + $0x48] sm:$0xff]
        %v438 = vld [vmem:[%s412 + $0x50] sm:$0xff]
        %v439 = vld [vmem:[%s412 + $0x58] sm:$0xff]
        %v440 = vld [vmem:[%s412 + $0x60] sm:$0xff]
        %v441 = vld [vmem:[%s412 + $0x68] sm:$0xff]
        %v442 = vld [vmem:[%s412 + $0x70] sm:$0xff]
        %v443 = vld [vmem:[%s412 + $0x78] sm:$0xff]
        %v444 = vld [vmem:[%s412 + $0x80] sm:$0xff]
        %v445 = vld [vmem:[%s412 + $0x88] sm:$0xff]
        %v446 = vld [vmem:[%s412 + $0x90] sm:$0xff]
        %v447 = vld [vmem:[%s412 + $0x98] sm:$0xff]
        %v448 = vld [vmem:[%s412 + $0xa0] sm:$0xff]
        %v449 = vld [vmem:[%s412 + $0xa8] sm:$0xff]
        %v450 = vld [vmem:[%s412 + $0xb0] sm:$0xff]
        %v451 = vld [vmem:[%s412 + $0xb8] sm:$0xff]
        %v452 = vld [vmem:[%s412 + $0xc0] sm:$0xff]
        %v453 = vld [vmem:[%s412 + $0xc8] sm:$0xff]
        %v454 = vld [vmem:[%s412 + $0xd0] sm:$0xff]
        %v455 = vld [vmem:[%s412 + $0xd8] sm:$0xff]
        %v456 = vpack.c.bf16 %v435, %v428
        %v457 = vpack.c.bf16 %v436, %v429
        %v458 = vpack.c.bf16 %v437, %v430
        %v459 = vpack.c.bf16 %v438, %v431
        %v460 = vpack.c.bf16 %v439, %v432
        %v461 = vpack.c.bf16 %v440, %v433
        %v462 = vpack.c.bf16 %v441, %v434
        %v463 = vpack.c.bf16 %v449, %v442
        %v464 = vpack.c.bf16 %v450, %v443
        %v465 = vpack.c.bf16 %v451, %v444
        %v466 = vpack.c.bf16 %v452, %v445
        %v467 = vpack.c.bf16 %v453, %v446
        %v468 = vpack.c.bf16 %v454, %v447
        %v469 = vpack.c.bf16 %v455, %v448
        %v470 = vld [vmem:[%s1] sm:$0xff]
        %v471 = vld [vmem:[%s1 + $0x8] sm:$0xff]
        %v472 = vld [vmem:[%s1 + $0x10] sm:$0xff]
        %v473 = vld [vmem:[%s1 + $0x18] sm:$0xff]
        %v474 = vld [vmem:[%s1 + $0x20] sm:$0xff]
        %v475 = vld [vmem:[%s1 + $0x28] sm:$0xff]
        %v476 = vld [vmem:[%s1 + $0x30] sm:$0xff]
        %v477 = vld [vmem:[%s1 + $0x38] sm:$0xff]
        %v478 = vld [vmem:[%s1 + $0x40] sm:$0xff]
        %v479 = vld [vmem:[%s1 + $0x48] sm:$0xff]
        %v480 = vld [vmem:[%s1 + $0x50] sm:$0xff]
        %v481 = vld [vmem:[%s1 + $0x58] sm:$0xff]
        %v482 = vld [vmem:[%s1 + $0x60] sm:$0xff]
        %v483 = vld [vmem:[%s1 + $0x68] sm:$0xff]
        %v484 = vld [vmem:[%s1 + $0x70] sm:$0xff]
        %v485 = vld [vmem:[%s1 + $0x78] sm:$0xff]
        %v486 = vld [vmem:[%s1 + $0x80] sm:$0xff]
        %v487 = vld [vmem:[%s1 + $0x88] sm:$0xff]
        %v488 = vld [vmem:[%s1 + $0x90] sm:$0xff]
        %v489 = vld [vmem:[%s1 + $0x98] sm:$0xff]
        %v490 = vld [vmem:[%s1 + $0xa0] sm:$0xff]
        %v491 = vld [vmem:[%s1 + $0xa8] sm:$0xff]
        %v492 = vld [vmem:[%s1 + $0xb0] sm:$0xff]
        %v493 = vld [vmem:[%s1 + $0xb8] sm:$0xff]
        %v494 = vld [vmem:[%s1 + $0xc0] sm:$0xff]
        %v495 = vld [vmem:[%s1 + $0xc8] sm:$0xff]
        %v496 = vld [vmem:[%s1 + $0xd0] sm:$0xff]
        %v497 = vld [vmem:[%s1 + $0xd8] sm:$0xff]
        %v498 = vld [vmem:[%s1 + $0xe0] sm:$0xff]
        %v499 = vld [vmem:[%s1 + $0xe8] sm:$0xff]
        %v500 = vld [vmem:[%s1 + $0xf0] sm:$0xff]
        %v501 = vld [vmem:[%s1 + $0xf8] sm:$0xff]
        %v502 = vld [vmem:[%s1 + $0x100] sm:$0xff]
        %v503 = vld [vmem:[%s1 + $0x108] sm:$0xff]
        %v504 = vld [vmem:[%s1 + $0x110] sm:$0xff]
        %v505 = vld [vmem:[%s1 + $0x118] sm:$0xff]
        %v506 = vld [vmem:[%s1 + $0x120] sm:$0xff]
        %v507 = vld [vmem:[%s1 + $0x128] sm:$0xff]
        %v508 = vld [vmem:[%s1 + $0x130] sm:$0xff]
        %v509 = vld [vmem:[%s1 + $0x138] sm:$0xff]
        %v510 = vld [vmem:[%s1 + $0x140] sm:$0xff]
        %v511 = vld [vmem:[%s1 + $0x148] sm:$0xff]
        %v512 = vld [vmem:[%s1 + $0x150] sm:$0xff]
        %v513 = vld [vmem:[%s1 + $0x158] sm:$0xff]
        %v514 = vld [vmem:[%s1 + $0x160] sm:$0xff]
        %v515 = vld [vmem:[%s1 + $0x168] sm:$0xff]
        %v516 = vld [vmem:[%s1 + $0x170] sm:$0xff]
        %v517 = vld [vmem:[%s1 + $0x178] sm:$0xff]
        %v518 = vld [vmem:[%s1 + $0x180] sm:$0xff]
        %v519 = vld [vmem:[%s1 + $0x188] sm:$0xff]
        %v520 = vld [vmem:[%s1 + $0x190] sm:$0xff]
        %v521 = vld [vmem:[%s1 + $0x198] sm:$0xff]
        %v522 = vld [vmem:[%s1 + $0x1a0] sm:$0xff]
        %v523 = vld [vmem:[%s1 + $0x1a8] sm:$0xff]
        %v524 = vld [vmem:[%s1 + $0x1b0] sm:$0xff]
        %v525 = vld [vmem:[%s1 + $0x1b8] sm:$0xff]
        %v526 = vld [vmem:[%s1 + $0x1c0] sm:$0xff]
        %v527 = vld [vmem:[%s1 + $0x1c8] sm:$0xff]
        %v528 = vld [vmem:[%s1 + $0x1d0] sm:$0xff]
        %v529 = vld [vmem:[%s1 + $0x1d8] sm:$0xff]
        %v530 = vld [vmem:[%s1 + $0x1e0] sm:$0xff]
        %v531 = vld [vmem:[%s1 + $0x1e8] sm:$0xff]
        %v532 = vld [vmem:[%s1 + $0x1f0] sm:$0xff]
        %v533 = vld [vmem:[%s1 + $0x1f8] sm:$0xff]
        %v534 = vld [vmem:[%s1 + $0x200] sm:$0xff]
        %v535 = vld [vmem:[%s1 + $0x208] sm:$0xff]
        %v536 = vld [vmem:[%s1 + $0x210] sm:$0xff]
        %v537 = vld [vmem:[%s1 + $0x218] sm:$0xff]
        %v538 = vld [vmem:[%s1 + $0x220] sm:$0xff]
        %v539 = vld [vmem:[%s1 + $0x228] sm:$0xff]
        %v540 = vld [vmem:[%s1 + $0x230] sm:$0xff]
        %v541 = vld [vmem:[%s1 + $0x238] sm:$0xff]
        %v542 = vld [vmem:[%s1 + $0x240] sm:$0xff]
        %v543 = vld [vmem:[%s1 + $0x248] sm:$0xff]
        %v544 = vld [vmem:[%s1 + $0x250] sm:$0xff]
        %v545 = vld [vmem:[%s1 + $0x258] sm:$0xff]
        %v546 = vld [vmem:[%s1 + $0x260] sm:$0xff]
        %v547 = vld [vmem:[%s1 + $0x268] sm:$0xff]
        %v548 = vld [vmem:[%s1 + $0x270] sm:$0xff]
        %v549 = vld [vmem:[%s1 + $0x278] sm:$0xff]
        %v550 = vld [vmem:[%s1 + $0x280] sm:$0xff]
        %v551 = vld [vmem:[%s1 + $0x288] sm:$0xff]
        %v552 = vld [vmem:[%s1 + $0x290] sm:$0xff]
        %v553 = vld [vmem:[%s1 + $0x298] sm:$0xff]
        %v554 = vld [vmem:[%s1 + $0x2a0] sm:$0xff]
        %v555 = vld [vmem:[%s1 + $0x2a8] sm:$0xff]
        %v556 = vld [vmem:[%s1 + $0x2b0] sm:$0xff]
        %v557 = vld [vmem:[%s1 + $0x2b8] sm:$0xff]
        %v558 = vld [vmem:[%s1 + $0x2c0] sm:$0xff]
        %v559 = vld [vmem:[%s1 + $0x2c8] sm:$0xff]
        %v560 = vld [vmem:[%s1 + $0x2d0] sm:$0xff]
        %v561 = vld [vmem:[%s1 + $0x2d8] sm:$0xff]
        %v562 = vld [vmem:[%s1 + $0x2e0] sm:$0xff]
        %v563 = vld [vmem:[%s1 + $0x2e8] sm:$0xff]
        %v564 = vld [vmem:[%s1 + $0x2f0] sm:$0xff]
        %v565 = vld [vmem:[%s1 + $0x2f8] sm:$0xff]
        %v566 = vld [vmem:[%s1 + $0x300] sm:$0xff]
        %v567 = vld [vmem:[%s1 + $0x308] sm:$0xff]
        %v568 = vld [vmem:[%s1 + $0x310] sm:$0xff]
        %v569 = vld [vmem:[%s1 + $0x318] sm:$0xff]
        %v570 = vld [vmem:[%s1 + $0x320] sm:$0xff]
        %v571 = vld [vmem:[%s1 + $0x328] sm:$0xff]
        %v572 = vld [vmem:[%s1 + $0x330] sm:$0xff]
        %v573 = vld [vmem:[%s1 + $0x338] sm:$0xff]
        %v574 = vld [vmem:[%s1 + $0x340] sm:$0xff]
        %v575 = vld [vmem:[%s1 + $0x348] sm:$0xff]
        %v576 = vld [vmem:[%s1 + $0x350] sm:$0xff]
        %v577 = vld [vmem:[%s1 + $0x358] sm:$0xff]
        %v578 = vld [vmem:[%s1 + $0x360] sm:$0xff]
        %v579 = vld [vmem:[%s1 + $0x368] sm:$0xff]
        %v580 = vld [vmem:[%s1 + $0x370] sm:$0xff]
        %v581 = vld [vmem:[%s1 + $0x378] sm:$0xff]
        %v582 = vld [vmem:[%s1 + $0x380] sm:$0xff]
        %v583 = vld [vmem:[%s1 + $0x388] sm:$0xff]
        %v584 = vld [vmem:[%s1 + $0x390] sm:$0xff]
        %v585 = vld [vmem:[%s1 + $0x398] sm:$0xff]
        %v586 = vld [vmem:[%s1 + $0x3a0] sm:$0xff]
        %v587 = vld [vmem:[%s1 + $0x3a8] sm:$0xff]
        %v588 = vld [vmem:[%s1 + $0x3b0] sm:$0xff]
        %v589 = vld [vmem:[%s1 + $0x3b8] sm:$0xff]
        %v590 = vld [vmem:[%s1 + $0x3c0] sm:$0xff]
        %v591 = vld [vmem:[%s1 + $0x3c8] sm:$0xff]
        %v592 = vld [vmem:[%s1 + $0x3d0] sm:$0xff]
        %v593 = vld [vmem:[%s1 + $0x3d8] sm:$0xff]
        %v594 = vld [vmem:[%s1 + $0x3e0] sm:$0xff]
        %v595 = vld [vmem:[%s1 + $0x3e8] sm:$0xff]
        %v596 = vld [vmem:[%s1 + $0x3f0] sm:$0xff]
        %v597 = vld [vmem:[%s1 + $0x3f8] sm:$0xff]
        %v598 = vld [vmem:[%s1 + $0x400] sm:$0xff]
        %v599 = vld [vmem:[%s1 + $0x408] sm:$0xff]
        %v600 = vld [vmem:[%s1 + $0x410] sm:$0xff]
        %v601 = vld [vmem:[%s1 + $0x418] sm:$0xff]
        %v602 = vld [vmem:[%s1 + $0x420] sm:$0xff]
        %v603 = vld [vmem:[%s1 + $0x428] sm:$0xff]
        %v604 = vld [vmem:[%s1 + $0x430] sm:$0xff]
        %v605 = vld [vmem:[%s1 + $0x438] sm:$0xff]
        %v606 = vld [vmem:[%s1 + $0x440] sm:$0xff]
        %v607 = vld [vmem:[%s1 + $0x448] sm:$0xff]
        %v608 = vld [vmem:[%s1 + $0x450] sm:$0xff]
        %v609 = vld [vmem:[%s1 + $0x458] sm:$0xff]
        %v610 = vld [vmem:[%s1 + $0x460] sm:$0xff]
        %v611 = vld [vmem:[%s1 + $0x468] sm:$0xff]
        %v612 = vld [vmem:[%s1 + $0x470] sm:$0xff]
        %v613 = vld [vmem:[%s1 + $0x478] sm:$0xff]
        %v614 = vld [vmem:[%s1 + $0x480] sm:$0xff]
        %v615 = vld [vmem:[%s1 + $0x488] sm:$0xff]
        %v616 = vld [vmem:[%s1 + $0x490] sm:$0xff]
        %v617 = vld [vmem:[%s1 + $0x498] sm:$0xff]
        %v618 = vld [vmem:[%s1 + $0x4a0] sm:$0xff]
        %v619 = vld [vmem:[%s1 + $0x4a8] sm:$0xff]
        %v620 = vld [vmem:[%s1 + $0x4b0] sm:$0xff]
        %v621 = vld [vmem:[%s1 + $0x4b8] sm:$0xff]
        %v622 = vld [vmem:[%s1 + $0x4c0] sm:$0xff]
        %v623 = vld [vmem:[%s1 + $0x4c8] sm:$0xff]
        %v624 = vld [vmem:[%s1 + $0x4d0] sm:$0xff]
        %v625 = vld [vmem:[%s1 + $0x4d8] sm:$0xff]
        %v626 = vld [vmem:[%s1 + $0x4e0] sm:$0xff]
        %v627 = vld [vmem:[%s1 + $0x4e8] sm:$0xff]
        %v628 = vld [vmem:[%s1 + $0x4f0] sm:$0xff]
        %v629 = vld [vmem:[%s1 + $0x4f8] sm:$0xff]
        %v630 = vld [vmem:[%s1 + $0x500] sm:$0xff]
        %v631 = vld [vmem:[%s1 + $0x508] sm:$0xff]
        %v632 = vld [vmem:[%s1 + $0x510] sm:$0xff]
        %v633 = vld [vmem:[%s1 + $0x518] sm:$0xff]
        %v634 = vld [vmem:[%s1 + $0x520] sm:$0xff]
        %v635 = vld [vmem:[%s1 + $0x528] sm:$0xff]
        %v636 = vld [vmem:[%s1 + $0x530] sm:$0xff]
        %v637 = vld [vmem:[%s1 + $0x538] sm:$0xff]
        %v638 = vld [vmem:[%s1 + $0x540] sm:$0xff]
        %v639 = vld [vmem:[%s1 + $0x548] sm:$0xff]
        %v640 = vld [vmem:[%s1 + $0x550] sm:$0xff]
        %v641 = vld [vmem:[%s1 + $0x558] sm:$0xff]
        %v642 = vld [vmem:[%s1 + $0x560] sm:$0xff]
        %v643 = vld [vmem:[%s1 + $0x568] sm:$0xff]
        %v644 = vld [vmem:[%s1 + $0x570] sm:$0xff]
        %v645 = vld [vmem:[%s1 + $0x578] sm:$0xff]
        %v646 = vld [vmem:[%s1 + $0x580] sm:$0xff]
        %v647 = vld [vmem:[%s1 + $0x588] sm:$0xff]
        %v648 = vld [vmem:[%s1 + $0x590] sm:$0xff]
        %v649 = vld [vmem:[%s1 + $0x598] sm:$0xff]
        %v650 = vld [vmem:[%s1 + $0x5a0] sm:$0xff]
        %v651 = vld [vmem:[%s1 + $0x5a8] sm:$0xff]
        %v652 = vld [vmem:[%s1 + $0x5b0] sm:$0xff]
        %v653 = vld [vmem:[%s1 + $0x5b8] sm:$0xff]
        %v654 = vld [vmem:[%s1 + $0x5c0] sm:$0xff]
        %v655 = vld [vmem:[%s1 + $0x5c8] sm:$0xff]
        %v656 = vld [vmem:[%s1 + $0x5d0] sm:$0xff]
        %v657 = vld [vmem:[%s1 + $0x5d8] sm:$0xff]
        %v658 = vld [vmem:[%s1 + $0x5e0] sm:$0xff]
        %v659 = vld [vmem:[%s1 + $0x5e8] sm:$0xff]
        %v660 = vld [vmem:[%s1 + $0x5f0] sm:$0xff]
        %v661 = vld [vmem:[%s1 + $0x5f8] sm:$0xff]
        %v662 = vld [vmem:[%s1 + $0x600] sm:$0xff]
        %v663 = vld [vmem:[%s1 + $0x608] sm:$0xff]
        %v664 = vld [vmem:[%s1 + $0x610] sm:$0xff]
        %v665 = vld [vmem:[%s1 + $0x618] sm:$0xff]
        %v666 = vld [vmem:[%s2] sm:$0xf]
        %v668 = vlaneseq
        %v669 = vshrl.u32 %v668, 7
        %v670 = vsub.s32 0, %v669
        %v671 = vrot.slane %v666, %v670
        %v672 = vlaneseq
        %v673 = vshrl.u32 %v672, 7
        %v674 = vsub.s32 1, %v673
        %v675 = vrot.slane %v666, %v674
        %v676 = vlaneseq
        %v677 = vshrl.u32 %v676, 7
        %v678 = vsub.s32 2, %v677
        %v679 = vrot.slane %v666, %v678
        %v680 = vlaneseq
        %v681 = vshrl.u32 %v680, 7
        %v682 = vsub.s32 3, %v681
        %v683 = vrot.slane %v666, %v682
        %v884 = vunpack.c.l.b16 %v470
        %v885 = vunpack.c.h.b16 %v470
        %v886 = vunpack.c.l.b16 %v471
        %v887 = vunpack.c.h.b16 %v471
        %v888 = vunpack.c.l.b16 %v472
        %v889 = vunpack.c.h.b16 %v472
        %v890 = vunpack.c.l.b16 %v473
        %v891 = vunpack.c.h.b16 %v473
        %v892 = vunpack.c.l.b16 %v474
        %v893 = vunpack.c.h.b16 %v474
        %v894 = vunpack.c.l.b16 %v475
        %v895 = vunpack.c.h.b16 %v475
        %v896 = vunpack.c.l.b16 %v476
        %v897 = vunpack.c.h.b16 %v476
        %v898 = vunpack.c.l.b16 %v477
        %v899 = vunpack.c.h.b16 %v477
        %v900 = vunpack.c.l.b16 %v478
        %v901 = vunpack.c.h.b16 %v478
        %v902 = vunpack.c.l.b16 %v479
        %v903 = vunpack.c.h.b16 %v479
        %v904 = vunpack.c.l.b16 %v480
        %v905 = vunpack.c.h.b16 %v480
        %v906 = vunpack.c.l.b16 %v481
        %v907 = vunpack.c.h.b16 %v481
        %v908 = vunpack.c.l.b16 %v482
        %v909 = vunpack.c.h.b16 %v482
        %v910 = vunpack.c.l.b16 %v483
        %v911 = vunpack.c.h.b16 %v483
        %v912 = vunpack.c.l.b16 %v484
        %v913 = vunpack.c.h.b16 %v484
        %v914 = vunpack.c.l.b16 %v485
        %v915 = vunpack.c.h.b16 %v485
        %v916 = vunpack.c.l.b16 %v486
        %v917 = vunpack.c.h.b16 %v486
        %v918 = vunpack.c.l.b16 %v487
        %v919 = vunpack.c.h.b16 %v487
        %v920 = vunpack.c.l.b16 %v488
        %v921 = vunpack.c.h.b16 %v488
        %v922 = vunpack.c.l.b16 %v489
        %v923 = vunpack.c.h.b16 %v489
        %v924 = vunpack.c.l.b16 %v490
        %v925 = vunpack.c.h.b16 %v490
        %v926 = vunpack.c.l.b16 %v491
        %v927 = vunpack.c.h.b16 %v491
        %v928 = vunpack.c.l.b16 %v492
        %v929 = vunpack.c.h.b16 %v492
        %v930 = vunpack.c.l.b16 %v493
        %v931 = vunpack.c.h.b16 %v493
        %v932 = vunpack.c.l.b16 %v494
        %v933 = vunpack.c.h.b16 %v494
        %v934 = vunpack.c.l.b16 %v495
        %v935 = vunpack.c.h.b16 %v495
        %v936 = vunpack.c.l.b16 %v496
        %v937 = vunpack.c.h.b16 %v496
        %v938 = vunpack.c.l.b16 %v497
        %v939 = vunpack.c.h.b16 %v497
        %v940 = vunpack.c.l.b16 %v498
        %v941 = vunpack.c.h.b16 %v498
        %v942 = vunpack.c.l.b16 %v499
        %v943 = vunpack.c.h.b16 %v499
        %v944 = vunpack.c.l.b16 %v500
        %v945 = vunpack.c.h.b16 %v500
        %v946 = vunpack.c.l.b16 %v501
        %v947 = vunpack.c.h.b16 %v501
        %v948 = vunpack.c.l.b16 %v502
        %v949 = vunpack.c.h.b16 %v502
        %v950 = vunpack.c.l.b16 %v503
        %v951 = vunpack.c.h.b16 %v503
        %v952 = vunpack.c.l.b16 %v504
        %v953 = vunpack.c.h.b16 %v504
        %v954 = vunpack.c.l.b16 %v505
        %v955 = vunpack.c.h.b16 %v505
        %v956 = vunpack.c.l.b16 %v506
        %v957 = vunpack.c.h.b16 %v506
        %v958 = vunpack.c.l.b16 %v507
        %v959 = vunpack.c.h.b16 %v507
        %v960 = vunpack.c.l.b16 %v508
        %v961 = vunpack.c.h.b16 %v508
        %v962 = vunpack.c.l.b16 %v509
        %v963 = vunpack.c.h.b16 %v509
        %v964 = vunpack.c.l.b16 %v510
        %v965 = vunpack.c.h.b16 %v510
        %v966 = vunpack.c.l.b16 %v511
        %v967 = vunpack.c.h.b16 %v511
        %v968 = vunpack.c.l.b16 %v512
        %v969 = vunpack.c.h.b16 %v512
        %v970 = vunpack.c.l.b16 %v513
        %v971 = vunpack.c.h.b16 %v513
        %v972 = vunpack.c.l.b16 %v514
        %v973 = vunpack.c.h.b16 %v514
        %v974 = vunpack.c.l.b16 %v515
        %v975 = vunpack.c.h.b16 %v515
        %v976 = vunpack.c.l.b16 %v516
        %v977 = vunpack.c.h.b16 %v516
        %v978 = vunpack.c.l.b16 %v517
        %v979 = vunpack.c.h.b16 %v517
        %v980 = vunpack.c.l.b16 %v518
        %v981 = vunpack.c.h.b16 %v518
        %v982 = vunpack.c.l.b16 %v519
        %v983 = vunpack.c.h.b16 %v519
        %v984 = vunpack.c.l.b16 %v520
        %v985 = vunpack.c.h.b16 %v520
        %v986 = vunpack.c.l.b16 %v521
        %v987 = vunpack.c.h.b16 %v521
        %v988 = vunpack.c.l.b16 %v522
        %v989 = vunpack.c.h.b16 %v522
        %v990 = vunpack.c.l.b16 %v523
        %v991 = vunpack.c.h.b16 %v523
        %v992 = vunpack.c.l.b16 %v524
        %v993 = vunpack.c.h.b16 %v524
        %v994 = vunpack.c.l.b16 %v525
        %v995 = vunpack.c.h.b16 %v525
        %v996 = vunpack.c.l.b16 %v526
        %v997 = vunpack.c.h.b16 %v526
        %v998 = vunpack.c.l.b16 %v527
        %v999 = vunpack.c.h.b16 %v527
        %v1000 = vunpack.c.l.b16 %v528
        %v1001 = vunpack.c.h.b16 %v528
        %v1002 = vunpack.c.l.b16 %v529
        %v1003 = vunpack.c.h.b16 %v529
        %v1004 = vunpack.c.l.b16 %v530
        %v1005 = vunpack.c.h.b16 %v530
        %v1006 = vunpack.c.l.b16 %v531
        %v1007 = vunpack.c.h.b16 %v531
        %v1008 = vunpack.c.l.b16 %v532
        %v1009 = vunpack.c.h.b16 %v532
        %v1010 = vunpack.c.l.b16 %v533
        %v1011 = vunpack.c.h.b16 %v533
        %v1012 = vunpack.c.l.b16 %v534
        %v1013 = vunpack.c.h.b16 %v534
        %v1014 = vunpack.c.l.b16 %v535
        %v1015 = vunpack.c.h.b16 %v535
        %v1016 = vunpack.c.l.b16 %v536
        %v1017 = vunpack.c.h.b16 %v536
        %v1018 = vunpack.c.l.b16 %v537
        %v1019 = vunpack.c.h.b16 %v537
        %v1020 = vunpack.c.l.b16 %v538
        %v1021 = vunpack.c.h.b16 %v538
        %v1022 = vunpack.c.l.b16 %v539
        %v1023 = vunpack.c.h.b16 %v539
        %v1024 = vunpack.c.l.b16 %v540
        %v1025 = vunpack.c.h.b16 %v540
        %v1026 = vunpack.c.l.b16 %v541
        %v1027 = vunpack.c.h.b16 %v541
        %v1028 = vunpack.c.l.b16 %v542
        %v1029 = vunpack.c.h.b16 %v542
        %v1030 = vunpack.c.l.b16 %v543
        %v1031 = vunpack.c.h.b16 %v543
        %v1032 = vunpack.c.l.b16 %v544
        %v1033 = vunpack.c.h.b16 %v544
        %v1034 = vunpack.c.l.b16 %v545
        %v1035 = vunpack.c.h.b16 %v545
        %v1036 = vunpack.c.l.b16 %v546
        %v1037 = vunpack.c.h.b16 %v546
        %v1038 = vunpack.c.l.b16 %v547
        %v1039 = vunpack.c.h.b16 %v547
        %v1040 = vunpack.c.l.b16 %v548
        %v1041 = vunpack.c.h.b16 %v548
        %v1042 = vunpack.c.l.b16 %v549
        %v1043 = vunpack.c.h.b16 %v549
        %v1044 = vunpack.c.l.b16 %v550
        %v1045 = vunpack.c.h.b16 %v550
        %v1046 = vunpack.c.l.b16 %v551
        %v1047 = vunpack.c.h.b16 %v551
        %v1048 = vunpack.c.l.b16 %v552
        %v1049 = vunpack.c.h.b16 %v552
        %v1050 = vunpack.c.l.b16 %v553
        %v1051 = vunpack.c.h.b16 %v553
        %v1052 = vunpack.c.l.b16 %v554
        %v1053 = vunpack.c.h.b16 %v554
        %v1054 = vunpack.c.l.b16 %v555
        %v1055 = vunpack.c.h.b16 %v555
        %v1056 = vunpack.c.l.b16 %v556
        %v1057 = vunpack.c.h.b16 %v556
        %v1058 = vunpack.c.l.b16 %v557
        %v1059 = vunpack.c.h.b16 %v557
        %v1060 = vunpack.c.l.b16 %v558
        %v1061 = vunpack.c.h.b16 %v558
        %v1062 = vunpack.c.l.b16 %v559
        %v1063 = vunpack.c.h.b16 %v559
        %v1064 = vunpack.c.l.b16 %v560
        %v1065 = vunpack.c.h.b16 %v560
        %v1066 = vunpack.c.l.b16 %v561
        %v1067 = vunpack.c.h.b16 %v561
        %v1068 = vunpack.c.l.b16 %v562
        %v1069 = vunpack.c.h.b16 %v562
        %v1070 = vunpack.c.l.b16 %v563
        %v1071 = vunpack.c.h.b16 %v563
        %v1072 = vunpack.c.l.b16 %v564
        %v1073 = vunpack.c.h.b16 %v564
        %v1074 = vunpack.c.l.b16 %v565
        %v1075 = vunpack.c.h.b16 %v565
        %v1076 = vunpack.c.l.b16 %v566
        %v1077 = vunpack.c.h.b16 %v566
        %v1078 = vunpack.c.l.b16 %v567
        %v1079 = vunpack.c.h.b16 %v567
        %v1080 = vunpack.c.l.b16 %v568
        %v1081 = vunpack.c.h.b16 %v568
        %v1082 = vunpack.c.l.b16 %v569
        %v1083 = vunpack.c.h.b16 %v569
        %v1084 = vunpack.c.l.b16 %v570
        %v1085 = vunpack.c.h.b16 %v570
        %v1086 = vunpack.c.l.b16 %v571
        %v1087 = vunpack.c.h.b16 %v571
        %v1088 = vunpack.c.l.b16 %v572
        %v1089 = vunpack.c.h.b16 %v572
        %v1090 = vunpack.c.l.b16 %v573
        %v1091 = vunpack.c.h.b16 %v573
        %v1092 = vunpack.c.l.b16 %v574
        %v1093 = vunpack.c.h.b16 %v574
        %v1094 = vunpack.c.l.b16 %v575
        %v1095 = vunpack.c.h.b16 %v575
        %v1096 = vunpack.c.l.b16 %v576
        %v1097 = vunpack.c.h.b16 %v576
        %v1098 = vunpack.c.l.b16 %v577
        %v1099 = vunpack.c.h.b16 %v577
        %v1100 = vunpack.c.l.b16 %v578
        %v1101 = vunpack.c.h.b16 %v578
        %v1102 = vunpack.c.l.b16 %v579
        %v1103 = vunpack.c.h.b16 %v579
        %v1104 = vunpack.c.l.b16 %v580
        %v1105 = vunpack.c.h.b16 %v580
        %v1106 = vunpack.c.l.b16 %v581
        %v1107 = vunpack.c.h.b16 %v581
        %v1108 = vunpack.c.l.b16 %v582
        %v1109 = vunpack.c.h.b16 %v582
        %v1110 = vunpack.c.l.b16 %v583
        %v1111 = vunpack.c.h.b16 %v583
        %v1112 = vunpack.c.l.b16 %v584
        %v1113 = vunpack.c.h.b16 %v584
        %v1114 = vunpack.c.l.b16 %v585
        %v1115 = vunpack.c.h.b16 %v585
        %v1116 = vunpack.c.l.b16 %v586
        %v1117 = vunpack.c.h.b16 %v586
        %v1118 = vunpack.c.l.b16 %v587
        %v1119 = vunpack.c.h.b16 %v587
        %v1120 = vunpack.c.l.b16 %v588
        %v1121 = vunpack.c.h.b16 %v588
        %v1122 = vunpack.c.l.b16 %v589
        %v1123 = vunpack.c.h.b16 %v589
        %v1124 = vunpack.c.l.b16 %v590
        %v1125 = vunpack.c.h.b16 %v590
        %v1126 = vunpack.c.l.b16 %v591
        %v1127 = vunpack.c.h.b16 %v591
        %v1128 = vunpack.c.l.b16 %v592
        %v1129 = vunpack.c.h.b16 %v592
        %v1130 = vunpack.c.l.b16 %v593
        %v1131 = vunpack.c.h.b16 %v593
        %v1132 = vunpack.c.l.b16 %v594
        %v1133 = vunpack.c.h.b16 %v594
        %v1134 = vunpack.c.l.b16 %v595
        %v1135 = vunpack.c.h.b16 %v595
        %v1136 = vunpack.c.l.b16 %v596
        %v1137 = vunpack.c.h.b16 %v596
        %v1138 = vunpack.c.l.b16 %v597
        %v1139 = vunpack.c.h.b16 %v597
        %v1140 = vunpack.c.l.b16 %v598
        %v1141 = vunpack.c.h.b16 %v598
        %v1142 = vunpack.c.l.b16 %v599
        %v1143 = vunpack.c.h.b16 %v599
        %v1144 = vunpack.c.l.b16 %v600
        %v1145 = vunpack.c.h.b16 %v600
        %v1146 = vunpack.c.l.b16 %v601
        %v1147 = vunpack.c.h.b16 %v601
        %v1148 = vunpack.c.l.b16 %v602
        %v1149 = vunpack.c.h.b16 %v602
        %v1150 = vunpack.c.l.b16 %v603
        %v1151 = vunpack.c.h.b16 %v603
        %v1152 = vunpack.c.l.b16 %v604
        %v1153 = vunpack.c.h.b16 %v604
        %v1154 = vunpack.c.l.b16 %v605
        %v1155 = vunpack.c.h.b16 %v605
        %v1156 = vunpack.c.l.b16 %v606
        %v1157 = vunpack.c.h.b16 %v606
        %v1158 = vunpack.c.l.b16 %v607
        %v1159 = vunpack.c.h.b16 %v607
        %v1160 = vunpack.c.l.b16 %v608
        %v1161 = vunpack.c.h.b16 %v608
        %v1162 = vunpack.c.l.b16 %v609
        %v1163 = vunpack.c.h.b16 %v609
        %v1164 = vunpack.c.l.b16 %v610
        %v1165 = vunpack.c.h.b16 %v610
        %v1166 = vunpack.c.l.b16 %v611
        %v1167 = vunpack.c.h.b16 %v611
        %v1168 = vunpack.c.l.b16 %v612
        %v1169 = vunpack.c.h.b16 %v612
        %v1170 = vunpack.c.l.b16 %v613
        %v1171 = vunpack.c.h.b16 %v613
        %v1172 = vunpack.c.l.b16 %v614
        %v1173 = vunpack.c.h.b16 %v614
        %v1174 = vunpack.c.l.b16 %v615
        %v1175 = vunpack.c.h.b16 %v615
        %v1176 = vunpack.c.l.b16 %v616
        %v1177 = vunpack.c.h.b16 %v616
        %v1178 = vunpack.c.l.b16 %v617
        %v1179 = vunpack.c.h.b16 %v617
        %v1180 = vunpack.c.l.b16 %v618
        %v1181 = vunpack.c.h.b16 %v618
        %v1182 = vunpack.c.l.b16 %v619
        %v1183 = vunpack.c.h.b16 %v619
        %v1184 = vunpack.c.l.b16 %v620
        %v1185 = vunpack.c.h.b16 %v620
        %v1186 = vunpack.c.l.b16 %v621
        %v1187 = vunpack.c.h.b16 %v621
        %v1188 = vunpack.c.l.b16 %v622
        %v1189 = vunpack.c.h.b16 %v622
        %v1190 = vunpack.c.l.b16 %v623
        %v1191 = vunpack.c.h.b16 %v623
        %v1192 = vunpack.c.l.b16 %v624
        %v1193 = vunpack.c.h.b16 %v624
        %v1194 = vunpack.c.l.b16 %v625
        %v1195 = vunpack.c.h.b16 %v625
        %v1196 = vunpack.c.l.b16 %v626
        %v1197 = vunpack.c.h.b16 %v626
        %v1198 = vunpack.c.l.b16 %v627
        %v1199 = vunpack.c.h.b16 %v627
        %v1200 = vunpack.c.l.b16 %v628
        %v1201 = vunpack.c.h.b16 %v628
        %v1202 = vunpack.c.l.b16 %v629
        %v1203 = vunpack.c.h.b16 %v629
        %v1204 = vunpack.c.l.b16 %v630
        %v1205 = vunpack.c.h.b16 %v630
        %v1206 = vunpack.c.l.b16 %v631
        %v1207 = vunpack.c.h.b16 %v631
        %v1208 = vunpack.c.l.b16 %v632
        %v1209 = vunpack.c.h.b16 %v632
        %v1210 = vunpack.c.l.b16 %v633
        %v1211 = vunpack.c.h.b16 %v633
        %v1212 = vunpack.c.l.b16 %v634
        %v1213 = vunpack.c.h.b16 %v634
        %v1214 = vunpack.c.l.b16 %v635
        %v1215 = vunpack.c.h.b16 %v635
        %v1216 = vunpack.c.l.b16 %v636
        %v1217 = vunpack.c.h.b16 %v636
        %v1218 = vunpack.c.l.b16 %v637
        %v1219 = vunpack.c.h.b16 %v637
        %v1220 = vunpack.c.l.b16 %v638
        %v1221 = vunpack.c.h.b16 %v638
        %v1222 = vunpack.c.l.b16 %v639
        %v1223 = vunpack.c.h.b16 %v639
        %v1224 = vunpack.c.l.b16 %v640
        %v1225 = vunpack.c.h.b16 %v640
        %v1226 = vunpack.c.l.b16 %v641
        %v1227 = vunpack.c.h.b16 %v641
        %v1228 = vunpack.c.l.b16 %v642
        %v1229 = vunpack.c.h.b16 %v642
        %v1230 = vunpack.c.l.b16 %v643
        %v1231 = vunpack.c.h.b16 %v643
        %v1232 = vunpack.c.l.b16 %v644
        %v1233 = vunpack.c.h.b16 %v644
        %v1234 = vunpack.c.l.b16 %v645
        %v1235 = vunpack.c.h.b16 %v645
        %v1236 = vunpack.c.l.b16 %v646
        %v1237 = vunpack.c.h.b16 %v646
        %v1238 = vunpack.c.l.b16 %v647
        %v1239 = vunpack.c.h.b16 %v647
        %v1240 = vunpack.c.l.b16 %v648
        %v1241 = vunpack.c.h.b16 %v648
        %v1242 = vunpack.c.l.b16 %v649
        %v1243 = vunpack.c.h.b16 %v649
        %v1244 = vunpack.c.l.b16 %v650
        %v1245 = vunpack.c.h.b16 %v650
        %v1246 = vunpack.c.l.b16 %v651
        %v1247 = vunpack.c.h.b16 %v651
        %v1248 = vunpack.c.l.b16 %v652
        %v1249 = vunpack.c.h.b16 %v652
        %v1250 = vunpack.c.l.b16 %v653
        %v1251 = vunpack.c.h.b16 %v653
        %v1252 = vunpack.c.l.b16 %v654
        %v1253 = vunpack.c.h.b16 %v654
        %v1254 = vunpack.c.l.b16 %v655
        %v1255 = vunpack.c.h.b16 %v655
        %v1256 = vunpack.c.l.b16 %v656
        %v1257 = vunpack.c.h.b16 %v656
        %v1258 = vunpack.c.l.b16 %v657
        %v1259 = vunpack.c.h.b16 %v657
        %v1260 = vunpack.c.l.b16 %v658
        %v1261 = vunpack.c.h.b16 %v658
        %v1262 = vunpack.c.l.b16 %v659
        %v1263 = vunpack.c.h.b16 %v659
        %v1264 = vunpack.c.l.b16 %v660
        %v1265 = vunpack.c.h.b16 %v660
        %v1266 = vunpack.c.l.b16 %v661
        %v1267 = vunpack.c.h.b16 %v661
        %v1268 = vunpack.c.l.b16 %v662
        %v1269 = vunpack.c.h.b16 %v662
        %v1270 = vunpack.c.l.b16 %v663
        %v1271 = vunpack.c.h.b16 %v663
        %v1272 = vunpack.c.l.b16 %v664
        %v1273 = vunpack.c.h.b16 %v664
        %v1274 = vunpack.c.l.b16 %v665
        %v1275 = vunpack.c.h.b16 %v665
        %v1276 = vpack.c.b16 %v888, %v884
        %v1277 = vpack.c.b16 %v889, %v885
        %v1278 = vpack.c.b16 %v890, %v886
        %v1279 = vpack.c.b16 %v891, %v887
        %v1280 = vpack.c.b16 %v896, %v892
        %v1281 = vpack.c.b16 %v897, %v893
        %v1282 = vpack.c.b16 %v898, %v894
        %v1283 = vpack.c.b16 %v899, %v895
        %v1284 = vpack.c.b16 %v904, %v900
        %v1285 = vpack.c.b16 %v905, %v901
        %v1286 = vpack.c.b16 %v906, %v902
        %v1287 = vpack.c.b16 %v907, %v903
        %v1288 = vpack.c.b16 %v912, %v908
        %v1289 = vpack.c.b16 %v913, %v909
        %v1290 = vpack.c.b16 %v914, %v910
        %v1291 = vpack.c.b16 %v915, %v911
        %v1292 = vpack.c.b16 %v920, %v916
        %v1293 = vpack.c.b16 %v921, %v917
        %v1294 = vpack.c.b16 %v922, %v918
        %v1295 = vpack.c.b16 %v923, %v919
        %v1296 = vpack.c.b16 %v928, %v924
        %v1297 = vpack.c.b16 %v929, %v925
        %v1298 = vpack.c.b16 %v930, %v926
        %v1299 = vpack.c.b16 %v931, %v927
        %v1300 = vpack.c.b16 %v936, %v932
        %v1301 = vpack.c.b16 %v937, %v933
        %v1302 = vpack.c.b16 %v938, %v934
        %v1303 = vpack.c.b16 %v939, %v935
        %v1304 = vpack.c.b16 %v944, %v940
        %v1305 = vpack.c.b16 %v945, %v941
        %v1306 = vpack.c.b16 %v946, %v942
        %v1307 = vpack.c.b16 %v947, %v943
        %v1308 = vpack.c.b16 %v952, %v948
        %v1309 = vpack.c.b16 %v953, %v949
        %v1310 = vpack.c.b16 %v954, %v950
        %v1311 = vpack.c.b16 %v955, %v951
        %v1312 = vpack.c.b16 %v960, %v956
        %v1313 = vpack.c.b16 %v961, %v957
        %v1314 = vpack.c.b16 %v962, %v958
        %v1315 = vpack.c.b16 %v963, %v959
        %v1316 = vpack.c.b16 %v968, %v964
        %v1317 = vpack.c.b16 %v969, %v965
        %v1318 = vpack.c.b16 %v970, %v966
        %v1319 = vpack.c.b16 %v971, %v967
        %v1320 = vpack.c.b16 %v976, %v972
        %v1321 = vpack.c.b16 %v977, %v973
        %v1322 = vpack.c.b16 %v978, %v974
        %v1323 = vpack.c.b16 %v979, %v975
        %v1324 = vpack.c.b16 %v984, %v980
        %v1325 = vpack.c.b16 %v985, %v981
        %v1326 = vpack.c.b16 %v986, %v982
        %v1327 = vpack.c.b16 %v987, %v983
        %v1328 = vpack.c.b16 %v992, %v988
        %v1329 = vpack.c.b16 %v993, %v989
        %v1330 = vpack.c.b16 %v994, %v990
        %v1331 = vpack.c.b16 %v995, %v991
        %v1332 = vpack.c.b16 %v1000, %v996
        %v1333 = vpack.c.b16 %v1001, %v997
        %v1334 = vpack.c.b16 %v1002, %v998
        %v1335 = vpack.c.b16 %v1003, %v999
        %v1336 = vpack.c.b16 %v1008, %v1004
        %v1337 = vpack.c.b16 %v1009, %v1005
        %v1338 = vpack.c.b16 %v1010, %v1006
        %v1339 = vpack.c.b16 %v1011, %v1007
        %v1340 = vpack.c.b16 %v1016, %v1012
        %v1341 = vpack.c.b16 %v1017, %v1013
        %v1342 = vpack.c.b16 %v1018, %v1014
        %v1343 = vpack.c.b16 %v1019, %v1015
        %v1344 = vpack.c.b16 %v1024, %v1020
        %v1345 = vpack.c.b16 %v1025, %v1021
        %v1346 = vpack.c.b16 %v1026, %v1022
        %v1347 = vpack.c.b16 %v1027, %v1023
        %v1348 = vpack.c.b16 %v1032, %v1028
        %v1349 = vpack.c.b16 %v1033, %v1029
        %v1350 = vpack.c.b16 %v1034, %v1030
        %v1351 = vpack.c.b16 %v1035, %v1031
        %v1352 = vpack.c.b16 %v1040, %v1036
        %v1353 = vpack.c.b16 %v1041, %v1037
        %v1354 = vpack.c.b16 %v1042, %v1038
        %v1355 = vpack.c.b16 %v1043, %v1039
        %v1356 = vpack.c.b16 %v1048, %v1044
        %v1357 = vpack.c.b16 %v1049, %v1045
        %v1358 = vpack.c.b16 %v1050, %v1046
        %v1359 = vpack.c.b16 %v1051, %v1047
        %v1360 = vpack.c.b16 %v1056, %v1052
        %v1361 = vpack.c.b16 %v1057, %v1053
        %v1362 = vpack.c.b16 %v1058, %v1054
        %v1363 = vpack.c.b16 %v1059, %v1055
        %v1364 = vpack.c.b16 %v1064, %v1060
        %v1365 = vpack.c.b16 %v1065, %v1061
        %v1366 = vpack.c.b16 %v1066, %v1062
        %v1367 = vpack.c.b16 %v1067, %v1063
        %v1368 = vpack.c.b16 %v1072, %v1068
        %v1369 = vpack.c.b16 %v1073, %v1069
        %v1370 = vpack.c.b16 %v1074, %v1070
        %v1371 = vpack.c.b16 %v1075, %v1071
        %v1372 = vpack.c.b16 %v1080, %v1076
        %v1373 = vpack.c.b16 %v1081, %v1077
        %v1374 = vpack.c.b16 %v1082, %v1078
        %v1375 = vpack.c.b16 %v1083, %v1079
        %v1376 = vpack.c.b16 %v1088, %v1084
        %v1377 = vpack.c.b16 %v1089, %v1085
        %v1378 = vpack.c.b16 %v1090, %v1086
        %v1379 = vpack.c.b16 %v1091, %v1087
        %v1380 = vpack.c.b16 %v1096, %v1092
        %v1381 = vpack.c.b16 %v1097, %v1093
        %v1382 = vpack.c.b16 %v1098, %v1094
        %v1383 = vpack.c.b16 %v1099, %v1095
        %v1384 = vpack.c.b16 %v1104, %v1100
        %v1385 = vpack.c.b16 %v1105, %v1101
        %v1386 = vpack.c.b16 %v1106, %v1102
        %v1387 = vpack.c.b16 %v1107, %v1103
        %v1388 = vpack.c.b16 %v1112, %v1108
        %v1389 = vpack.c.b16 %v1113, %v1109
        %v1390 = vpack.c.b16 %v1114, %v1110
        %v1391 = vpack.c.b16 %v1115, %v1111
        %v1392 = vpack.c.b16 %v1120, %v1116
        %v1393 = vpack.c.b16 %v1121, %v1117
        %v1394 = vpack.c.b16 %v1122, %v1118
        %v1395 = vpack.c.b16 %v1123, %v1119
        %v1396 = vpack.c.b16 %v1128, %v1124
        %v1397 = vpack.c.b16 %v1129, %v1125
        %v1398 = vpack.c.b16 %v1130, %v1126
        %v1399 = vpack.c.b16 %v1131, %v1127
        %v1400 = vpack.c.b16 %v1136, %v1132
        %v1401 = vpack.c.b16 %v1137, %v1133
        %v1402 = vpack.c.b16 %v1138, %v1134
        %v1403 = vpack.c.b16 %v1139, %v1135
        %v1404 = vpack.c.b16 %v1144, %v1140
        %v1405 = vpack.c.b16 %v1145, %v1141
        %v1406 = vpack.c.b16 %v1146, %v1142
        %v1407 = vpack.c.b16 %v1147, %v1143
        %v1408 = vpack.c.b16 %v1152, %v1148
        %v1409 = vpack.c.b16 %v1153, %v1149
        %v1410 = vpack.c.b16 %v1154, %v1150
        %v1411 = vpack.c.b16 %v1155, %v1151
        %v1412 = vpack.c.b16 %v1160, %v1156
        %v1413 = vpack.c.b16 %v1161, %v1157
        %v1414 = vpack.c.b16 %v1162, %v1158
        %v1415 = vpack.c.b16 %v1163, %v1159
        %v1416 = vpack.c.b16 %v1168, %v1164
        %v1417 = vpack.c.b16 %v1169, %v1165
        %v1418 = vpack.c.b16 %v1170, %v1166
        %v1419 = vpack.c.b16 %v1171, %v1167
        %v1420 = vpack.c.b16 %v1176, %v1172
        %v1421 = vpack.c.b16 %v1177, %v1173
        %v1422 = vpack.c.b16 %v1178, %v1174
        %v1423 = vpack.c.b16 %v1179, %v1175
        %v1424 = vpack.c.b16 %v1184, %v1180
        %v1425 = vpack.c.b16 %v1185, %v1181
        %v1426 = vpack.c.b16 %v1186, %v1182
        %v1427 = vpack.c.b16 %v1187, %v1183
        %v1428 = vpack.c.b16 %v1192, %v1188
        %v1429 = vpack.c.b16 %v1193, %v1189
        %v1430 = vpack.c.b16 %v1194, %v1190
        %v1431 = vpack.c.b16 %v1195, %v1191
        %v1432 = vpack.c.b16 %v1200, %v1196
        %v1433 = vpack.c.b16 %v1201, %v1197
        %v1434 = vpack.c.b16 %v1202, %v1198
        %v1435 = vpack.c.b16 %v1203, %v1199
        %v1436 = vpack.c.b16 %v1208, %v1204
        %v1437 = vpack.c.b16 %v1209, %v1205
        %v1438 = vpack.c.b16 %v1210, %v1206
        %v1439 = vpack.c.b16 %v1211, %v1207
        %v1440 = vpack.c.b16 %v1216, %v1212
        %v1441 = vpack.c.b16 %v1217, %v1213
        %v1442 = vpack.c.b16 %v1218, %v1214
        %v1443 = vpack.c.b16 %v1219, %v1215
        %v1444 = vpack.c.b16 %v1224, %v1220
        %v1445 = vpack.c.b16 %v1225, %v1221
        %v1446 = vpack.c.b16 %v1226, %v1222
        %v1447 = vpack.c.b16 %v1227, %v1223
        %v1448 = vpack.c.b16 %v1232, %v1228
        %v1449 = vpack.c.b16 %v1233, %v1229
        %v1450 = vpack.c.b16 %v1234, %v1230
        %v1451 = vpack.c.b16 %v1235, %v1231
        %v1452 = vpack.c.b16 %v1240, %v1236
        %v1453 = vpack.c.b16 %v1241, %v1237
        %v1454 = vpack.c.b16 %v1242, %v1238
        %v1455 = vpack.c.b16 %v1243, %v1239
        %v1456 = vpack.c.b16 %v1248, %v1244
        %v1457 = vpack.c.b16 %v1249, %v1245
        %v1458 = vpack.c.b16 %v1250, %v1246
        %v1459 = vpack.c.b16 %v1251, %v1247
        %v1460 = vpack.c.b16 %v1256, %v1252
        %v1461 = vpack.c.b16 %v1257, %v1253
        %v1462 = vpack.c.b16 %v1258, %v1254
        %v1463 = vpack.c.b16 %v1259, %v1255
        %v1464 = vpack.c.b16 %v1264, %v1260
        %v1465 = vpack.c.b16 %v1265, %v1261
        %v1466 = vpack.c.b16 %v1266, %v1262
        %v1467 = vpack.c.b16 %v1267, %v1263
        %v1468 = vpack.c.b16 %v1272, %v1268
        %v1469 = vpack.c.b16 %v1273, %v1269
        %v1470 = vpack.c.b16 %v1274, %v1270
        %v1471 = vpack.c.b16 %v1275, %v1271
        %vm1668 = vcmask 130048
        %v1670 = vsel %vm1668, %v462, 0
        %v1673 = vsel %vm1668, %v469, 0
        %1675 = vmatprep.subr.bf16.mxu0 %v1305
        %1676 = vmatpush1.bf16.msra.mxu0 %v1304
        %1677 = vmatprep.subr.bf16.mxu0 %v1301
        %1678 = vmatpush1.bf16.msra.mxu0 %v1300
        %1679 = vmatprep.subr.bf16.mxu0 %v1297
        %1680 = vmatpush1.bf16.msra.mxu0 %v1296
        %1681 = vmatprep.subr.bf16.mxu0 %v1293
        %1682 = vmatpush1.bf16.msra.mxu0 %v1292
        %1683 = vmatprep.subr.bf16.mxu0 %v1289
        %1684 = vmatpush1.bf16.msra.mxu0 %v1288
        %1685 = vmatprep.subr.bf16.mxu0 %v1285
        %1686 = vmatpush1.bf16.msra.mxu0 %v1284
        %1687 = vmatprep.subr.bf16.mxu0 %v1281
        %1688 = vmatpush1.bf16.msra.mxu0 %v1280
        %1689 = vmatprep.subr.bf16.mxu0 %v1277
        %1690 = vmatpush1.bf16.msra.mxu0 %v1276
        %1691 = vmatprep.subr.bf16.mxu0 %v1337
        %1692 = vmatpush2.bf16.msra.mxu0 %v1336
        %1693 = vmatprep.subr.bf16.mxu0 %v1333
        %1694 = vmatpush2.bf16.msra.mxu0 %v1332
        %1695 = vmatprep.subr.bf16.mxu0 %v1329
        %1696 = vmatpush2.bf16.msra.mxu0 %v1328
        %1697 = vmatprep.subr.bf16.mxu0 %v1325
        %1698 = vmatpush2.bf16.msra.mxu0 %v1324
        %1699 = vmatprep.subr.bf16.mxu0 %v1321
        %1700 = vmatpush2.bf16.msra.mxu0 %v1320
        %1701 = vmatprep.subr.bf16.mxu0 %v1317
        %1702 = vmatpush2.bf16.msra.mxu0 %v1316
        %1703 = vmatprep.subr.bf16.mxu0 %v1313
        %1704 = vmatpush2.bf16.msra.mxu0 %v1312
        %1705 = vmatprep.subr.bf16.mxu0 %v1309
        %1706 = vmatpush2.bf16.msra.mxu0 %v1308
        %1707 = vmatprep.mubr.bf16.mxu0 %v457
        %1708 = vmatmul.mubr.bf16.gmra.mxu0 %v456
        %v1709 = vpop.f32.mrf.mxu0
        %v1710 = vadd.f32 %v671, %v1709
        %v1711 = vpop.f32.mrf.mxu0
        %v1712 = vadd.f32 %v675, %v1711
        %v1713 = vpop.f32.mrf.mxu0
        %v1714 = vadd.f32 %v671, %v1713
        %v1715 = vpop.f32.mrf.mxu0
        %v1716 = vadd.f32 %v675, %v1715
        %1717 = vmatprep.mubr.bf16.mxu0 %v464
        %1718 = vmatmul.mubr.bf16.gmra.mxu0 %v463
        %v1719 = vpop.f32.mrf.mxu0
        %v1720 = vadd.f32 %v671, %v1719
        %v1721 = vpop.f32.mrf.mxu0
        %v1722 = vadd.f32 %v675, %v1721
        %v1723 = vpop.f32.mrf.mxu0
        %v1724 = vadd.f32 %v671, %v1723
        %v1725 = vpop.f32.mrf.mxu0
        %v1726 = vadd.f32 %v675, %v1725
        %1727 = vdwg.mxu0
        %1728 = vmatprep.subr.bf16.mxu0 %v1369
        %1729 = vmatpush1.bf16.msra.mxu0 %v1368
        %1730 = vmatprep.subr.bf16.mxu0 %v1365
        %1731 = vmatpush1.bf16.msra.mxu0 %v1364
        %1732 = vmatprep.subr.bf16.mxu0 %v1361
        %1733 = vmatpush1.bf16.msra.mxu0 %v1360
        %1734 = vmatprep.subr.bf16.mxu0 %v1357
        %1735 = vmatpush1.bf16.msra.mxu0 %v1356
        %1736 = vmatprep.subr.bf16.mxu0 %v1353
        %1737 = vmatpush1.bf16.msra.mxu0 %v1352
        %1738 = vmatprep.subr.bf16.mxu0 %v1349
        %1739 = vmatpush1.bf16.msra.mxu0 %v1348
        %1740 = vmatprep.subr.bf16.mxu0 %v1345
        %1741 = vmatpush1.bf16.msra.mxu0 %v1344
        %1742 = vmatprep.subr.bf16.mxu0 %v1341
        %1743 = vmatpush1.bf16.msra.mxu0 %v1340
        %1744 = vmatprep.subr.bf16.mxu0 %v1401
        %1745 = vmatpush2.bf16.msra.mxu0 %v1400
        %1746 = vmatprep.subr.bf16.mxu0 %v1397
        %1747 = vmatpush2.bf16.msra.mxu0 %v1396
        %1748 = vmatprep.subr.bf16.mxu0 %v1393
        %1749 = vmatpush2.bf16.msra.mxu0 %v1392
        %1750 = vmatprep.subr.bf16.mxu0 %v1389
        %1751 = vmatpush2.bf16.msra.mxu0 %v1388
        %1752 = vmatprep.subr.bf16.mxu0 %v1385
        %1753 = vmatpush2.bf16.msra.mxu0 %v1384
        %1754 = vmatprep.subr.bf16.mxu0 %v1381
        %1755 = vmatpush2.bf16.msra.mxu0 %v1380
        %1756 = vmatprep.subr.bf16.mxu0 %v1377
        %1757 = vmatpush2.bf16.msra.mxu0 %v1376
        %1758 = vmatprep.subr.bf16.mxu0 %v1373
        %1759 = vmatpush2.bf16.msra.mxu0 %v1372
        %1760 = vmatprep.mubr.bf16.mxu0 %v459
        %1761 = vmatmul.mubr.bf16.gmra.mxu0 %v458
        %v1762 = vpop.f32.mrf.mxu0
        %v1763 = vadd.f32 %v1710, %v1762
        %v1764 = vpop.f32.mrf.mxu0
        %v1765 = vadd.f32 %v1712, %v1764
        %v1766 = vpop.f32.mrf.mxu0
        %v1767 = vadd.f32 %v1714, %v1766
        %v1768 = vpop.f32.mrf.mxu0
        %v1769 = vadd.f32 %v1716, %v1768
        %1770 = vmatprep.mubr.bf16.mxu0 %v466
        %1771 = vmatmul.mubr.bf16.gmra.mxu0 %v465
        %v1772 = vpop.f32.mrf.mxu0
        %v1773 = vadd.f32 %v1720, %v1772
        %v1774 = vpop.f32.mrf.mxu0
        %v1775 = vadd.f32 %v1722, %v1774
        %v1776 = vpop.f32.mrf.mxu0
        %v1777 = vadd.f32 %v1724, %v1776
        %v1778 = vpop.f32.mrf.mxu0
        %v1779 = vadd.f32 %v1726, %v1778
        %1780 = vdwg.mxu0
        %1781 = vmatprep.subr.bf16.mxu0 %v1433
        %1782 = vmatpush1.bf16.msra.mxu0 %v1432
        %1783 = vmatprep.subr.bf16.mxu0 %v1429
        %1784 = vmatpush1.bf16.msra.mxu0 %v1428
        %1785 = vmatprep.subr.bf16.mxu0 %v1425
        %1786 = vmatpush1.bf16.msra.mxu0 %v1424
        %1787 = vmatprep.subr.bf16.mxu0 %v1421
        %1788 = vmatpush1.bf16.msra.mxu0 %v1420
        %1789 = vmatprep.subr.bf16.mxu0 %v1417
        %1790 = vmatpush1.bf16.msra.mxu0 %v1416
        %1791 = vmatprep.subr.bf16.mxu0 %v1413
        %1792 = vmatpush1.bf16.msra.mxu0 %v1412
        %1793 = vmatprep.subr.bf16.mxu0 %v1409
        %1794 = vmatpush1.bf16.msra.mxu0 %v1408
        %1795 = vmatprep.subr.bf16.mxu0 %v1405
        %1796 = vmatpush1.bf16.msra.mxu0 %v1404
        %1797 = vmatprep.subr.bf16.mxu0 %v1465
        %1798 = vmatpush2.bf16.msra.mxu0 %v1464
        %1799 = vmatprep.subr.bf16.mxu0 %v1461
        %1800 = vmatpush2.bf16.msra.mxu0 %v1460
        %1801 = vmatprep.subr.bf16.mxu0 %v1457
        %1802 = vmatpush2.bf16.msra.mxu0 %v1456
        %1803 = vmatprep.subr.bf16.mxu0 %v1453
        %1804 = vmatpush2.bf16.msra.mxu0 %v1452
        %1805 = vmatprep.subr.bf16.mxu0 %v1449
        %1806 = vmatpush2.bf16.msra.mxu0 %v1448
        %1807 = vmatprep.subr.bf16.mxu0 %v1445
        %1808 = vmatpush2.bf16.msra.mxu0 %v1444
        %1809 = vmatprep.subr.bf16.mxu0 %v1441
        %1810 = vmatpush2.bf16.msra.mxu0 %v1440
        %1811 = vmatprep.subr.bf16.mxu0 %v1437
        %1812 = vmatpush2.bf16.msra.mxu0 %v1436
        %1813 = vmatprep.mubr.bf16.mxu0 %v461
        %1814 = vmatmul.mubr.bf16.gmra.mxu0 %v460
        %v1815 = vpop.f32.mrf.mxu0
        %v1816 = vadd.f32 %v1763, %v1815
        %v1817 = vpop.f32.mrf.mxu0
        %v1818 = vadd.f32 %v1765, %v1817
        %v1819 = vpop.f32.mrf.mxu0
        %v1820 = vadd.f32 %v1767, %v1819
        %v1821 = vpop.f32.mrf.mxu0
        %v1822 = vadd.f32 %v1769, %v1821
        %1823 = vmatprep.mubr.bf16.mxu0 %v468
        %1824 = vmatmul.mubr.bf16.gmra.mxu0 %v467
        %v1825 = vpop.f32.mrf.mxu0
        %v1826 = vadd.f32 %v1773, %v1825
        %v1827 = vpop.f32.mrf.mxu0
        %v1828 = vadd.f32 %v1775, %v1827
        %v1829 = vpop.f32.mrf.mxu0
        %v1830 = vadd.f32 %v1777, %v1829
        %v1831 = vpop.f32.mrf.mxu0
        %v1832 = vadd.f32 %v1779, %v1831
        %1833 = vdwg.mxu0
        %1834 = vmatprep.subr.bf16.mxu0 0
        %1835 = vmatpush1.bf16.msra.mxu0 0
        %1836 = vmatprep.subr.bf16.mxu0 0
        %1837 = vmatpush1.bf16.msra.mxu0 0
        %1838 = vmatprep.subr.bf16.mxu0 0
        %1839 = vmatpush1.bf16.msra.mxu0 0
        %1840 = vmatprep.subr.bf16.mxu0 0
        %1841 = vmatpush1.bf16.msra.mxu0 0
        %1842 = vmatprep.subr.bf16.mxu0 0
        %1843 = vmatpush1.bf16.msra.mxu0 0
        %1844 = vmatprep.subr.bf16.mxu0 0
        %1845 = vmatpush1.bf16.msra.mxu0 0
        %1846 = vmatprep.subr.bf16.mxu0 0
        %1847 = vmatpush1.bf16.msra.mxu0 0
        %1848 = vmatprep.subr.bf16.mxu0 %v1469
        %1849 = vmatpush1.bf16.msra.mxu0 %v1468
        %1850 = vmatprep.subr.bf16.mxu0 0
        %1851 = vmatpush2.bf16.msra.mxu0 0
        %1852 = vmatprep.subr.bf16.mxu0 0
        %1853 = vmatpush2.bf16.msra.mxu0 0
        %1854 = vmatprep.subr.bf16.mxu0 0
        %1855 = vmatpush2.bf16.msra.mxu0 0
        %1856 = vmatprep.subr.bf16.mxu0 0
        %1857 = vmatpush2.bf16.msra.mxu0 0
        %1858 = vmatprep.subr.bf16.mxu0 0
        %1859 = vmatpush2.bf16.msra.mxu0 0
        %1860 = vmatprep.subr.bf16.mxu0 0
        %1861 = vmatpush2.bf16.msra.mxu0 0
        %1862 = vmatprep.subr.bf16.mxu0 0
        %1863 = vmatpush2.bf16.msra.mxu0 0
        %1864 = vmatprep.subr.bf16.mxu0 0
        %1865 = vmatpush2.bf16.msra.mxu0 0
        %1866 = vmatprep.mubr.bf16.mxu0 0
        %1867 = vmatmul.mubr.bf16.gmra.mxu0 %v1670
        %v1868 = vpop.f32.mrf.mxu0
        %v1869 = vadd.f32 %v1816, %v1868
        %v1870 = vpop.f32.mrf.mxu0
        %v1871 = vadd.f32 %v1818, %v1870
        %v1872 = vpop.f32.mrf.mxu0
        %v1873 = vadd.f32 %v1820, %v1872
        %v1874 = vpop.f32.mrf.mxu0
        %v1875 = vadd.f32 %v1822, %v1874
        %1876 = vmatprep.mubr.bf16.mxu0 0
        %1877 = vmatmul.mubr.bf16.gmra.mxu0 %v1673
        %v1878 = vpop.f32.mrf.mxu0
        %v1879 = vadd.f32 %v1826, %v1878
        %v1880 = vpop.f32.mrf.mxu0
        %v1881 = vadd.f32 %v1828, %v1880
        %v1882 = vpop.f32.mrf.mxu0
        %v1883 = vadd.f32 %v1830, %v1882
        %v1884 = vpop.f32.mrf.mxu0
        %v1885 = vadd.f32 %v1832, %v1884
        %1886 = vdwg.mxu0
        %1887 = vmatprep.subr.bf16.mxu0 %v1307
        %1888 = vmatpush1.bf16.msra.mxu0 %v1306
        %1889 = vmatprep.subr.bf16.mxu0 %v1303
        %1890 = vmatpush1.bf16.msra.mxu0 %v1302
        %1891 = vmatprep.subr.bf16.mxu0 %v1299
        %1892 = vmatpush1.bf16.msra.mxu0 %v1298
        %1893 = vmatprep.subr.bf16.mxu0 %v1295
        %1894 = vmatpush1.bf16.msra.mxu0 %v1294
        %1895 = vmatprep.subr.bf16.mxu0 %v1291
        %1896 = vmatpush1.bf16.msra.mxu0 %v1290
        %1897 = vmatprep.subr.bf16.mxu0 %v1287
        %1898 = vmatpush1.bf16.msra.mxu0 %v1286
        %1899 = vmatprep.subr.bf16.mxu0 %v1283
        %1900 = vmatpush1.bf16.msra.mxu0 %v1282
        %1901 = vmatprep.subr.bf16.mxu0 %v1279
        %1902 = vmatpush1.bf16.msra.mxu0 %v1278
        %1903 = vmatprep.subr.bf16.mxu0 %v1339
        %1904 = vmatpush2.bf16.msra.mxu0 %v1338
        %1905 = vmatprep.subr.bf16.mxu0 %v1335
        %1906 = vmatpush2.bf16.msra.mxu0 %v1334
        %1907 = vmatprep.subr.bf16.mxu0 %v1331
        %1908 = vmatpush2.bf16.msra.mxu0 %v1330
        %1909 = vmatprep.subr.bf16.mxu0 %v1327
        %1910 = vmatpush2.bf16.msra.mxu0 %v1326
        %1911 = vmatprep.subr.bf16.mxu0 %v1323
        %1912 = vmatpush2.bf16.msra.mxu0 %v1322
        %1913 = vmatprep.subr.bf16.mxu0 %v1319
        %1914 = vmatpush2.bf16.msra.mxu0 %v1318
        %1915 = vmatprep.subr.bf16.mxu0 %v1315
        %1916 = vmatpush2.bf16.msra.mxu0 %v1314
        %1917 = vmatprep.subr.bf16.mxu0 %v1311
        %1918 = vmatpush2.bf16.msra.mxu0 %v1310
        %1919 = vmatprep.mubr.bf16.mxu0 %v457
        %1920 = vmatmul.mubr.bf16.gmra.mxu0 %v456
        %v1921 = vpop.f32.mrf.mxu0
        %v1922 = vadd.f32 %v679, %v1921
        %v1923 = vpop.f32.mrf.mxu0
        %v1924 = vadd.f32 %v683, %v1923
        %v1925 = vpop.f32.mrf.mxu0
        %v1926 = vadd.f32 %v679, %v1925
        %v1927 = vpop.f32.mrf.mxu0
        %v1928 = vadd.f32 %v683, %v1927
        %1929 = vmatprep.mubr.bf16.mxu0 %v464
        %1930 = vmatmul.mubr.bf16.gmra.mxu0 %v463
        %v1931 = vpop.f32.mrf.mxu0
        %v1932 = vadd.f32 %v679, %v1931
        %v1933 = vpop.f32.mrf.mxu0
        %v1934 = vadd.f32 %v683, %v1933
        %v1935 = vpop.f32.mrf.mxu0
        %v1936 = vadd.f32 %v679, %v1935
        %v1937 = vpop.f32.mrf.mxu0
        %v1938 = vadd.f32 %v683, %v1937
        %1939 = vdwg.mxu0
        %1940 = vmatprep.subr.bf16.mxu0 %v1371
        %1941 = vmatpush1.bf16.msra.mxu0 %v1370
        %1942 = vmatprep.subr.bf16.mxu0 %v1367
        %1943 = vmatpush1.bf16.msra.mxu0 %v1366
        %1944 = vmatprep.subr.bf16.mxu0 %v1363
        %1945 = vmatpush1.bf16.msra.mxu0 %v1362
        %1946 = vmatprep.subr.bf16.mxu0 %v1359
        %1947 = vmatpush1.bf16.msra.mxu0 %v1358
        %1948 = vmatprep.subr.bf16.mxu0 %v1355
        %1949 = vmatpush1.bf16.msra.mxu0 %v1354
        %1950 = vmatprep.subr.bf16.mxu0 %v1351
        %1951 = vmatpush1.bf16.msra.mxu0 %v1350
        %1952 = vmatprep.subr.bf16.mxu0 %v1347
        %1953 = vmatpush1.bf16.msra.mxu0 %v1346
        %1954 = vmatprep.subr.bf16.mxu0 %v1343
        %1955 = vmatpush1.bf16.msra.mxu0 %v1342
        %1956 = vmatprep.subr.bf16.mxu0 %v1403
        %1957 = vmatpush2.bf16.msra.mxu0 %v1402
        %1958 = vmatprep.subr.bf16.mxu0 %v1399
        %1959 = vmatpush2.bf16.msra.mxu0 %v1398
        %1960 = vmatprep.subr.bf16.mxu0 %v1395
        %1961 = vmatpush2.bf16.msra.mxu0 %v1394
        %1962 = vmatprep.subr.bf16.mxu0 %v1391
        %1963 = vmatpush2.bf16.msra.mxu0 %v1390
        %1964 = vmatprep.subr.bf16.mxu0 %v1387
        %1965 = vmatpush2.bf16.msra.mxu0 %v1386
        %1966 = vmatprep.subr.bf16.mxu0 %v1383
        %1967 = vmatpush2.bf16.msra.mxu0 %v1382
        %1968 = vmatprep.subr.bf16.mxu0 %v1379
        %1969 = vmatpush2.bf16.msra.mxu0 %v1378
        %1970 = vmatprep.subr.bf16.mxu0 %v1375
        %1971 = vmatpush2.bf16.msra.mxu0 %v1374
        %1972 = vmatprep.mubr.bf16.mxu0 %v459
        %1973 = vmatmul.mubr.bf16.gmra.mxu0 %v458
        %v1974 = vpop.f32.mrf.mxu0
        %v1975 = vadd.f32 %v1922, %v1974
        %v1976 = vpop.f32.mrf.mxu0
        %v1977 = vadd.f32 %v1924, %v1976
        %v1978 = vpop.f32.mrf.mxu0
        %v1979 = vadd.f32 %v1926, %v1978
        %v1980 = vpop.f32.mrf.mxu0
        %v1981 = vadd.f32 %v1928, %v1980
        %1982 = vmatprep.mubr.bf16.mxu0 %v466
        %1983 = vmatmul.mubr.bf16.gmra.mxu0 %v465
        %v1984 = vpop.f32.mrf.mxu0
        %v1985 = vadd.f32 %v1932, %v1984
        %v1986 = vpop.f32.mrf.mxu0
        %v1987 = vadd.f32 %v1934, %v1986
        %v1988 = vpop.f32.mrf.mxu0
        %v1989 = vadd.f32 %v1936, %v1988
        %v1990 = vpop.f32.mrf.mxu0
        %v1991 = vadd.f32 %v1938, %v1990
        %1992 = vdwg.mxu0
        %1993 = vmatprep.subr.bf16.mxu0 %v1435
        %1994 = vmatpush1.bf16.msra.mxu0 %v1434
        %1995 = vmatprep.subr.bf16.mxu0 %v1431
        %1996 = vmatpush1.bf16.msra.mxu0 %v1430
        %1997 = vmatprep.subr.bf16.mxu0 %v1427
        %1998 = vmatpush1.bf16.msra.mxu0 %v1426
        %1999 = vmatprep.subr.bf16.mxu0 %v1423
        %2000 = vmatpush1.bf16.msra.mxu0 %v1422
        %2001 = vmatprep.subr.bf16.mxu0 %v1419
        %2002 = vmatpush1.bf16.msra.mxu0 %v1418
        %2003 = vmatprep.subr.bf16.mxu0 %v1415
        %2004 = vmatpush1.bf16.msra.mxu0 %v1414
        %2005 = vmatprep.subr.bf16.mxu0 %v1411
        %2006 = vmatpush1.bf16.msra.mxu0 %v1410
        %2007 = vmatprep.subr.bf16.mxu0 %v1407
        %2008 = vmatpush1.bf16.msra.mxu0 %v1406
        %2009 = vmatprep.subr.bf16.mxu0 %v1467
        %2010 = vmatpush2.bf16.msra.mxu0 %v1466
        %2011 = vmatprep.subr.bf16.mxu0 %v1463
        %2012 = vmatpush2.bf16.msra.mxu0 %v1462
        %2013 = vmatprep.subr.bf16.mxu0 %v1459
        %2014 = vmatpush2.bf16.msra.mxu0 %v1458
        %2015 = vmatprep.subr.bf16.mxu0 %v1455
        %2016 = vmatpush2.bf16.msra.mxu0 %v1454
        %2017 = vmatprep.subr.bf16.mxu0 %v1451
        %2018 = vmatpush2.bf16.msra.mxu0 %v1450
        %2019 = vmatprep.subr.bf16.mxu0 %v1447
        %2020 = vmatpush2.bf16.msra.mxu0 %v1446
        %2021 = vmatprep.subr.bf16.mxu0 %v1443
        %2022 = vmatpush2.bf16.msra.mxu0 %v1442
        %2023 = vmatprep.subr.bf16.mxu0 %v1439
        %2024 = vmatpush2.bf16.msra.mxu0 %v1438
        %2025 = vmatprep.mubr.bf16.mxu0 %v461
        %2026 = vmatmul.mubr.bf16.gmra.mxu0 %v460
        %v2027 = vpop.f32.mrf.mxu0
        %v2028 = vadd.f32 %v1975, %v2027
        %v2029 = vpop.f32.mrf.mxu0
        %v2030 = vadd.f32 %v1977, %v2029
        %v2031 = vpop.f32.mrf.mxu0
        %v2032 = vadd.f32 %v1979, %v2031
        %v2033 = vpop.f32.mrf.mxu0
        %v2034 = vadd.f32 %v1981, %v2033
        %2035 = vmatprep.mubr.bf16.mxu0 %v468
        %2036 = vmatmul.mubr.bf16.gmra.mxu0 %v467
        %v2037 = vpop.f32.mrf.mxu0
        %v2038 = vadd.f32 %v1985, %v2037
        %v2039 = vpop.f32.mrf.mxu0
        %v2040 = vadd.f32 %v1987, %v2039
        %v2041 = vpop.f32.mrf.mxu0
        %v2042 = vadd.f32 %v1989, %v2041
        %v2043 = vpop.f32.mrf.mxu0
        %v2044 = vadd.f32 %v1991, %v2043
        %2045 = vdwg.mxu0
        %2046 = vmatprep.subr.bf16.mxu0 0
        %2047 = vmatpush1.bf16.msra.mxu0 0
        %2048 = vmatprep.subr.bf16.mxu0 0
        %2049 = vmatpush1.bf16.msra.mxu0 0
        %2050 = vmatprep.subr.bf16.mxu0 0
        %2051 = vmatpush1.bf16.msra.mxu0 0
        %2052 = vmatprep.subr.bf16.mxu0 0
        %2053 = vmatpush1.bf16.msra.mxu0 0
        %2054 = vmatprep.subr.bf16.mxu0 0
        %2055 = vmatpush1.bf16.msra.mxu0 0
        %2056 = vmatprep.subr.bf16.mxu0 0
        %2057 = vmatpush1.bf16.msra.mxu0 0
        %2058 = vmatprep.subr.bf16.mxu0 0
        %2059 = vmatpush1.bf16.msra.mxu0 0
        %2060 = vmatprep.subr.bf16.mxu0 %v1471
        %2061 = vmatpush1.bf16.msra.mxu0 %v1470
        %2062 = vmatprep.subr.bf16.mxu0 0
        %2063 = vmatpush2.bf16.msra.mxu0 0
        %2064 = vmatprep.subr.bf16.mxu0 0
        %2065 = vmatpush2.bf16.msra.mxu0 0
        %2066 = vmatprep.subr.bf16.mxu0 0
        %2067 = vmatpush2.bf16.msra.mxu0 0
        %2068 = vmatprep.subr.bf16.mxu0 0
        %2069 = vmatpush2.bf16.msra.mxu0 0
        %2070 = vmatprep.subr.bf16.mxu0 0
        %2071 = vmatpush2.bf16.msra.mxu0 0
        %2072 = vmatprep.subr.bf16.mxu0 0
        %2073 = vmatpush2.bf16.msra.mxu0 0
        %2074 = vmatprep.subr.bf16.mxu0 0
        %2075 = vmatpush2.bf16.msra.mxu0 0
        %2076 = vmatprep.subr.bf16.mxu0 0
        %2077 = vmatpush2.bf16.msra.mxu0 0
        %2078 = vmatprep.mubr.bf16.mxu0 0
        %2079 = vmatmul.mubr.bf16.gmra.mxu0 %v1670
        %v2080 = vpop.f32.mrf.mxu0
        %v2081 = vadd.f32 %v2028, %v2080
        %v2082 = vpop.f32.mrf.mxu0
        %v2083 = vadd.f32 %v2030, %v2082
        %v2084 = vpop.f32.mrf.mxu0
        %v2085 = vadd.f32 %v2032, %v2084
        %v2086 = vpop.f32.mrf.mxu0
        %v2087 = vadd.f32 %v2034, %v2086
        %2088 = vmatprep.mubr.bf16.mxu0 0
        %2089 = vmatmul.mubr.bf16.gmra.mxu0 %v1673
        %v2090 = vpop.f32.mrf.mxu0
        %v2091 = vadd.f32 %v2038, %v2090
        %v2092 = vpop.f32.mrf.mxu0
        %v2093 = vadd.f32 %v2040, %v2092
        %v2094 = vpop.f32.mrf.mxu0
        %v2095 = vadd.f32 %v2042, %v2094
        %v2096 = vpop.f32.mrf.mxu0
        %v2097 = vadd.f32 %v2044, %v2096
        %2098 = vdwg.mxu0
        %v2099 = vmax.f32 %v1869, 0.0
        %v2100 = vmax.f32 %v1871, 0.0
        %v2101 = vmax.f32 %v2081, 0.0
        %v2102 = vmax.f32 %v2083, 0.0
        %v2103 = vmax.f32 %v1873, 0.0
        %v2104 = vmax.f32 %v1875, 0.0
        %v2105 = vmax.f32 %v2085, 0.0
        %v2106 = vmax.f32 %v2087, 0.0
        %v2107 = vmax.f32 %v1879, 0.0
        %v2108 = vmax.f32 %v1881, 0.0
        %v2109 = vmax.f32 %v2091, 0.0
        %v2110 = vmax.f32 %v2093, 0.0
        %v2111 = vmax.f32 %v1883, 0.0
        %v2112 = vmax.f32 %v1885, 0.0
        %v2113 = vmax.f32 %v2095, 0.0
        %v2114 = vmax.f32 %v2097, 0.0
        %v2115 = vpack.c.bf16 %v2103, %v2099
        %v2116 = vpack.c.bf16 %v2104, %v2100
        %v2117 = vpack.c.bf16 %v2105, %v2101
        %v2118 = vpack.c.bf16 %v2106, %v2102
        %v2119 = vpack.c.bf16 %v2111, %v2107
        %v2120 = vpack.c.bf16 %v2112, %v2108
        %v2121 = vpack.c.bf16 %v2113, %v2109
        %v2122 = vpack.c.bf16 %v2114, %v2110
        %v2123 = vld [vmem:[%s3] sm:$0xf]
        %v2124 = vld [vmem:[%s3 + $0x4] sm:$0xf]
        %v2125 = vld [vmem:[%s3 + $0x8] sm:$0xf]
        %v2126 = vld [vmem:[%s3 + $0xc] sm:$0xf]
        %v2127 = vld [vmem:[%s3 + $0x10] sm:$0xf]
        %v2128 = vld [vmem:[%s3 + $0x14] sm:$0xf]
        %v2129 = vld [vmem:[%s3 + $0x18] sm:$0xf]
        %v2130 = vld [vmem:[%s3 + $0x1c] sm:$0xf]
        %v2131 = vld [vmem:[%s3 + $0x20] sm:$0xf]
        %v2132 = vld [vmem:[%s3 + $0x24] sm:$0xf]
        %v2133 = vld [vmem:[%s3 + $0x28] sm:$0xf]
        %v2134 = vld [vmem:[%s3 + $0x2c] sm:$0xf]
        %v2135 = vld [vmem:[%s3 + $0x30] sm:$0xf]
        %v2136 = vld [vmem:[%s3 + $0x34] sm:$0xf]
        %v2137 = vld [vmem:[%s3 + $0x38] sm:$0xf]
        %v2138 = vld [vmem:[%s3 + $0x3c] sm:$0xf]
        %v2139 = vld [vmem:[%s3 + $0x40] sm:$0xf]
        %v2140 = vld [vmem:[%s3 + $0x44] sm:$0xf]
        %v2141 = vld [vmem:[%s3 + $0x48] sm:$0xf]
        %v2142 = vld [vmem:[%s3 + $0x4c] sm:$0xf]
        %v2143 = vld [vmem:[%s3 + $0x50] sm:$0xf]
        %v2144 = vld [vmem:[%s3 + $0x54] sm:$0xf]
        %v2145 = vld [vmem:[%s3 + $0x58] sm:$0xf]
        %v2146 = vld [vmem:[%s3 + $0x5c] sm:$0xf]
        %v2147 = vld [vmem:[%s3 + $0x60] sm:$0xf]
        %v2148 = vld [vmem:[%s3 + $0x64] sm:$0xf]
        %v2149 = vld [vmem:[%s3 + $0x68] sm:$0xf]
        %v2150 = vld [vmem:[%s3 + $0x6c] sm:$0xf]
        %v2151 = vld [vmem:[%s3 + $0x70] sm:$0xf]
        %v2152 = vld [vmem:[%s3 + $0x74] sm:$0xf]
        %v2153 = vld [vmem:[%s3 + $0x78] sm:$0xf]
        %v2154 = vld [vmem:[%s3 + $0x7c] sm:$0xf]
        %v2155 = vld [vmem:[%s3 + $0x80] sm:$0xf]
        %v2156 = vld [vmem:[%s3 + $0x84] sm:$0xf]
        %v2157 = vld [vmem:[%s3 + $0x88] sm:$0xf]
        %v2158 = vld [vmem:[%s3 + $0x8c] sm:$0xf]
        %v2159 = vld [vmem:[%s3 + $0x90] sm:$0xf]
        %v2160 = vld [vmem:[%s3 + $0x94] sm:$0xf]
        %v2161 = vld [vmem:[%s3 + $0x98] sm:$0xf]
        %v2162 = vld [vmem:[%s3 + $0x9c] sm:$0xf]
        %v2163 = vld [vmem:[%s3 + $0xa0] sm:$0xf]
        %v2164 = vld [vmem:[%s3 + $0xa4] sm:$0xf]
        %v2165 = vld [vmem:[%s3 + $0xa8] sm:$0xf]
        %v2166 = vld [vmem:[%s3 + $0xac] sm:$0xf]
        %v2167 = vld [vmem:[%s3 + $0xb0] sm:$0xf]
        %v2168 = vld [vmem:[%s3 + $0xb4] sm:$0xf]
        %v2169 = vld [vmem:[%s3 + $0xb8] sm:$0xf]
        %v2170 = vld [vmem:[%s3 + $0xbc] sm:$0xf]
        %v2171 = vld [vmem:[%s3 + $0xc0] sm:$0xf]
        %v2172 = vld [vmem:[%s3 + $0xc4] sm:$0xf]
        %v2173 = vld [vmem:[%s3 + $0xc8] sm:$0xf]
        %v2174 = vld [vmem:[%s3 + $0xcc] sm:$0xf]
        %v2175 = vld [vmem:[%s3 + $0xd0] sm:$0xf]
        %v2176 = vld [vmem:[%s3 + $0xd4] sm:$0xf]
        %v2177 = vld [vmem:[%s3 + $0xd8] sm:$0xf]
        %v2178 = vld [vmem:[%s3 + $0xdc] sm:$0xf]
        %v2179 = vld [vmem:[%s3 + $0xe0] sm:$0xf]
        %v2180 = vld [vmem:[%s3 + $0xe4] sm:$0xf]
        %v2181 = vld [vmem:[%s3 + $0xe8] sm:$0xf]
        %v2182 = vld [vmem:[%s3 + $0xec] sm:$0xf]
        %v2183 = vld [vmem:[%s3 + $0xf0] sm:$0xf]
        %v2184 = vld [vmem:[%s3 + $0xf4] sm:$0xf]
        %v2185 = vld [vmem:[%s3 + $0xf8] sm:$0xf]
        %v2186 = vld [vmem:[%s3 + $0xfc] sm:$0xf]
        %v2187 = vld [vmem:[%s4] sm:$0x1]
        %v2189 = vlaneseq
        %v2190 = vshrl.u32 %v2189, 7
        %v2191 = vsub.s32 0, %v2190
        %v2192 = vrot.slane %v2187, %v2191
        %v2258 = vunpack.c.l.b16 %v2123
        %v2259 = vunpack.c.l.b16 %v2124
        %v2260 = vunpack.c.l.b16 %v2125
        %v2261 = vunpack.c.l.b16 %v2126
        %v2262 = vunpack.c.l.b16 %v2127
        %v2263 = vunpack.c.l.b16 %v2128
        %v2264 = vunpack.c.l.b16 %v2129
        %v2265 = vunpack.c.l.b16 %v2130
        %v2266 = vunpack.c.l.b16 %v2131
        %v2267 = vunpack.c.l.b16 %v2132
        %v2268 = vunpack.c.l.b16 %v2133
        %v2269 = vunpack.c.l.b16 %v2134
        %v2270 = vunpack.c.l.b16 %v2135
        %v2271 = vunpack.c.l.b16 %v2136
        %v2272 = vunpack.c.l.b16 %v2137
        %v2273 = vunpack.c.l.b16 %v2138
        %v2274 = vunpack.c.l.b16 %v2139
        %v2275 = vunpack.c.l.b16 %v2140
        %v2276 = vunpack.c.l.b16 %v2141
        %v2277 = vunpack.c.l.b16 %v2142
        %v2278 = vunpack.c.l.b16 %v2143
        %v2279 = vunpack.c.l.b16 %v2144
        %v2280 = vunpack.c.l.b16 %v2145
        %v2281 = vunpack.c.l.b16 %v2146
        %v2282 = vunpack.c.l.b16 %v2147
        %v2283 = vunpack.c.l.b16 %v2148
        %v2284 = vunpack.c.l.b16 %v2149
        %v2285 = vunpack.c.l.b16 %v2150
        %v2286 = vunpack.c.l.b16 %v2151
        %v2287 = vunpack.c.l.b16 %v2152
        %v2288 = vunpack.c.l.b16 %v2153
        %v2289 = vunpack.c.l.b16 %v2154
        %v2290 = vunpack.c.l.b16 %v2155
        %v2291 = vunpack.c.l.b16 %v2156
        %v2292 = vunpack.c.l.b16 %v2157
        %v2293 = vunpack.c.l.b16 %v2158
        %v2294 = vunpack.c.l.b16 %v2159
        %v2295 = vunpack.c.l.b16 %v2160
        %v2296 = vunpack.c.l.b16 %v2161
        %v2297 = vunpack.c.l.b16 %v2162
        %v2298 = vunpack.c.l.b16 %v2163
        %v2299 = vunpack.c.l.b16 %v2164
        %v2300 = vunpack.c.l.b16 %v2165
        %v2301 = vunpack.c.l.b16 %v2166
        %v2302 = vunpack.c.l.b16 %v2167
        %v2303 = vunpack.c.l.b16 %v2168
        %v2304 = vunpack.c.l.b16 %v2169
        %v2305 = vunpack.c.l.b16 %v2170
        %v2306 = vunpack.c.l.b16 %v2171
        %v2307 = vunpack.c.l.b16 %v2172
        %v2308 = vunpack.c.l.b16 %v2173
        %v2309 = vunpack.c.l.b16 %v2174
        %v2310 = vunpack.c.l.b16 %v2175
        %v2311 = vunpack.c.l.b16 %v2176
        %v2312 = vunpack.c.l.b16 %v2177
        %v2313 = vunpack.c.l.b16 %v2178
        %v2314 = vunpack.c.l.b16 %v2179
        %v2315 = vunpack.c.l.b16 %v2180
        %v2316 = vunpack.c.l.b16 %v2181
        %v2317 = vunpack.c.l.b16 %v2182
        %v2318 = vunpack.c.l.b16 %v2183
        %v2319 = vunpack.c.l.b16 %v2184
        %v2320 = vunpack.c.l.b16 %v2185
        %v2321 = vunpack.c.l.b16 %v2186
        %v2322 = vpack.c.b16 %v2259, %v2258
        %v2323 = vpack.c.b16 %v2261, %v2260
        %v2324 = vpack.c.b16 %v2263, %v2262
        %v2325 = vpack.c.b16 %v2265, %v2264
        %v2326 = vpack.c.b16 %v2267, %v2266
        %v2327 = vpack.c.b16 %v2269, %v2268
        %v2328 = vpack.c.b16 %v2271, %v2270
        %v2329 = vpack.c.b16 %v2273, %v2272
        %v2330 = vpack.c.b16 %v2275, %v2274
        %v2331 = vpack.c.b16 %v2277, %v2276
        %v2332 = vpack.c.b16 %v2279, %v2278
        %v2333 = vpack.c.b16 %v2281, %v2280
        %v2334 = vpack.c.b16 %v2283, %v2282
        %v2335 = vpack.c.b16 %v2285, %v2284
        %v2336 = vpack.c.b16 %v2287, %v2286
        %v2337 = vpack.c.b16 %v2289, %v2288
        %v2338 = vpack.c.b16 %v2291, %v2290
        %v2339 = vpack.c.b16 %v2293, %v2292
        %v2340 = vpack.c.b16 %v2295, %v2294
        %v2341 = vpack.c.b16 %v2297, %v2296
        %v2342 = vpack.c.b16 %v2299, %v2298
        %v2343 = vpack.c.b16 %v2301, %v2300
        %v2344 = vpack.c.b16 %v2303, %v2302
        %v2345 = vpack.c.b16 %v2305, %v2304
        %v2346 = vpack.c.b16 %v2307, %v2306
        %v2347 = vpack.c.b16 %v2309, %v2308
        %v2348 = vpack.c.b16 %v2311, %v2310
        %v2349 = vpack.c.b16 %v2313, %v2312
        %v2350 = vpack.c.b16 %v2315, %v2314
        %v2351 = vpack.c.b16 %v2317, %v2316
        %v2352 = vpack.c.b16 %v2319, %v2318
        %v2353 = vpack.c.b16 %v2321, %v2320
        %2386 = vmatprep.subr.bf16.mxu0 0
        %2387 = vmatpush1.bf16.msra.mxu0 %v2329
        %2388 = vmatprep.subr.bf16.mxu0 0
        %2389 = vmatpush1.bf16.msra.mxu0 %v2328
        %2390 = vmatprep.subr.bf16.mxu0 0
        %2391 = vmatpush1.bf16.msra.mxu0 %v2327
        %2392 = vmatprep.subr.bf16.mxu0 0
        %2393 = vmatpush1.bf16.msra.mxu0 %v2326
        %2394 = vmatprep.subr.bf16.mxu0 0
        %2395 = vmatpush1.bf16.msra.mxu0 %v2325
        %2396 = vmatprep.subr.bf16.mxu0 0
        %2397 = vmatpush1.bf16.msra.mxu0 %v2324
        %2398 = vmatprep.subr.bf16.mxu0 0
        %2399 = vmatpush1.bf16.msra.mxu0 %v2323
        %2400 = vmatprep.subr.bf16.mxu0 0
        %2401 = vmatpush1.bf16.msra.mxu0 %v2322
        %2402 = vmatprep.subr.bf16.mxu0 0
        %2403 = vmatpush2.bf16.msra.mxu0 %v2337
        %2404 = vmatprep.subr.bf16.mxu0 0
        %2405 = vmatpush2.bf16.msra.mxu0 %v2336
        %2406 = vmatprep.subr.bf16.mxu0 0
        %2407 = vmatpush2.bf16.msra.mxu0 %v2335
        %2408 = vmatprep.subr.bf16.mxu0 0
        %2409 = vmatpush2.bf16.msra.mxu0 %v2334
        %2410 = vmatprep.subr.bf16.mxu0 0
        %2411 = vmatpush2.bf16.msra.mxu0 %v2333
        %2412 = vmatprep.subr.bf16.mxu0 0
        %2413 = vmatpush2.bf16.msra.mxu0 %v2332
        %2414 = vmatprep.subr.bf16.mxu0 0
        %2415 = vmatpush2.bf16.msra.mxu0 %v2331
        %2416 = vmatprep.subr.bf16.mxu0 0
        %2417 = vmatpush2.bf16.msra.mxu0 %v2330
        %2418 = vmatprep.mubr.bf16.mxu0 %v2116
        %2419 = vmatmul.mubr.bf16.gmra.mxu0 %v2115
        %v2420 = vpop.f32.mrf.mxu0
        %v2421 = vadd.f32 %v2192, %v2420
        %v2422 = vpop.f32.mrf.mxu0
        %v2423 = vpop.f32.mrf.mxu0
        %v2424 = vadd.f32 %v2192, %v2423
        %v2425 = vpop.f32.mrf.mxu0
        %2426 = vmatprep.mubr.bf16.mxu0 %v2120
        %2427 = vmatmul.mubr.bf16.gmra.mxu0 %v2119
        %v2428 = vpop.f32.mrf.mxu0
        %v2429 = vadd.f32 %v2192, %v2428
        %v2430 = vpop.f32.mrf.mxu0
        %v2431 = vpop.f32.mrf.mxu0
        %v2432 = vadd.f32 %v2192, %v2431
        %v2433 = vpop.f32.mrf.mxu0
        %2434 = vdwg.mxu0
        %2435 = vmatprep.subr.bf16.mxu0 0
        %2436 = vmatpush1.bf16.msra.mxu0 %v2345
        %2437 = vmatprep.subr.bf16.mxu0 0
        %2438 = vmatpush1.bf16.msra.mxu0 %v2344
        %2439 = vmatprep.subr.bf16.mxu0 0
        %2440 = vmatpush1.bf16.msra.mxu0 %v2343
        %2441 = vmatprep.subr.bf16.mxu0 0
        %2442 = vmatpush1.bf16.msra.mxu0 %v2342
        %2443 = vmatprep.subr.bf16.mxu0 0
        %2444 = vmatpush1.bf16.msra.mxu0 %v2341
        %2445 = vmatprep.subr.bf16.mxu0 0
        %2446 = vmatpush1.bf16.msra.mxu0 %v2340
        %2447 = vmatprep.subr.bf16.mxu0 0
        %2448 = vmatpush1.bf16.msra.mxu0 %v2339
        %2449 = vmatprep.subr.bf16.mxu0 0
        %2450 = vmatpush1.bf16.msra.mxu0 %v2338
        %2451 = vmatprep.subr.bf16.mxu0 0
        %2452 = vmatpush2.bf16.msra.mxu0 %v2353
        %2453 = vmatprep.subr.bf16.mxu0 0
        %2454 = vmatpush2.bf16.msra.mxu0 %v2352
        %2455 = vmatprep.subr.bf16.mxu0 0
        %2456 = vmatpush2.bf16.msra.mxu0 %v2351
        %2457 = vmatprep.subr.bf16.mxu0 0
        %2458 = vmatpush2.bf16.msra.mxu0 %v2350
        %2459 = vmatprep.subr.bf16.mxu0 0
        %2460 = vmatpush2.bf16.msra.mxu0 %v2349
        %2461 = vmatprep.subr.bf16.mxu0 0
        %2462 = vmatpush2.bf16.msra.mxu0 %v2348
        %2463 = vmatprep.subr.bf16.mxu0 0
        %2464 = vmatpush2.bf16.msra.mxu0 %v2347
        %2465 = vmatprep.subr.bf16.mxu0 0
        %2466 = vmatpush2.bf16.msra.mxu0 %v2346
        %2467 = vmatprep.mubr.bf16.mxu0 %v2118
        %2468 = vmatmul.mubr.bf16.gmra.mxu0 %v2117
        %v2469 = vpop.f32.mrf.mxu0
        %v2470 = vadd.f32 %v2421, %v2469
        %v2471 = vpop.f32.mrf.mxu0
        %v2472 = vpop.f32.mrf.mxu0
        %v2473 = vadd.f32 %v2424, %v2472
        %v2474 = vpop.f32.mrf.mxu0
        %2475 = vmatprep.mubr.bf16.mxu0 %v2122
        %2476 = vmatmul.mubr.bf16.gmra.mxu0 %v2121
        %v2477 = vpop.f32.mrf.mxu0
        %v2478 = vadd.f32 %v2429, %v2477
        %v2479 = vpop.f32.mrf.mxu0
        %v2480 = vpop.f32.mrf.mxu0
        %v2481 = vadd.f32 %v2432, %v2480
        %v2482 = vpop.f32.mrf.mxu0
        %2483 = vdwg.mxu0
        %v2484 = vld [vmem:[%s418] sm:$0xff]
        %v2485 = vld [vmem:[%s418 + $0x8] sm:$0xff]
        %v2486 = vld [vmem:[%s418 + $0x10] sm:$0xff]
        %v2487 = vld [vmem:[%s418 + $0x18] sm:$0xff]
        %v2488 = vmul.f32 %v2470, 0.5
        %v2489 = vmul.f32 %v2473, 0.5
        %v2490 = vmul.f32 %v2478, 0.5
        %v2491 = vmul.f32 %v2481, 0.5
        %v2492 = vmul.f32 %v2488, 1.442695
        %v2493 = vpow.pop %v2492
        %v2494 = vmul.f32 %v2489, 1.442695
        %v2495 = vpow.pop %v2494
        %v2496 = vmul.f32 %v2490, 1.442695
        %v2497 = vpow.pop %v2496
        %v2498 = vmul.f32 %v2491, 1.442695
        %v2499 = vpow.pop %v2498
        %2504 = vrot.lane.b32.xlu0 %v2493, 124
        %v2505 = vpop.permute.xlu0 %2504
        %2506 = vrot.lane.b32.xlu0 %v2495, 124
        %v2507 = vpop.permute.xlu0 %2506
        %2508 = vrot.lane.b32.xlu0 %v2497, 124
        %v2509 = vpop.permute.xlu0 %2508
        %2510 = vrot.lane.b32.xlu0 %v2499, 124
        %v2511 = vpop.permute.xlu0 %2510
        %v2516 = vmul.f32 %v2484, %v2505
        %v2517 = vmul.f32 %v2485, %v2507
        %v2518 = vmul.f32 %v2486, %v2509
        %v2519 = vmul.f32 %v2487, %v2511
        %v2520 = vadd.f32 %v2470, %v2516
        %v2521 = vadd.f32 %v2473, %v2517
        %v2522 = vadd.f32 %v2478, %v2518
        %v2523 = vadd.f32 %v2481, %v2519
        %v2524 = vpack.c.bf16 %v2521, %v2520
        %v2525 = vpack.c.bf16 %v2523, %v2522
        %v2526 = vld [vmem:[%s5] sm:$0xff]
        %v2527 = vld [vmem:[%s6] sm:$0xf]
        %v2529 = vlaneseq
        %v2530 = vshrl.u32 %v2529, 7
        %v2531 = vsub.s32 0, %v2530
        %v2532 = vrot.slane %v2527, %v2531
        %v2533 = vlaneseq
        %v2534 = vshrl.u32 %v2533, 7
        %v2535 = vsub.s32 1, %v2534
        %v2536 = vrot.slane %v2527, %v2535
        %v2537 = vlaneseq
        %v2538 = vshrl.u32 %v2537, 7
        %v2539 = vsub.s32 2, %v2538
        %v2540 = vrot.slane %v2527, %v2539
        %v2541 = vlaneseq
        %v2542 = vshrl.u32 %v2541, 7
        %v2543 = vsub.s32 3, %v2542
        %v2544 = vrot.slane %v2527, %v2543
        %v2550 = vcombine.high %v2526, %v2526
        %v2552 = vunpack.c.l.s4 1983009808
        %v2553 = vunpack.c.0.s8 %v2552
        %v2554 = vlaneseq
        %v2555 = vshrl.u32 %v2554, 7
        %v2556 = vsub.s32 %v2553, %v2555
        %v2557 = vrot.slane %v2526, %v2556
        %v2559 = vunpack.c.l.s4 1983009808
        %v2560 = vunpack.c.0.s8 %v2559
        %v2561 = vlaneseq
        %v2562 = vshrl.u32 %v2561, 7
        %v2563 = vsub.s32 %v2560, %v2562
        %v2564 = vrot.slane %v2550, %v2563
        %v2565 = vcombine.high %v2557, %v2557
        %v2566 = vcombine.high %v2564, %v2564
        %vm2567 = vcmask 31744
        %v2569 = vsel %vm2567, %v2524, 0
        %v2572 = vsel %vm2567, %v2525, 0
        %vm2574 = vcmask 1041408
        %v2576 = vsel %vm2574, %v2557, 0
        %v2579 = vsel %vm2574, %v2565, 0
        %v2582 = vsel %vm2574, %v2564, 0
        %v2585 = vsel %vm2574, %v2566, 0
        %2587 = vmatprep.subr.bf16.mxu0 0
        %2588 = vmatpush1.bf16.msra.mxu0 0
        %2589 = vmatprep.subr.bf16.mxu0 0
        %2590 = vmatpush1.bf16.msra.mxu0 0
        %2591 = vmatprep.subr.bf16.mxu0 0
        %2592 = vmatpush1.bf16.msra.mxu0 0
        %2593 = vmatprep.subr.bf16.mxu0 0
        %2594 = vmatpush1.bf16.msra.mxu0 0
        %2595 = vmatprep.subr.bf16.mxu0 0
        %2596 = vmatpush1.bf16.msra.mxu0 0
        %2597 = vmatprep.subr.bf16.mxu0 0
        %2598 = vmatpush1.bf16.msra.mxu0 0
        %2599 = vmatprep.subr.bf16.mxu0 0
        %2600 = vmatpush1.bf16.msra.mxu0 0
        %2601 = vmatprep.subr.bf16.mxu0 %v2579
        %2602 = vmatpush1.bf16.msra.mxu0 %v2576
        %2603 = vmatprep.subr.bf16.mxu0 0
        %2604 = vmatpush2.bf16.msra.mxu0 0
        %2605 = vmatprep.subr.bf16.mxu0 0
        %2606 = vmatpush2.bf16.msra.mxu0 0
        %2607 = vmatprep.subr.bf16.mxu0 0
        %2608 = vmatpush2.bf16.msra.mxu0 0
        %2609 = vmatprep.subr.bf16.mxu0 0
        %2610 = vmatpush2.bf16.msra.mxu0 0
        %2611 = vmatprep.subr.bf16.mxu0 0
        %2612 = vmatpush2.bf16.msra.mxu0 0
        %2613 = vmatprep.subr.bf16.mxu0 0
        %2614 = vmatpush2.bf16.msra.mxu0 0
        %2615 = vmatprep.subr.bf16.mxu0 0
        %2616 = vmatpush2.bf16.msra.mxu0 0
        %2617 = vmatprep.subr.bf16.mxu0 0
        %2618 = vmatpush2.bf16.msra.mxu0 0
        %2619 = vmatprep.mubr.bf16.mxu0 0
        %2620 = vmatmul.mubr.bf16.gmra.mxu0 %v2569
        %v2621 = vpop.f32.mrf.mxu0
        %v2622 = vadd.f32 %v2532, %v2621
        %v2623 = vpop.f32.mrf.mxu0
        %v2624 = vadd.f32 %v2536, %v2623
        %v2625 = vpop.f32.mrf.mxu0
        %v2626 = vadd.f32 %v2532, %v2625
        %v2627 = vpop.f32.mrf.mxu0
        %v2628 = vadd.f32 %v2536, %v2627
        %2629 = vmatprep.mubr.bf16.mxu0 0
        %2630 = vmatmul.mubr.bf16.gmra.mxu0 %v2572
        %v2631 = vpop.f32.mrf.mxu0
        %v2632 = vadd.f32 %v2532, %v2631
        %v2633 = vpop.f32.mrf.mxu0
        %v2634 = vadd.f32 %v2536, %v2633
        %v2635 = vpop.f32.mrf.mxu0
        %v2636 = vadd.f32 %v2532, %v2635
        %v2637 = vpop.f32.mrf.mxu0
        %v2638 = vadd.f32 %v2536, %v2637
        %2639 = vdwg.mxu0
        %2640 = vmatprep.subr.bf16.mxu0 0
        %2641 = vmatpush1.bf16.msra.mxu0 0
        %2642 = vmatprep.subr.bf16.mxu0 0
        %2643 = vmatpush1.bf16.msra.mxu0 0
        %2644 = vmatprep.subr.bf16.mxu0 0
        %2645 = vmatpush1.bf16.msra.mxu0 0
        %2646 = vmatprep.subr.bf16.mxu0 0
        %2647 = vmatpush1.bf16.msra.mxu0 0
        %2648 = vmatprep.subr.bf16.mxu0 0
        %2649 = vmatpush1.bf16.msra.mxu0 0
        %2650 = vmatprep.subr.bf16.mxu0 0
        %2651 = vmatpush1.bf16.msra.mxu0 0
        %2652 = vmatprep.subr.bf16.mxu0 0
        %2653 = vmatpush1.bf16.msra.mxu0 0
        %2654 = vmatprep.subr.bf16.mxu0 %v2585
        %2655 = vmatpush1.bf16.msra.mxu0 %v2582
        %2656 = vmatprep.subr.bf16.mxu0 0
        %2657 = vmatpush2.bf16.msra.mxu0 0
        %2658 = vmatprep.subr.bf16.mxu0 0
        %2659 = vmatpush2.bf16.msra.mxu0 0
        %2660 = vmatprep.subr.bf16.mxu0 0
        %2661 = vmatpush2.bf16.msra.mxu0 0
        %2662 = vmatprep.subr.bf16.mxu0 0
        %2663 = vmatpush2.bf16.msra.mxu0 0
        %2664 = vmatprep.subr.bf16.mxu0 0
        %2665 = vmatpush2.bf16.msra.mxu0 0
        %2666 = vmatprep.subr.bf16.mxu0 0
        %2667 = vmatpush2.bf16.msra.mxu0 0
        %2668 = vmatprep.subr.bf16.mxu0 0
        %2669 = vmatpush2.bf16.msra.mxu0 0
        %2670 = vmatprep.subr.bf16.mxu0 0
        %2671 = vmatpush2.bf16.msra.mxu0 0
        %2672 = vmatprep.mubr.bf16.mxu0 0
        %2673 = vmatmul.mubr.bf16.gmra.mxu0 %v2569
        %v2674 = vpop.f32.mrf.mxu0
        %v2675 = vadd.f32 %v2540, %v2674
        %v2676 = vpop.f32.mrf.mxu0
        %v2677 = vadd.f32 %v2544, %v2676
        %v2678 = vpop.f32.mrf.mxu0
        %v2679 = vadd.f32 %v2540, %v2678
        %v2680 = vpop.f32.mrf.mxu0
        %v2681 = vadd.f32 %v2544, %v2680
        %2682 = vmatprep.mubr.bf16.mxu0 0
        %2683 = vmatmul.mubr.bf16.gmra.mxu0 %v2572
        %v2684 = vpop.f32.mrf.mxu0
        %v2685 = vadd.f32 %v2540, %v2684
        %v2686 = vpop.f32.mrf.mxu0
        %v2687 = vadd.f32 %v2544, %v2686
        %v2688 = vpop.f32.mrf.mxu0
        %v2689 = vadd.f32 %v2540, %v2688
        %v2690 = vpop.f32.mrf.mxu0
        %v2691 = vadd.f32 %v2544, %v2690
        %2692 = vdwg.mxu0
        %v2693 = vmax.f32 %v2622, 0.0
        %v2694 = vmax.f32 %v2624, 0.0
        %v2695 = vmax.f32 %v2675, 0.0
        %v2696 = vmax.f32 %v2677, 0.0
        %v2697 = vmax.f32 %v2626, 0.0
        %v2698 = vmax.f32 %v2628, 0.0
        %v2699 = vmax.f32 %v2679, 0.0
        %v2700 = vmax.f32 %v2681, 0.0
        %v2701 = vmax.f32 %v2632, 0.0
        %v2702 = vmax.f32 %v2634, 0.0
        %v2703 = vmax.f32 %v2685, 0.0
        %v2704 = vmax.f32 %v2687, 0.0
        %v2705 = vmax.f32 %v2636, 0.0
        %v2706 = vmax.f32 %v2638, 0.0
        %v2707 = vmax.f32 %v2689, 0.0
        %v2708 = vmax.f32 %v2691, 0.0
        %v2709 = vpack.c.bf16 %v2697, %v2693
        %v2710 = vpack.c.bf16 %v2698, %v2694
        %v2711 = vpack.c.bf16 %v2699, %v2695
        %v2712 = vpack.c.bf16 %v2700, %v2696
        %v2713 = vpack.c.bf16 %v2705, %v2701
        %v2714 = vpack.c.bf16 %v2706, %v2702
        %v2715 = vpack.c.bf16 %v2707, %v2703
        %v2716 = vpack.c.bf16 %v2708, %v2704
        %v2717 = vld [vmem:[%s7] sm:$0xff]
        %v2718 = vld [vmem:[%s7 + $0x8] sm:$0xff]
        %v2719 = vld [vmem:[%s7 + $0x10] sm:$0xff]
        %v2720 = vld [vmem:[%s7 + $0x18] sm:$0xf]
        %v2721 = vld [vmem:[%s7 + $0x1c] sm:$0xff]
        %v2722 = vld [vmem:[%s7 + $0x24] sm:$0xff]
        %v2723 = vld [vmem:[%s7 + $0x2c] sm:$0xff]
        %v2724 = vld [vmem:[%s7 + $0x34] sm:$0xf]
        %v2725 = vld [vmem:[%s7 + $0x38] sm:$0xff]
        %v2726 = vld [vmem:[%s7 + $0x40] sm:$0xff]
        %v2727 = vld [vmem:[%s7 + $0x48] sm:$0xff]
        %v2728 = vld [vmem:[%s7 + $0x50] sm:$0xf]
        %v2729 = vld [vmem:[%s7 + $0x54] sm:$0xff]
        %v2730 = vld [vmem:[%s7 + $0x5c] sm:$0xff]
        %v2731 = vld [vmem:[%s7 + $0x64] sm:$0xff]
        %v2732 = vld [vmem:[%s7 + $0x6c] sm:$0xf]
        %v2733 = vld [vmem:[%s7 + $0x70] sm:$0xff]
        %v2734 = vld [vmem:[%s7 + $0x78] sm:$0xff]
        %v2735 = vld [vmem:[%s7 + $0x80] sm:$0xff]
        %v2736 = vld [vmem:[%s7 + $0x88] sm:$0xf]
        %v2737 = vld [vmem:[%s7 + $0x8c] sm:$0xff]
        %v2738 = vld [vmem:[%s7 + $0x94] sm:$0xff]
        %v2739 = vld [vmem:[%s7 + $0x9c] sm:$0xff]
        %v2740 = vld [vmem:[%s7 + $0xa4] sm:$0xf]
        %v2741 = vld [vmem:[%s7 + $0xa8] sm:$0xff]
        %v2742 = vld [vmem:[%s7 + $0xb0] sm:$0xff]
        %v2743 = vld [vmem:[%s7 + $0xb8] sm:$0xff]
        %v2744 = vld [vmem:[%s7 + $0xc0] sm:$0xf]
        %v2745 = vld [vmem:[%s7 + $0xc4] sm:$0xff]
        %v2746 = vld [vmem:[%s7 + $0xcc] sm:$0xff]
        %v2747 = vld [vmem:[%s7 + $0xd4] sm:$0xff]
        %v2748 = vld [vmem:[%s7 + $0xdc] sm:$0xf]
        %v2749 = vld [vmem:[%s7 + $0xe0] sm:$0xff]
        %v2750 = vld [vmem:[%s7 + $0xe8] sm:$0xff]
        %v2751 = vld [vmem:[%s7 + $0xf0] sm:$0xff]
        %v2752 = vld [vmem:[%s7 + $0xf8] sm:$0xf]
        %v2753 = vld [vmem:[%s7 + $0xfc] sm:$0xff]
        %v2754 = vld [vmem:[%s7 + $0x104] sm:$0xff]
        %v2755 = vld [vmem:[%s7 + $0x10c] sm:$0xff]
        %v2756 = vld [vmem:[%s7 + $0x114] sm:$0xf]
        %v2757 = vld [vmem:[%s7 + $0x118] sm:$0xff]
        %v2758 = vld [vmem:[%s7 + $0x120] sm:$0xff]
        %v2759 = vld [vmem:[%s7 + $0x128] sm:$0xff]
        %v2760 = vld [vmem:[%s7 + $0x130] sm:$0xf]
        %v2761 = vld [vmem:[%s7 + $0x134] sm:$0xff]
        %v2762 = vld [vmem:[%s7 + $0x13c] sm:$0xff]
        %v2763 = vld [vmem:[%s7 + $0x144] sm:$0xff]
        %v2764 = vld [vmem:[%s7 + $0x14c] sm:$0xf]
        %v2765 = vld [vmem:[%s7 + $0x150] sm:$0xff]
        %v2766 = vld [vmem:[%s7 + $0x158] sm:$0xff]
        %v2767 = vld [vmem:[%s7 + $0x160] sm:$0xff]
        %v2768 = vld [vmem:[%s7 + $0x168] sm:$0xf]
        %v2769 = vld [vmem:[%s7 + $0x16c] sm:$0xff]
        %v2770 = vld [vmem:[%s7 + $0x174] sm:$0xff]
        %v2771 = vld [vmem:[%s7 + $0x17c] sm:$0xff]
        %v2772 = vld [vmem:[%s7 + $0x184] sm:$0xf]
        %v2773 = vld [vmem:[%s7 + $0x188] sm:$0xff]
        %v2774 = vld [vmem:[%s7 + $0x190] sm:$0xff]
        %v2775 = vld [vmem:[%s7 + $0x198] sm:$0xff]
        %v2776 = vld [vmem:[%s7 + $0x1a0] sm:$0xf]
        %v2777 = vld [vmem:[%s7 + $0x1a4] sm:$0xff]
        %v2778 = vld [vmem:[%s7 + $0x1ac] sm:$0xff]
        %v2779 = vld [vmem:[%s7 + $0x1b4] sm:$0xff]
        %v2780 = vld [vmem:[%s7 + $0x1bc] sm:$0xf]
        %v2781 = vld [vmem:[%s7 + $0x1c0] sm:$0xff]
        %v2782 = vld [vmem:[%s7 + $0x1c8] sm:$0xff]
        %v2783 = vld [vmem:[%s7 + $0x1d0] sm:$0xff]
        %v2784 = vld [vmem:[%s7 + $0x1d8] sm:$0xf]
        %v2785 = vld [vmem:[%s7 + $0x1dc] sm:$0xff]
        %v2786 = vld [vmem:[%s7 + $0x1e4] sm:$0xff]
        %v2787 = vld [vmem:[%s7 + $0x1ec] sm:$0xff]
        %v2788 = vld [vmem:[%s7 + $0x1f4] sm:$0xf]
        %v2789 = vld [vmem:[%s7 + $0x1f8] sm:$0xff]
        %v2790 = vld [vmem:[%s7 + $0x200] sm:$0xff]
        %v2791 = vld [vmem:[%s7 + $0x208] sm:$0xff]
        %v2792 = vld [vmem:[%s7 + $0x210] sm:$0xf]
        %v2793 = vld [vmem:[%s7 + $0x214] sm:$0xff]
        %v2794 = vld [vmem:[%s7 + $0x21c] sm:$0xff]
        %v2795 = vld [vmem:[%s7 + $0x224] sm:$0xff]
        %v2796 = vld [vmem:[%s7 + $0x22c] sm:$0xf]
        %v2797 = vld [vmem:[%s7 + $0x230] sm:$0xff]
        %v2798 = vld [vmem:[%s7 + $0x238] sm:$0xff]
        %v2799 = vld [vmem:[%s7 + $0x240] sm:$0xff]
        %v2800 = vld [vmem:[%s7 + $0x248] sm:$0xf]
        %v2801 = vld [vmem:[%s7 + $0x24c] sm:$0xff]
        %v2802 = vld [vmem:[%s7 + $0x254] sm:$0xff]
        %v2803 = vld [vmem:[%s7 + $0x25c] sm:$0xff]
        %v2804 = vld [vmem:[%s7 + $0x264] sm:$0xf]
        %v2805 = vld [vmem:[%s7 + $0x268] sm:$0xff]
        %v2806 = vld [vmem:[%s7 + $0x270] sm:$0xff]
        %v2807 = vld [vmem:[%s7 + $0x278] sm:$0xff]
        %v2808 = vld [vmem:[%s7 + $0x280] sm:$0xf]
        %v2809 = vld [vmem:[%s7 + $0x284] sm:$0xff]
        %v2810 = vld [vmem:[%s7 + $0x28c] sm:$0xff]
        %v2811 = vld [vmem:[%s7 + $0x294] sm:$0xff]
        %v2812 = vld [vmem:[%s7 + $0x29c] sm:$0xf]
        %v2813 = vld [vmem:[%s7 + $0x2a0] sm:$0xff]
        %v2814 = vld [vmem:[%s7 + $0x2a8] sm:$0xff]
        %v2815 = vld [vmem:[%s7 + $0x2b0] sm:$0xff]
        %v2816 = vld [vmem:[%s7 + $0x2b8] sm:$0xf]
        %v2817 = vld [vmem:[%s7 + $0x2bc] sm:$0xff]
        %v2818 = vld [vmem:[%s7 + $0x2c4] sm:$0xff]
        %v2819 = vld [vmem:[%s7 + $0x2cc] sm:$0xff]
        %v2820 = vld [vmem:[%s7 + $0x2d4] sm:$0xf]
        %v2821 = vld [vmem:[%s7 + $0x2d8] sm:$0xff]
        %v2822 = vld [vmem:[%s7 + $0x2e0] sm:$0xff]
        %v2823 = vld [vmem:[%s7 + $0x2e8] sm:$0xff]
        %v2824 = vld [vmem:[%s7 + $0x2f0] sm:$0xf]
        %v2825 = vld [vmem:[%s7 + $0x2f4] sm:$0xff]
        %v2826 = vld [vmem:[%s7 + $0x2fc] sm:$0xff]
        %v2827 = vld [vmem:[%s7 + $0x304] sm:$0xff]
        %v2828 = vld [vmem:[%s7 + $0x30c] sm:$0xf]
        %v2829 = vld [vmem:[%s7 + $0x310] sm:$0xff]
        %v2830 = vld [vmem:[%s7 + $0x318] sm:$0xff]
        %v2831 = vld [vmem:[%s7 + $0x320] sm:$0xff]
        %v2832 = vld [vmem:[%s7 + $0x328] sm:$0xf]
        %v2833 = vld [vmem:[%s7 + $0x32c] sm:$0xff]
        %v2834 = vld [vmem:[%s7 + $0x334] sm:$0xff]
        %v2835 = vld [vmem:[%s7 + $0x33c] sm:$0xff]
        %v2836 = vld [vmem:[%s7 + $0x344] sm:$0xf]
        %v2837 = vld [vmem:[%s7 + $0x348] sm:$0xff]
        %v2838 = vld [vmem:[%s7 + $0x350] sm:$0xff]
        %v2839 = vld [vmem:[%s7 + $0x358] sm:$0xff]
        %v2840 = vld [vmem:[%s7 + $0x360] sm:$0xf]
        %v2841 = vld [vmem:[%s7 + $0x364] sm:$0xff]
        %v2842 = vld [vmem:[%s7 + $0x36c] sm:$0xff]
        %v2843 = vld [vmem:[%s7 + $0x374] sm:$0xff]
        %v2844 = vld [vmem:[%s7 + $0x37c] sm:$0xf]
        %v2845 = vld [vmem:[%s7 + $0x380] sm:$0xff]
        %v2846 = vld [vmem:[%s7 + $0x388] sm:$0xff]
        %v2847 = vld [vmem:[%s7 + $0x390] sm:$0xff]
        %v2848 = vld [vmem:[%s7 + $0x398] sm:$0xf]
        %v2849 = vld [vmem:[%s7 + $0x39c] sm:$0xff]
        %v2850 = vld [vmem:[%s7 + $0x3a4] sm:$0xff]
        %v2851 = vld [vmem:[%s7 + $0x3ac] sm:$0xff]
        %v2852 = vld [vmem:[%s7 + $0x3b4] sm:$0xf]
        %v2853 = vld [vmem:[%s7 + $0x3b8] sm:$0xff]
        %v2854 = vld [vmem:[%s7 + $0x3c0] sm:$0xff]
        %v2855 = vld [vmem:[%s7 + $0x3c8] sm:$0xff]
        %v2856 = vld [vmem:[%s7 + $0x3d0] sm:$0xf]
        %v2857 = vld [vmem:[%s7 + $0x3d4] sm:$0xff]
        %v2858 = vld [vmem:[%s7 + $0x3dc] sm:$0xff]
        %v2859 = vld [vmem:[%s7 + $0x3e4] sm:$0xff]
        %v2860 = vld [vmem:[%s7 + $0x3ec] sm:$0xf]
        %v2861 = vld [vmem:[%s7 + $0x3f0] sm:$0xff]
        %v2862 = vld [vmem:[%s7 + $0x3f8] sm:$0xff]
        %v2863 = vld [vmem:[%s7 + $0x400] sm:$0xff]
        %v2864 = vld [vmem:[%s7 + $0x408] sm:$0xf]
        %v2865 = vld [vmem:[%s7 + $0x40c] sm:$0xff]
        %v2866 = vld [vmem:[%s7 + $0x414] sm:$0xff]
        %v2867 = vld [vmem:[%s7 + $0x41c] sm:$0xff]
        %v2868 = vld [vmem:[%s7 + $0x424] sm:$0xf]
        %v2869 = vld [vmem:[%s7 + $0x428] sm:$0xff]
        %v2870 = vld [vmem:[%s7 + $0x430] sm:$0xff]
        %v2871 = vld [vmem:[%s7 + $0x438] sm:$0xff]
        %v2872 = vld [vmem:[%s7 + $0x440] sm:$0xf]
        %v2873 = vld [vmem:[%s7 + $0x444] sm:$0xff]
        %v2874 = vld [vmem:[%s7 + $0x44c] sm:$0xff]
        %v2875 = vld [vmem:[%s7 + $0x454] sm:$0xff]
        %v2876 = vld [vmem:[%s7 + $0x45c] sm:$0xf]
        %v2877 = vld [vmem:[%s7 + $0x460] sm:$0xff]
        %v2878 = vld [vmem:[%s7 + $0x468] sm:$0xff]
        %v2879 = vld [vmem:[%s7 + $0x470] sm:$0xff]
        %v2880 = vld [vmem:[%s7 + $0x478] sm:$0xf]
        %v2881 = vld [vmem:[%s7 + $0x47c] sm:$0xff]
        %v2882 = vld [vmem:[%s7 + $0x484] sm:$0xff]
        %v2883 = vld [vmem:[%s7 + $0x48c] sm:$0xff]
        %v2884 = vld [vmem:[%s7 + $0x494] sm:$0xf]
        %v2885 = vld [vmem:[%s7 + $0x498] sm:$0xff]
        %v2886 = vld [vmem:[%s7 + $0x4a0] sm:$0xff]
        %v2887 = vld [vmem:[%s7 + $0x4a8] sm:$0xff]
        %v2888 = vld [vmem:[%s7 + $0x4b0] sm:$0xf]
        %v2889 = vld [vmem:[%s7 + $0x4b4] sm:$0xff]
        %v2890 = vld [vmem:[%s7 + $0x4bc] sm:$0xff]
        %v2891 = vld [vmem:[%s7 + $0x4c4] sm:$0xff]
        %v2892 = vld [vmem:[%s7 + $0x4cc] sm:$0xf]
        %v2893 = vld [vmem:[%s7 + $0x4d0] sm:$0xff]
        %v2894 = vld [vmem:[%s7 + $0x4d8] sm:$0xff]
        %v2895 = vld [vmem:[%s7 + $0x4e0] sm:$0xff]
        %v2896 = vld [vmem:[%s7 + $0x4e8] sm:$0xf]
        %v2897 = vld [vmem:[%s7 + $0x4ec] sm:$0xff]
        %v2898 = vld [vmem:[%s7 + $0x4f4] sm:$0xff]
        %v2899 = vld [vmem:[%s7 + $0x4fc] sm:$0xff]
        %v2900 = vld [vmem:[%s7 + $0x504] sm:$0xf]
        %v2901 = vld [vmem:[%s7 + $0x508] sm:$0xff]
        %v2902 = vld [vmem:[%s7 + $0x510] sm:$0xff]
        %v2903 = vld [vmem:[%s7 + $0x518] sm:$0xff]
        %v2904 = vld [vmem:[%s7 + $0x520] sm:$0xf]
        %v2905 = vld [vmem:[%s7 + $0x524] sm:$0xff]
        %v2906 = vld [vmem:[%s7 + $0x52c] sm:$0xff]
        %v2907 = vld [vmem:[%s7 + $0x534] sm:$0xff]
        %v2908 = vld [vmem:[%s7 + $0x53c] sm:$0xf]
        %v2909 = vld [vmem:[%s7 + $0x540] sm:$0xff]
        %v2910 = vld [vmem:[%s7 + $0x548] sm:$0xff]
        %v2911 = vld [vmem:[%s7 + $0x550] sm:$0xff]
        %v2912 = vld [vmem:[%s7 + $0x558] sm:$0xf]
        %v2913 = vld [vmem:[%s7 + $0x55c] sm:$0xff]
        %v2914 = vld [vmem:[%s7 + $0x564] sm:$0xff]
        %v2915 = vld [vmem:[%s7 + $0x56c] sm:$0xff]
        %v2916 = vld [vmem:[%s7 + $0x574] sm:$0xf]
        %v2917 = vld [vmem:[%s7 + $0x578] sm:$0xff]
        %v2918 = vld [vmem:[%s7 + $0x580] sm:$0xff]
        %v2919 = vld [vmem:[%s7 + $0x588] sm:$0xff]
        %v2920 = vld [vmem:[%s7 + $0x590] sm:$0xf]
        %v2921 = vld [vmem:[%s7 + $0x594] sm:$0xff]
        %v2922 = vld [vmem:[%s7 + $0x59c] sm:$0xff]
        %v2923 = vld [vmem:[%s7 + $0x5a4] sm:$0xff]
        %v2924 = vld [vmem:[%s7 + $0x5ac] sm:$0xf]
        %v2925 = vld [vmem:[%s7 + $0x5b0] sm:$0xff]
        %v2926 = vld [vmem:[%s7 + $0x5b8] sm:$0xff]
        %v2927 = vld [vmem:[%s7 + $0x5c0] sm:$0xff]
        %v2928 = vld [vmem:[%s7 + $0x5c8] sm:$0xf]
        %v2929 = vld [vmem:[%s7 + $0x5cc] sm:$0xff]
        %v2930 = vld [vmem:[%s7 + $0x5d4] sm:$0xff]
        %v2931 = vld [vmem:[%s7 + $0x5dc] sm:$0xff]
        %v2932 = vld [vmem:[%s7 + $0x5e4] sm:$0xf]
        %v2933 = vld [vmem:[%s7 + $0x5e8] sm:$0xff]
        %v2934 = vld [vmem:[%s7 + $0x5f0] sm:$0xff]
        %v2935 = vld [vmem:[%s7 + $0x5f8] sm:$0xff]
        %v2936 = vld [vmem:[%s7 + $0x600] sm:$0xf]
        %v2937 = vld [vmem:[%s7 + $0x604] sm:$0xff]
        %v2938 = vld [vmem:[%s7 + $0x60c] sm:$0xff]
        %v2939 = vld [vmem:[%s7 + $0x614] sm:$0xff]
        %v2940 = vld [vmem:[%s7 + $0x61c] sm:$0xf]
        %v2941 = vld [vmem:[%s7 + $0x620] sm:$0xff]
        %v2942 = vld [vmem:[%s7 + $0x628] sm:$0xff]
        %v2943 = vld [vmem:[%s7 + $0x630] sm:$0xff]
        %v2944 = vld [vmem:[%s7 + $0x638] sm:$0xf]
        %v2945 = vld [vmem:[%s7 + $0x63c] sm:$0xff]
        %v2946 = vld [vmem:[%s7 + $0x644] sm:$0xff]
        %v2947 = vld [vmem:[%s7 + $0x64c] sm:$0xff]
        %v2948 = vld [vmem:[%s7 + $0x654] sm:$0xf]
        %v2949 = vld [vmem:[%s7 + $0x658] sm:$0xff]
        %v2950 = vld [vmem:[%s7 + $0x660] sm:$0xff]
        %v2951 = vld [vmem:[%s7 + $0x668] sm:$0xff]
        %v2952 = vld [vmem:[%s7 + $0x670] sm:$0xf]
        %v2953 = vld [vmem:[%s7 + $0x674] sm:$0xff]
        %v2954 = vld [vmem:[%s7 + $0x67c] sm:$0xff]
        %v2955 = vld [vmem:[%s7 + $0x684] sm:$0xff]
        %v2956 = vld [vmem:[%s7 + $0x68c] sm:$0xf]
        %v2957 = vld [vmem:[%s7 + $0x690] sm:$0xff]
        %v2958 = vld [vmem:[%s7 + $0x698] sm:$0xff]
        %v2959 = vld [vmem:[%s7 + $0x6a0] sm:$0xff]
        %v2960 = vld [vmem:[%s7 + $0x6a8] sm:$0xf]
        %v2961 = vld [vmem:[%s7 + $0x6ac] sm:$0xff]
        %v2962 = vld [vmem:[%s7 + $0x6b4] sm:$0xff]
        %v2963 = vld [vmem:[%s7 + $0x6bc] sm:$0xff]
        %v2964 = vld [vmem:[%s7 + $0x6c4] sm:$0xf]
        %v2965 = vld [vmem:[%s7 + $0x6c8] sm:$0xff]
        %v2966 = vld [vmem:[%s7 + $0x6d0] sm:$0xff]
        %v2967 = vld [vmem:[%s7 + $0x6d8] sm:$0xff]
        %v2968 = vld [vmem:[%s7 + $0x6e0] sm:$0xf]
        %v2969 = vld [vmem:[%s7 + $0x6e4] sm:$0xff]
        %v2970 = vld [vmem:[%s7 + $0x6ec] sm:$0xff]
        %v2971 = vld [vmem:[%s7 + $0x6f4] sm:$0xff]
        %v2972 = vld [vmem:[%s7 + $0x6fc] sm:$0xf]
        %v2973 = vld [vmem:[%s8] sm:$0x7f]
        %v2975 = vlaneseq
        %v2976 = vshrl.u32 %v2975, 7
        %v2977 = vsub.s32 0, %v2976
        %v2978 = vrot.slane %v2973, %v2977
        %v2979 = vlaneseq
        %v2980 = vshrl.u32 %v2979, 7
        %v2981 = vsub.s32 1, %v2980
        %v2982 = vrot.slane %v2973, %v2981
        %v2983 = vlaneseq
        %v2984 = vshrl.u32 %v2983, 7
        %v2985 = vsub.s32 2, %v2984
        %v2986 = vrot.slane %v2973, %v2985
        %v2987 = vlaneseq
        %v2988 = vshrl.u32 %v2987, 7
        %v2989 = vsub.s32 3, %v2988
        %v2990 = vrot.slane %v2973, %v2989
        %v2991 = vlaneseq
        %v2992 = vshrl.u32 %v2991, 7
        %v2993 = vsub.s32 4, %v2992
        %v2994 = vrot.slane %v2973, %v2993
        %v2995 = vlaneseq
        %v2996 = vshrl.u32 %v2995, 7
        %v2997 = vsub.s32 5, %v2996
        %v2998 = vrot.slane %v2973, %v2997
        %v2999 = vlaneseq
        %v3000 = vshrl.u32 %v2999, 7
        %v3001 = vsub.s32 6, %v3000
        %v3002 = vrot.slane %v2973, %v3001
        %v3266 = vunpack.c.l.b16 %v2717
        %v3267 = vunpack.c.h.b16 %v2717
        %v3268 = vunpack.c.l.b16 %v2718
        %v3269 = vunpack.c.h.b16 %v2718
        %v3270 = vunpack.c.l.b16 %v2719
        %v3271 = vunpack.c.h.b16 %v2719
        %v3272 = vunpack.c.l.b16 %v2720
        %v3273 = vunpack.c.l.b16 %v2721
        %v3274 = vunpack.c.h.b16 %v2721
        %v3275 = vunpack.c.l.b16 %v2722
        %v3276 = vunpack.c.h.b16 %v2722
        %v3277 = vunpack.c.l.b16 %v2723
        %v3278 = vunpack.c.h.b16 %v2723
        %v3279 = vunpack.c.l.b16 %v2724
        %v3280 = vunpack.c.l.b16 %v2725
        %v3281 = vunpack.c.h.b16 %v2725
        %v3282 = vunpack.c.l.b16 %v2726
        %v3283 = vunpack.c.h.b16 %v2726
        %v3284 = vunpack.c.l.b16 %v2727
        %v3285 = vunpack.c.h.b16 %v2727
        %v3286 = vunpack.c.l.b16 %v2728
        %v3287 = vunpack.c.l.b16 %v2729
        %v3288 = vunpack.c.h.b16 %v2729
        %v3289 = vunpack.c.l.b16 %v2730
        %v3290 = vunpack.c.h.b16 %v2730
        %v3291 = vunpack.c.l.b16 %v2731
        %v3292 = vunpack.c.h.b16 %v2731
        %v3293 = vunpack.c.l.b16 %v2732
        %v3294 = vunpack.c.l.b16 %v2733
        %v3295 = vunpack.c.h.b16 %v2733
        %v3296 = vunpack.c.l.b16 %v2734
        %v3297 = vunpack.c.h.b16 %v2734
        %v3298 = vunpack.c.l.b16 %v2735
        %v3299 = vunpack.c.h.b16 %v2735
        %v3300 = vunpack.c.l.b16 %v2736
        %v3301 = vunpack.c.l.b16 %v2737
        %v3302 = vunpack.c.h.b16 %v2737
        %v3303 = vunpack.c.l.b16 %v2738
        %v3304 = vunpack.c.h.b16 %v2738
        %v3305 = vunpack.c.l.b16 %v2739
        %v3306 = vunpack.c.h.b16 %v2739
        %v3307 = vunpack.c.l.b16 %v2740
        %v3308 = vunpack.c.l.b16 %v2741
        %v3309 = vunpack.c.h.b16 %v2741
        %v3310 = vunpack.c.l.b16 %v2742
        %v3311 = vunpack.c.h.b16 %v2742
        %v3312 = vunpack.c.l.b16 %v2743
        %v3313 = vunpack.c.h.b16 %v2743
        %v3314 = vunpack.c.l.b16 %v2744
        %v3315 = vunpack.c.l.b16 %v2745
        %v3316 = vunpack.c.h.b16 %v2745
        %v3317 = vunpack.c.l.b16 %v2746
        %v3318 = vunpack.c.h.b16 %v2746
        %v3319 = vunpack.c.l.b16 %v2747
        %v3320 = vunpack.c.h.b16 %v2747
        %v3321 = vunpack.c.l.b16 %v2748
        %v3322 = vunpack.c.l.b16 %v2749
        %v3323 = vunpack.c.h.b16 %v2749
        %v3324 = vunpack.c.l.b16 %v2750
        %v3325 = vunpack.c.h.b16 %v2750
        %v3326 = vunpack.c.l.b16 %v2751
        %v3327 = vunpack.c.h.b16 %v2751
        %v3328 = vunpack.c.l.b16 %v2752
        %v3329 = vunpack.c.l.b16 %v2753
        %v3330 = vunpack.c.h.b16 %v2753
        %v3331 = vunpack.c.l.b16 %v2754
        %v3332 = vunpack.c.h.b16 %v2754
        %v3333 = vunpack.c.l.b16 %v2755
        %v3334 = vunpack.c.h.b16 %v2755
        %v3335 = vunpack.c.l.b16 %v2756
        %v3336 = vunpack.c.l.b16 %v2757
        %v3337 = vunpack.c.h.b16 %v2757
        %v3338 = vunpack.c.l.b16 %v2758
        %v3339 = vunpack.c.h.b16 %v2758
        %v3340 = vunpack.c.l.b16 %v2759
        %v3341 = vunpack.c.h.b16 %v2759
        %v3342 = vunpack.c.l.b16 %v2760
        %v3343 = vunpack.c.l.b16 %v2761
        %v3344 = vunpack.c.h.b16 %v2761
        %v3345 = vunpack.c.l.b16 %v2762
        %v3346 = vunpack.c.h.b16 %v2762
        %v3347 = vunpack.c.l.b16 %v2763
        %v3348 = vunpack.c.h.b16 %v2763
        %v3349 = vunpack.c.l.b16 %v2764
        %v3350 = vunpack.c.l.b16 %v2765
        %v3351 = vunpack.c.h.b16 %v2765
        %v3352 = vunpack.c.l.b16 %v2766
        %v3353 = vunpack.c.h.b16 %v2766
        %v3354 = vunpack.c.l.b16 %v2767
        %v3355 = vunpack.c.h.b16 %v2767
        %v3356 = vunpack.c.l.b16 %v2768
        %v3357 = vunpack.c.l.b16 %v2769
        %v3358 = vunpack.c.h.b16 %v2769
        %v3359 = vunpack.c.l.b16 %v2770
        %v3360 = vunpack.c.h.b16 %v2770
        %v3361 = vunpack.c.l.b16 %v2771
        %v3362 = vunpack.c.h.b16 %v2771
        %v3363 = vunpack.c.l.b16 %v2772
        %v3364 = vunpack.c.l.b16 %v2773
        %v3365 = vunpack.c.h.b16 %v2773
        %v3366 = vunpack.c.l.b16 %v2774
        %v3367 = vunpack.c.h.b16 %v2774
        %v3368 = vunpack.c.l.b16 %v2775
        %v3369 = vunpack.c.h.b16 %v2775
        %v3370 = vunpack.c.l.b16 %v2776
        %v3371 = vunpack.c.l.b16 %v2777
        %v3372 = vunpack.c.h.b16 %v2777
        %v3373 = vunpack.c.l.b16 %v2778
        %v3374 = vunpack.c.h.b16 %v2778
        %v3375 = vunpack.c.l.b16 %v2779
        %v3376 = vunpack.c.h.b16 %v2779
        %v3377 = vunpack.c.l.b16 %v2780
        %v3378 = vunpack.c.l.b16 %v2781
        %v3379 = vunpack.c.h.b16 %v2781
        %v3380 = vunpack.c.l.b16 %v2782
        %v3381 = vunpack.c.h.b16 %v2782
        %v3382 = vunpack.c.l.b16 %v2783
        %v3383 = vunpack.c.h.b16 %v2783
        %v3384 = vunpack.c.l.b16 %v2784
        %v3385 = vunpack.c.l.b16 %v2785
        %v3386 = vunpack.c.h.b16 %v2785
        %v3387 = vunpack.c.l.b16 %v2786
        %v3388 = vunpack.c.h.b16 %v2786
        %v3389 = vunpack.c.l.b16 %v2787
        %v3390 = vunpack.c.h.b16 %v2787
        %v3391 = vunpack.c.l.b16 %v2788
        %v3392 = vunpack.c.l.b16 %v2789
        %v3393 = vunpack.c.h.b16 %v2789
        %v3394 = vunpack.c.l.b16 %v2790
        %v3395 = vunpack.c.h.b16 %v2790
        %v3396 = vunpack.c.l.b16 %v2791
        %v3397 = vunpack.c.h.b16 %v2791
        %v3398 = vunpack.c.l.b16 %v2792
        %v3399 = vunpack.c.l.b16 %v2793
        %v3400 = vunpack.c.h.b16 %v2793
        %v3401 = vunpack.c.l.b16 %v2794
        %v3402 = vunpack.c.h.b16 %v2794
        %v3403 = vunpack.c.l.b16 %v2795
        %v3404 = vunpack.c.h.b16 %v2795
        %v3405 = vunpack.c.l.b16 %v2796
        %v3406 = vunpack.c.l.b16 %v2797
        %v3407 = vunpack.c.h.b16 %v2797
        %v3408 = vunpack.c.l.b16 %v2798
        %v3409 = vunpack.c.h.b16 %v2798
        %v3410 = vunpack.c.l.b16 %v2799
        %v3411 = vunpack.c.h.b16 %v2799
        %v3412 = vunpack.c.l.b16 %v2800
        %v3413 = vunpack.c.l.b16 %v2801
        %v3414 = vunpack.c.h.b16 %v2801
        %v3415 = vunpack.c.l.b16 %v2802
        %v3416 = vunpack.c.h.b16 %v2802
        %v3417 = vunpack.c.l.b16 %v2803
        %v3418 = vunpack.c.h.b16 %v2803
        %v3419 = vunpack.c.l.b16 %v2804
        %v3420 = vunpack.c.l.b16 %v2805
        %v3421 = vunpack.c.h.b16 %v2805
        %v3422 = vunpack.c.l.b16 %v2806
        %v3423 = vunpack.c.h.b16 %v2806
        %v3424 = vunpack.c.l.b16 %v2807
        %v3425 = vunpack.c.h.b16 %v2807
        %v3426 = vunpack.c.l.b16 %v2808
        %v3427 = vunpack.c.l.b16 %v2809
        %v3428 = vunpack.c.h.b16 %v2809
        %v3429 = vunpack.c.l.b16 %v2810
        %v3430 = vunpack.c.h.b16 %v2810
        %v3431 = vunpack.c.l.b16 %v2811
        %v3432 = vunpack.c.h.b16 %v2811
        %v3433 = vunpack.c.l.b16 %v2812
        %v3434 = vunpack.c.l.b16 %v2813
        %v3435 = vunpack.c.h.b16 %v2813
        %v3436 = vunpack.c.l.b16 %v2814
        %v3437 = vunpack.c.h.b16 %v2814
        %v3438 = vunpack.c.l.b16 %v2815
        %v3439 = vunpack.c.h.b16 %v2815
        %v3440 = vunpack.c.l.b16 %v2816
        %v3441 = vunpack.c.l.b16 %v2817
        %v3442 = vunpack.c.h.b16 %v2817
        %v3443 = vunpack.c.l.b16 %v2818
        %v3444 = vunpack.c.h.b16 %v2818
        %v3445 = vunpack.c.l.b16 %v2819
        %v3446 = vunpack.c.h.b16 %v2819
        %v3447 = vunpack.c.l.b16 %v2820
        %v3448 = vunpack.c.l.b16 %v2821
        %v3449 = vunpack.c.h.b16 %v2821
        %v3450 = vunpack.c.l.b16 %v2822
        %v3451 = vunpack.c.h.b16 %v2822
        %v3452 = vunpack.c.l.b16 %v2823
        %v3453 = vunpack.c.h.b16 %v2823
        %v3454 = vunpack.c.l.b16 %v2824
        %v3455 = vunpack.c.l.b16 %v2825
        %v3456 = vunpack.c.h.b16 %v2825
        %v3457 = vunpack.c.l.b16 %v2826
        %v3458 = vunpack.c.h.b16 %v2826
        %v3459 = vunpack.c.l.b16 %v2827
        %v3460 = vunpack.c.h.b16 %v2827
        %v3461 = vunpack.c.l.b16 %v2828
        %v3462 = vunpack.c.l.b16 %v2829
        %v3463 = vunpack.c.h.b16 %v2829
        %v3464 = vunpack.c.l.b16 %v2830
        %v3465 = vunpack.c.h.b16 %v2830
        %v3466 = vunpack.c.l.b16 %v2831
        %v3467 = vunpack.c.h.b16 %v2831
        %v3468 = vunpack.c.l.b16 %v2832
        %v3469 = vunpack.c.l.b16 %v2833
        %v3470 = vunpack.c.h.b16 %v2833
        %v3471 = vunpack.c.l.b16 %v2834
        %v3472 = vunpack.c.h.b16 %v2834
        %v3473 = vunpack.c.l.b16 %v2835
        %v3474 = vunpack.c.h.b16 %v2835
        %v3475 = vunpack.c.l.b16 %v2836
        %v3476 = vunpack.c.l.b16 %v2837
        %v3477 = vunpack.c.h.b16 %v2837
        %v3478 = vunpack.c.l.b16 %v2838
        %v3479 = vunpack.c.h.b16 %v2838
        %v3480 = vunpack.c.l.b16 %v2839
        %v3481 = vunpack.c.h.b16 %v2839
        %v3482 = vunpack.c.l.b16 %v2840
        %v3483 = vunpack.c.l.b16 %v2841
        %v3484 = vunpack.c.h.b16 %v2841
        %v3485 = vunpack.c.l.b16 %v2842
        %v3486 = vunpack.c.h.b16 %v2842
        %v3487 = vunpack.c.l.b16 %v2843
        %v3488 = vunpack.c.h.b16 %v2843
        %v3489 = vunpack.c.l.b16 %v2844
        %v3490 = vunpack.c.l.b16 %v2845
        %v3491 = vunpack.c.h.b16 %v2845
        %v3492 = vunpack.c.l.b16 %v2846
        %v3493 = vunpack.c.h.b16 %v2846
        %v3494 = vunpack.c.l.b16 %v2847
        %v3495 = vunpack.c.h.b16 %v2847
        %v3496 = vunpack.c.l.b16 %v2848
        %v3497 = vunpack.c.l.b16 %v2849
        %v3498 = vunpack.c.h.b16 %v2849
        %v3499 = vunpack.c.l.b16 %v2850
        %v3500 = vunpack.c.h.b16 %v2850
        %v3501 = vunpack.c.l.b16 %v2851
        %v3502 = vunpack.c.h.b16 %v2851
        %v3503 = vunpack.c.l.b16 %v2852
        %v3504 = vunpack.c.l.b16 %v2853
        %v3505 = vunpack.c.h.b16 %v2853
        %v3506 = vunpack.c.l.b16 %v2854
        %v3507 = vunpack.c.h.b16 %v2854
        %v3508 = vunpack.c.l.b16 %v2855
        %v3509 = vunpack.c.h.b16 %v2855
        %v3510 = vunpack.c.l.b16 %v2856
        %v3511 = vunpack.c.l.b16 %v2857
        %v3512 = vunpack.c.h.b16 %v2857
        %v3513 = vunpack.c.l.b16 %v2858
        %v3514 = vunpack.c.h.b16 %v2858
        %v3515 = vunpack.c.l.b16 %v2859
        %v3516 = vunpack.c.h.b16 %v2859
        %v3517 = vunpack.c.l.b16 %v2860
        %v3518 = vunpack.c.l.b16 %v2861
        %v3519 = vunpack.c.h.b16 %v2861
        %v3520 = vunpack.c.l.b16 %v2862
        %v3521 = vunpack.c.h.b16 %v2862
        %v3522 = vunpack.c.l.b16 %v2863
        %v3523 = vunpack.c.h.b16 %v2863
        %v3524 = vunpack.c.l.b16 %v2864
        %v3525 = vunpack.c.l.b16 %v2865
        %v3526 = vunpack.c.h.b16 %v2865
        %v3527 = vunpack.c.l.b16 %v2866
        %v3528 = vunpack.c.h.b16 %v2866
        %v3529 = vunpack.c.l.b16 %v2867
        %v3530 = vunpack.c.h.b16 %v2867
        %v3531 = vunpack.c.l.b16 %v2868
        %v3532 = vunpack.c.l.b16 %v2869
        %v3533 = vunpack.c.h.b16 %v2869
        %v3534 = vunpack.c.l.b16 %v2870
        %v3535 = vunpack.c.h.b16 %v2870
        %v3536 = vunpack.c.l.b16 %v2871
        %v3537 = vunpack.c.h.b16 %v2871
        %v3538 = vunpack.c.l.b16 %v2872
        %v3539 = vunpack.c.l.b16 %v2873
        %v3540 = vunpack.c.h.b16 %v2873
        %v3541 = vunpack.c.l.b16 %v2874
        %v3542 = vunpack.c.h.b16 %v2874
        %v3543 = vunpack.c.l.b16 %v2875
        %v3544 = vunpack.c.h.b16 %v2875
        %v3545 = vunpack.c.l.b16 %v2876
        %v3546 = vunpack.c.l.b16 %v2877
        %v3547 = vunpack.c.h.b16 %v2877
        %v3548 = vunpack.c.l.b16 %v2878
        %v3549 = vunpack.c.h.b16 %v2878
        %v3550 = vunpack.c.l.b16 %v2879
        %v3551 = vunpack.c.h.b16 %v2879
        %v3552 = vunpack.c.l.b16 %v2880
        %v3553 = vunpack.c.l.b16 %v2881
        %v3554 = vunpack.c.h.b16 %v2881
        %v3555 = vunpack.c.l.b16 %v2882
        %v3556 = vunpack.c.h.b16 %v2882
        %v3557 = vunpack.c.l.b16 %v2883
        %v3558 = vunpack.c.h.b16 %v2883
        %v3559 = vunpack.c.l.b16 %v2884
        %v3560 = vunpack.c.l.b16 %v2885
        %v3561 = vunpack.c.h.b16 %v2885
        %v3562 = vunpack.c.l.b16 %v2886
        %v3563 = vunpack.c.h.b16 %v2886
        %v3564 = vunpack.c.l.b16 %v2887
        %v3565 = vunpack.c.h.b16 %v2887
        %v3566 = vunpack.c.l.b16 %v2888
        %v3567 = vunpack.c.l.b16 %v2889
        %v3568 = vunpack.c.h.b16 %v2889
        %v3569 = vunpack.c.l.b16 %v2890
        %v3570 = vunpack.c.h.b16 %v2890
        %v3571 = vunpack.c.l.b16 %v2891
        %v3572 = vunpack.c.h.b16 %v2891
        %v3573 = vunpack.c.l.b16 %v2892
        %v3574 = vunpack.c.l.b16 %v2893
        %v3575 = vunpack.c.h.b16 %v2893
        %v3576 = vunpack.c.l.b16 %v2894
        %v3577 = vunpack.c.h.b16 %v2894
        %v3578 = vunpack.c.l.b16 %v2895
        %v3579 = vunpack.c.h.b16 %v2895
        %v3580 = vunpack.c.l.b16 %v2896
        %v3581 = vunpack.c.l.b16 %v2897
        %v3582 = vunpack.c.h.b16 %v2897
        %v3583 = vunpack.c.l.b16 %v2898
        %v3584 = vunpack.c.h.b16 %v2898
        %v3585 = vunpack.c.l.b16 %v2899
        %v3586 = vunpack.c.h.b16 %v2899
        %v3587 = vunpack.c.l.b16 %v2900
        %v3588 = vunpack.c.l.b16 %v2901
        %v3589 = vunpack.c.h.b16 %v2901
        %v3590 = vunpack.c.l.b16 %v2902
        %v3591 = vunpack.c.h.b16 %v2902
        %v3592 = vunpack.c.l.b16 %v2903
        %v3593 = vunpack.c.h.b16 %v2903
        %v3594 = vunpack.c.l.b16 %v2904
        %v3595 = vunpack.c.l.b16 %v2905
        %v3596 = vunpack.c.h.b16 %v2905
        %v3597 = vunpack.c.l.b16 %v2906
        %v3598 = vunpack.c.h.b16 %v2906
        %v3599 = vunpack.c.l.b16 %v2907
        %v3600 = vunpack.c.h.b16 %v2907
        %v3601 = vunpack.c.l.b16 %v2908
        %v3602 = vunpack.c.l.b16 %v2909
        %v3603 = vunpack.c.h.b16 %v2909
        %v3604 = vunpack.c.l.b16 %v2910
        %v3605 = vunpack.c.h.b16 %v2910
        %v3606 = vunpack.c.l.b16 %v2911
        %v3607 = vunpack.c.h.b16 %v2911
        %v3608 = vunpack.c.l.b16 %v2912
        %v3609 = vunpack.c.l.b16 %v2913
        %v3610 = vunpack.c.h.b16 %v2913
        %v3611 = vunpack.c.l.b16 %v2914
        %v3612 = vunpack.c.h.b16 %v2914
        %v3613 = vunpack.c.l.b16 %v2915
        %v3614 = vunpack.c.h.b16 %v2915
        %v3615 = vunpack.c.l.b16 %v2916
        %v3616 = vunpack.c.l.b16 %v2917
        %v3617 = vunpack.c.h.b16 %v2917
        %v3618 = vunpack.c.l.b16 %v2918
        %v3619 = vunpack.c.h.b16 %v2918
        %v3620 = vunpack.c.l.b16 %v2919
        %v3621 = vunpack.c.h.b16 %v2919
        %v3622 = vunpack.c.l.b16 %v2920
        %v3623 = vunpack.c.l.b16 %v2921
        %v3624 = vunpack.c.h.b16 %v2921
        %v3625 = vunpack.c.l.b16 %v2922
        %v3626 = vunpack.c.h.b16 %v2922
        %v3627 = vunpack.c.l.b16 %v2923
        %v3628 = vunpack.c.h.b16 %v2923
        %v3629 = vunpack.c.l.b16 %v2924
        %v3630 = vunpack.c.l.b16 %v2925
        %v3631 = vunpack.c.h.b16 %v2925
        %v3632 = vunpack.c.l.b16 %v2926
        %v3633 = vunpack.c.h.b16 %v2926
        %v3634 = vunpack.c.l.b16 %v2927
        %v3635 = vunpack.c.h.b16 %v2927
        %v3636 = vunpack.c.l.b16 %v2928
        %v3637 = vunpack.c.l.b16 %v2929
        %v3638 = vunpack.c.h.b16 %v2929
        %v3639 = vunpack.c.l.b16 %v2930
        %v3640 = vunpack.c.h.b16 %v2930
        %v3641 = vunpack.c.l.b16 %v2931
        %v3642 = vunpack.c.h.b16 %v2931
        %v3643 = vunpack.c.l.b16 %v2932
        %v3644 = vunpack.c.l.b16 %v2933
        %v3645 = vunpack.c.h.b16 %v2933
        %v3646 = vunpack.c.l.b16 %v2934
        %v3647 = vunpack.c.h.b16 %v2934
        %v3648 = vunpack.c.l.b16 %v2935
        %v3649 = vunpack.c.h.b16 %v2935
        %v3650 = vunpack.c.l.b16 %v2936
        %v3651 = vunpack.c.l.b16 %v2937
        %v3652 = vunpack.c.h.b16 %v2937
        %v3653 = vunpack.c.l.b16 %v2938
        %v3654 = vunpack.c.h.b16 %v2938
        %v3655 = vunpack.c.l.b16 %v2939
        %v3656 = vunpack.c.h.b16 %v2939
        %v3657 = vunpack.c.l.b16 %v2940
        %v3658 = vunpack.c.l.b16 %v2941
        %v3659 = vunpack.c.h.b16 %v2941
        %v3660 = vunpack.c.l.b16 %v2942
        %v3661 = vunpack.c.h.b16 %v2942
        %v3662 = vunpack.c.l.b16 %v2943
        %v3663 = vunpack.c.h.b16 %v2943
        %v3664 = vunpack.c.l.b16 %v2944
        %v3665 = vunpack.c.l.b16 %v2945
        %v3666 = vunpack.c.h.b16 %v2945
        %v3667 = vunpack.c.l.b16 %v2946
        %v3668 = vunpack.c.h.b16 %v2946
        %v3669 = vunpack.c.l.b16 %v2947
        %v3670 = vunpack.c.h.b16 %v2947
        %v3671 = vunpack.c.l.b16 %v2948
        %v3672 = vunpack.c.l.b16 %v2949
        %v3673 = vunpack.c.h.b16 %v2949
        %v3674 = vunpack.c.l.b16 %v2950
        %v3675 = vunpack.c.h.b16 %v2950
        %v3676 = vunpack.c.l.b16 %v2951
        %v3677 = vunpack.c.h.b16 %v2951
        %v3678 = vunpack.c.l.b16 %v2952
        %v3679 = vunpack.c.l.b16 %v2953
        %v3680 = vunpack.c.h.b16 %v2953
        %v3681 = vunpack.c.l.b16 %v2954
        %v3682 = vunpack.c.h.b16 %v2954
        %v3683 = vunpack.c.l.b16 %v2955
        %v3684 = vunpack.c.h.b16 %v2955
        %v3685 = vunpack.c.l.b16 %v2956
        %v3686 = vunpack.c.l.b16 %v2957
        %v3687 = vunpack.c.h.b16 %v2957
        %v3688 = vunpack.c.l.b16 %v2958
        %v3689 = vunpack.c.h.b16 %v2958
        %v3690 = vunpack.c.l.b16 %v2959
        %v3691 = vunpack.c.h.b16 %v2959
        %v3692 = vunpack.c.l.b16 %v2960
        %v3693 = vunpack.c.l.b16 %v2961
        %v3694 = vunpack.c.h.b16 %v2961
        %v3695 = vunpack.c.l.b16 %v2962
        %v3696 = vunpack.c.h.b16 %v2962
        %v3697 = vunpack.c.l.b16 %v2963
        %v3698 = vunpack.c.h.b16 %v2963
        %v3699 = vunpack.c.l.b16 %v2964
        %v3700 = vunpack.c.l.b16 %v2965
        %v3701 = vunpack.c.h.b16 %v2965
        %v3702 = vunpack.c.l.b16 %v2966
        %v3703 = vunpack.c.h.b16 %v2966
        %v3704 = vunpack.c.l.b16 %v2967
        %v3705 = vunpack.c.h.b16 %v2967
        %v3706 = vunpack.c.l.b16 %v2968
        %v3707 = vunpack.c.l.b16 %v2969
        %v3708 = vunpack.c.h.b16 %v2969
        %v3709 = vunpack.c.l.b16 %v2970
        %v3710 = vunpack.c.h.b16 %v2970
        %v3711 = vunpack.c.l.b16 %v2971
        %v3712 = vunpack.c.h.b16 %v2971
        %v3713 = vunpack.c.l.b16 %v2972
        %v3714 = vpack.c.b16 %v3273, %v3266
        %v3715 = vpack.c.b16 %v3274, %v3267
        %v3716 = vpack.c.b16 %v3275, %v3268
        %v3717 = vpack.c.b16 %v3276, %v3269
        %v3718 = vpack.c.b16 %v3277, %v3270
        %v3719 = vpack.c.b16 %v3278, %v3271
        %v3720 = vpack.c.b16 %v3279, %v3272
        %v3721 = vpack.c.b16 %v3287, %v3280
        %v3722 = vpack.c.b16 %v3288, %v3281
        %v3723 = vpack.c.b16 %v3289, %v3282
        %v3724 = vpack.c.b16 %v3290, %v3283
        %v3725 = vpack.c.b16 %v3291, %v3284
        %v3726 = vpack.c.b16 %v3292, %v3285
        %v3727 = vpack.c.b16 %v3293, %v3286
        %v3728 = vpack.c.b16 %v3301, %v3294
        %v3729 = vpack.c.b16 %v3302, %v3295
        %v3730 = vpack.c.b16 %v3303, %v3296
        %v3731 = vpack.c.b16 %v3304, %v3297
        %v3732 = vpack.c.b16 %v3305, %v3298
        %v3733 = vpack.c.b16 %v3306, %v3299
        %v3734 = vpack.c.b16 %v3307, %v3300
        %v3735 = vpack.c.b16 %v3315, %v3308
        %v3736 = vpack.c.b16 %v3316, %v3309
        %v3737 = vpack.c.b16 %v3317, %v3310
        %v3738 = vpack.c.b16 %v3318, %v3311
        %v3739 = vpack.c.b16 %v3319, %v3312
        %v3740 = vpack.c.b16 %v3320, %v3313
        %v3741 = vpack.c.b16 %v3321, %v3314
        %v3742 = vpack.c.b16 %v3329, %v3322
        %v3743 = vpack.c.b16 %v3330, %v3323
        %v3744 = vpack.c.b16 %v3331, %v3324
        %v3745 = vpack.c.b16 %v3332, %v3325
        %v3746 = vpack.c.b16 %v3333, %v3326
        %v3747 = vpack.c.b16 %v3334, %v3327
        %v3748 = vpack.c.b16 %v3335, %v3328
        %v3749 = vpack.c.b16 %v3343, %v3336
        %v3750 = vpack.c.b16 %v3344, %v3337
        %v3751 = vpack.c.b16 %v3345, %v3338
        %v3752 = vpack.c.b16 %v3346, %v3339
        %v3753 = vpack.c.b16 %v3347, %v3340
        %v3754 = vpack.c.b16 %v3348, %v3341
        %v3755 = vpack.c.b16 %v3349, %v3342
        %v3756 = vpack.c.b16 %v3357, %v3350
        %v3757 = vpack.c.b16 %v3358, %v3351
        %v3758 = vpack.c.b16 %v3359, %v3352
        %v3759 = vpack.c.b16 %v3360, %v3353
        %v3760 = vpack.c.b16 %v3361, %v3354
        %v3761 = vpack.c.b16 %v3362, %v3355
        %v3762 = vpack.c.b16 %v3363, %v3356
        %v3763 = vpack.c.b16 %v3371, %v3364
        %v3764 = vpack.c.b16 %v3372, %v3365
        %v3765 = vpack.c.b16 %v3373, %v3366
        %v3766 = vpack.c.b16 %v3374, %v3367
        %v3767 = vpack.c.b16 %v3375, %v3368
        %v3768 = vpack.c.b16 %v3376, %v3369
        %v3769 = vpack.c.b16 %v3377, %v3370
        %v3770 = vpack.c.b16 %v3385, %v3378
        %v3771 = vpack.c.b16 %v3386, %v3379
        %v3772 = vpack.c.b16 %v3387, %v3380
        %v3773 = vpack.c.b16 %v3388, %v3381
        %v3774 = vpack.c.b16 %v3389, %v3382
        %v3775 = vpack.c.b16 %v3390, %v3383
        %v3776 = vpack.c.b16 %v3391, %v3384
        %v3777 = vpack.c.b16 %v3399, %v3392
        %v3778 = vpack.c.b16 %v3400, %v3393
        %v3779 = vpack.c.b16 %v3401, %v3394
        %v3780 = vpack.c.b16 %v3402, %v3395
        %v3781 = vpack.c.b16 %v3403, %v3396
        %v3782 = vpack.c.b16 %v3404, %v3397
        %v3783 = vpack.c.b16 %v3405, %v3398
        %v3784 = vpack.c.b16 %v3413, %v3406
        %v3785 = vpack.c.b16 %v3414, %v3407
        %v3786 = vpack.c.b16 %v3415, %v3408
        %v3787 = vpack.c.b16 %v3416, %v3409
        %v3788 = vpack.c.b16 %v3417, %v3410
        %v3789 = vpack.c.b16 %v3418, %v3411
        %v3790 = vpack.c.b16 %v3419, %v3412
        %v3791 = vpack.c.b16 %v3427, %v3420
        %v3792 = vpack.c.b16 %v3428, %v3421
        %v3793 = vpack.c.b16 %v3429, %v3422
        %v3794 = vpack.c.b16 %v3430, %v3423
        %v3795 = vpack.c.b16 %v3431, %v3424
        %v3796 = vpack.c.b16 %v3432, %v3425
        %v3797 = vpack.c.b16 %v3433, %v3426
        %v3798 = vpack.c.b16 %v3441, %v3434
        %v3799 = vpack.c.b16 %v3442, %v3435
        %v3800 = vpack.c.b16 %v3443, %v3436
        %v3801 = vpack.c.b16 %v3444, %v3437
        %v3802 = vpack.c.b16 %v3445, %v3438
        %v3803 = vpack.c.b16 %v3446, %v3439
        %v3804 = vpack.c.b16 %v3447, %v3440
        %v3805 = vpack.c.b16 %v3455, %v3448
        %v3806 = vpack.c.b16 %v3456, %v3449
        %v3807 = vpack.c.b16 %v3457, %v3450
        %v3808 = vpack.c.b16 %v3458, %v3451
        %v3809 = vpack.c.b16 %v3459, %v3452
        %v3810 = vpack.c.b16 %v3460, %v3453
        %v3811 = vpack.c.b16 %v3461, %v3454
        %v3812 = vpack.c.b16 %v3469, %v3462
        %v3813 = vpack.c.b16 %v3470, %v3463
        %v3814 = vpack.c.b16 %v3471, %v3464
        %v3815 = vpack.c.b16 %v3472, %v3465
        %v3816 = vpack.c.b16 %v3473, %v3466
        %v3817 = vpack.c.b16 %v3474, %v3467
        %v3818 = vpack.c.b16 %v3475, %v3468
        %v3819 = vpack.c.b16 %v3483, %v3476
        %v3820 = vpack.c.b16 %v3484, %v3477
        %v3821 = vpack.c.b16 %v3485, %v3478
        %v3822 = vpack.c.b16 %v3486, %v3479
        %v3823 = vpack.c.b16 %v3487, %v3480
        %v3824 = vpack.c.b16 %v3488, %v3481
        %v3825 = vpack.c.b16 %v3489, %v3482
        %v3826 = vpack.c.b16 %v3497, %v3490
        %v3827 = vpack.c.b16 %v3498, %v3491
        %v3828 = vpack.c.b16 %v3499, %v3492
        %v3829 = vpack.c.b16 %v3500, %v3493
        %v3830 = vpack.c.b16 %v3501, %v3494
        %v3831 = vpack.c.b16 %v3502, %v3495
        %v3832 = vpack.c.b16 %v3503, %v3496
        %v3833 = vpack.c.b16 %v3511, %v3504
        %v3834 = vpack.c.b16 %v3512, %v3505
        %v3835 = vpack.c.b16 %v3513, %v3506
        %v3836 = vpack.c.b16 %v3514, %v3507
        %v3837 = vpack.c.b16 %v3515, %v3508
        %v3838 = vpack.c.b16 %v3516, %v3509
        %v3839 = vpack.c.b16 %v3517, %v3510
        %v3840 = vpack.c.b16 %v3525, %v3518
        %v3841 = vpack.c.b16 %v3526, %v3519
        %v3842 = vpack.c.b16 %v3527, %v3520
        %v3843 = vpack.c.b16 %v3528, %v3521
        %v3844 = vpack.c.b16 %v3529, %v3522
        %v3845 = vpack.c.b16 %v3530, %v3523
        %v3846 = vpack.c.b16 %v3531, %v3524
        %v3847 = vpack.c.b16 %v3539, %v3532
        %v3848 = vpack.c.b16 %v3540, %v3533
        %v3849 = vpack.c.b16 %v3541, %v3534
        %v3850 = vpack.c.b16 %v3542, %v3535
        %v3851 = vpack.c.b16 %v3543, %v3536
        %v3852 = vpack.c.b16 %v3544, %v3537
        %v3853 = vpack.c.b16 %v3545, %v3538
        %v3854 = vpack.c.b16 %v3553, %v3546
        %v3855 = vpack.c.b16 %v3554, %v3547
        %v3856 = vpack.c.b16 %v3555, %v3548
        %v3857 = vpack.c.b16 %v3556, %v3549
        %v3858 = vpack.c.b16 %v3557, %v3550
        %v3859 = vpack.c.b16 %v3558, %v3551
        %v3860 = vpack.c.b16 %v3559, %v3552
        %v3861 = vpack.c.b16 %v3567, %v3560
        %v3862 = vpack.c.b16 %v3568, %v3561
        %v3863 = vpack.c.b16 %v3569, %v3562
        %v3864 = vpack.c.b16 %v3570, %v3563
        %v3865 = vpack.c.b16 %v3571, %v3564
        %v3866 = vpack.c.b16 %v3572, %v3565
        %v3867 = vpack.c.b16 %v3573, %v3566
        %v3868 = vpack.c.b16 %v3581, %v3574
        %v3869 = vpack.c.b16 %v3582, %v3575
        %v3870 = vpack.c.b16 %v3583, %v3576
        %v3871 = vpack.c.b16 %v3584, %v3577
        %v3872 = vpack.c.b16 %v3585, %v3578
        %v3873 = vpack.c.b16 %v3586, %v3579
        %v3874 = vpack.c.b16 %v3587, %v3580
        %v3875 = vpack.c.b16 %v3595, %v3588
        %v3876 = vpack.c.b16 %v3596, %v3589
        %v3877 = vpack.c.b16 %v3597, %v3590
        %v3878 = vpack.c.b16 %v3598, %v3591
        %v3879 = vpack.c.b16 %v3599, %v3592
        %v3880 = vpack.c.b16 %v3600, %v3593
        %v3881 = vpack.c.b16 %v3601, %v3594
        %v3882 = vpack.c.b16 %v3609, %v3602
        %v3883 = vpack.c.b16 %v3610, %v3603
        %v3884 = vpack.c.b16 %v3611, %v3604
        %v3885 = vpack.c.b16 %v3612, %v3605
        %v3886 = vpack.c.b16 %v3613, %v3606
        %v3887 = vpack.c.b16 %v3614, %v3607
        %v3888 = vpack.c.b16 %v3615, %v3608
        %v3889 = vpack.c.b16 %v3623, %v3616
        %v3890 = vpack.c.b16 %v3624, %v3617
        %v3891 = vpack.c.b16 %v3625, %v3618
        %v3892 = vpack.c.b16 %v3626, %v3619
        %v3893 = vpack.c.b16 %v3627, %v3620
        %v3894 = vpack.c.b16 %v3628, %v3621
        %v3895 = vpack.c.b16 %v3629, %v3622
        %v3896 = vpack.c.b16 %v3637, %v3630
        %v3897 = vpack.c.b16 %v3638, %v3631
        %v3898 = vpack.c.b16 %v3639, %v3632
        %v3899 = vpack.c.b16 %v3640, %v3633
        %v3900 = vpack.c.b16 %v3641, %v3634
        %v3901 = vpack.c.b16 %v3642, %v3635
        %v3902 = vpack.c.b16 %v3643, %v3636
        %v3903 = vpack.c.b16 %v3651, %v3644
        %v3904 = vpack.c.b16 %v3652, %v3645
        %v3905 = vpack.c.b16 %v3653, %v3646
        %v3906 = vpack.c.b16 %v3654, %v3647
        %v3907 = vpack.c.b16 %v3655, %v3648
        %v3908 = vpack.c.b16 %v3656, %v3649
        %v3909 = vpack.c.b16 %v3657, %v3650
        %v3910 = vpack.c.b16 %v3665, %v3658
        %v3911 = vpack.c.b16 %v3666, %v3659
        %v3912 = vpack.c.b16 %v3667, %v3660
        %v3913 = vpack.c.b16 %v3668, %v3661
        %v3914 = vpack.c.b16 %v3669, %v3662
        %v3915 = vpack.c.b16 %v3670, %v3663
        %v3916 = vpack.c.b16 %v3671, %v3664
        %v3917 = vpack.c.b16 %v3679, %v3672
        %v3918 = vpack.c.b16 %v3680, %v3673
        %v3919 = vpack.c.b16 %v3681, %v3674
        %v3920 = vpack.c.b16 %v3682, %v3675
        %v3921 = vpack.c.b16 %v3683, %v3676
        %v3922 = vpack.c.b16 %v3684, %v3677
        %v3923 = vpack.c.b16 %v3685, %v3678
        %v3924 = vpack.c.b16 %v3693, %v3686
        %v3925 = vpack.c.b16 %v3694, %v3687
        %v3926 = vpack.c.b16 %v3695, %v3688
        %v3927 = vpack.c.b16 %v3696, %v3689
        %v3928 = vpack.c.b16 %v3697, %v3690
        %v3929 = vpack.c.b16 %v3698, %v3691
        %v3930 = vpack.c.b16 %v3699, %v3692
        %v3931 = vpack.c.b16 %v3707, %v3700
        %v3932 = vpack.c.b16 %v3708, %v3701
        %v3933 = vpack.c.b16 %v3709, %v3702
        %v3934 = vpack.c.b16 %v3710, %v3703
        %v3935 = vpack.c.b16 %v3711, %v3704
        %v3936 = vpack.c.b16 %v3712, %v3705
        %v3937 = vpack.c.b16 %v3713, %v3706
        %4162 = vmatprep.subr.bf16.mxu0 %v3764
        %4163 = vmatpush1.bf16.msra.mxu0 %v3763
        %4164 = vmatprep.subr.bf16.mxu0 %v3757
        %4165 = vmatpush1.bf16.msra.mxu0 %v3756
        %4166 = vmatprep.subr.bf16.mxu0 %v3750
        %4167 = vmatpush1.bf16.msra.mxu0 %v3749
        %4168 = vmatprep.subr.bf16.mxu0 %v3743
        %4169 = vmatpush1.bf16.msra.mxu0 %v3742
        %4170 = vmatprep.subr.bf16.mxu0 %v3736
        %4171 = vmatpush1.bf16.msra.mxu0 %v3735
        %4172 = vmatprep.subr.bf16.mxu0 %v3729
        %4173 = vmatpush1.bf16.msra.mxu0 %v3728
        %4174 = vmatprep.subr.bf16.mxu0 %v3722
        %4175 = vmatpush1.bf16.msra.mxu0 %v3721
        %4176 = vmatprep.subr.bf16.mxu0 %v3715
        %4177 = vmatpush1.bf16.msra.mxu0 %v3714
        %4178 = vmatprep.subr.bf16.mxu0 %v3820
        %4179 = vmatpush2.bf16.msra.mxu0 %v3819
        %4180 = vmatprep.subr.bf16.mxu0 %v3813
        %4181 = vmatpush2.bf16.msra.mxu0 %v3812
        %4182 = vmatprep.subr.bf16.mxu0 %v3806
        %4183 = vmatpush2.bf16.msra.mxu0 %v3805
        %4184 = vmatprep.subr.bf16.mxu0 %v3799
        %4185 = vmatpush2.bf16.msra.mxu0 %v3798
        %4186 = vmatprep.subr.bf16.mxu0 %v3792
        %4187 = vmatpush2.bf16.msra.mxu0 %v3791
        %4188 = vmatprep.subr.bf16.mxu0 %v3785
        %4189 = vmatpush2.bf16.msra.mxu0 %v3784
        %4190 = vmatprep.subr.bf16.mxu0 %v3778
        %4191 = vmatpush2.bf16.msra.mxu0 %v3777
        %4192 = vmatprep.subr.bf16.mxu0 %v3771
        %4193 = vmatpush2.bf16.msra.mxu0 %v3770
        %4194 = vmatprep.mubr.bf16.mxu0 %v2710
        %4195 = vmatmul.mubr.bf16.gmra.mxu0 %v2709
        %v4196 = vpop.f32.mrf.mxu0
        %v4197 = vadd.f32 %v2978, %v4196
        %v4198 = vpop.f32.mrf.mxu0
        %v4199 = vadd.f32 %v2982, %v4198
        %v4200 = vpop.f32.mrf.mxu0
        %v4201 = vadd.f32 %v2978, %v4200
        %v4202 = vpop.f32.mrf.mxu0
        %v4203 = vadd.f32 %v2982, %v4202
        %4204 = vmatprep.mubr.bf16.mxu0 %v2714
        %4205 = vmatmul.mubr.bf16.gmra.mxu0 %v2713
        %v4206 = vpop.f32.mrf.mxu0
        %v4207 = vadd.f32 %v2978, %v4206
        %v4208 = vpop.f32.mrf.mxu0
        %v4209 = vadd.f32 %v2982, %v4208
        %v4210 = vpop.f32.mrf.mxu0
        %v4211 = vadd.f32 %v2978, %v4210
        %v4212 = vpop.f32.mrf.mxu0
        %v4213 = vadd.f32 %v2982, %v4212
        %4214 = vdwg.mxu0
        %4215 = vmatprep.subr.bf16.mxu0 %v3876
        %4216 = vmatpush1.bf16.msra.mxu0 %v3875
        %4217 = vmatprep.subr.bf16.mxu0 %v3869
        %4218 = vmatpush1.bf16.msra.mxu0 %v3868
        %4219 = vmatprep.subr.bf16.mxu0 %v3862
        %4220 = vmatpush1.bf16.msra.mxu0 %v3861
        %4221 = vmatprep.subr.bf16.mxu0 %v3855
        %4222 = vmatpush1.bf16.msra.mxu0 %v3854
        %4223 = vmatprep.subr.bf16.mxu0 %v3848
        %4224 = vmatpush1.bf16.msra.mxu0 %v3847
        %4225 = vmatprep.subr.bf16.mxu0 %v3841
        %4226 = vmatpush1.bf16.msra.mxu0 %v3840
        %4227 = vmatprep.subr.bf16.mxu0 %v3834
        %4228 = vmatpush1.bf16.msra.mxu0 %v3833
        %4229 = vmatprep.subr.bf16.mxu0 %v3827
        %4230 = vmatpush1.bf16.msra.mxu0 %v3826
        %4231 = vmatprep.subr.bf16.mxu0 %v3932
        %4232 = vmatpush2.bf16.msra.mxu0 %v3931
        %4233 = vmatprep.subr.bf16.mxu0 %v3925
        %4234 = vmatpush2.bf16.msra.mxu0 %v3924
        %4235 = vmatprep.subr.bf16.mxu0 %v3918
        %4236 = vmatpush2.bf16.msra.mxu0 %v3917
        %4237 = vmatprep.subr.bf16.mxu0 %v3911
        %4238 = vmatpush2.bf16.msra.mxu0 %v3910
        %4239 = vmatprep.subr.bf16.mxu0 %v3904
        %4240 = vmatpush2.bf16.msra.mxu0 %v3903
        %4241 = vmatprep.subr.bf16.mxu0 %v3897
        %4242 = vmatpush2.bf16.msra.mxu0 %v3896
        %4243 = vmatprep.subr.bf16.mxu0 %v3890
        %4244 = vmatpush2.bf16.msra.mxu0 %v3889
        %4245 = vmatprep.subr.bf16.mxu0 %v3883
        %4246 = vmatpush2.bf16.msra.mxu0 %v3882
        %4247 = vmatprep.mubr.bf16.mxu0 %v2712
        %4248 = vmatmul.mubr.bf16.gmra.mxu0 %v2711
        %v4249 = vpop.f32.mrf.mxu0
        %v4250 = vadd.f32 %v4197, %v4249
        %v4251 = vpop.f32.mrf.mxu0
        %v4252 = vadd.f32 %v4199, %v4251
        %v4253 = vpop.f32.mrf.mxu0
        %v4254 = vadd.f32 %v4201, %v4253
        %v4255 = vpop.f32.mrf.mxu0
        %v4256 = vadd.f32 %v4203, %v4255
        %4257 = vmatprep.mubr.bf16.mxu0 %v2716
        %4258 = vmatmul.mubr.bf16.gmra.mxu0 %v2715
        %v4259 = vpop.f32.mrf.mxu0
        %v4260 = vadd.f32 %v4207, %v4259
        %v4261 = vpop.f32.mrf.mxu0
        %v4262 = vadd.f32 %v4209, %v4261
        %v4263 = vpop.f32.mrf.mxu0
        %v4264 = vadd.f32 %v4211, %v4263
        %v4265 = vpop.f32.mrf.mxu0
        %v4266 = vadd.f32 %v4213, %v4265
        %4267 = vdwg.mxu0
        %4268 = vmatprep.subr.bf16.mxu0 %v3766
        %4269 = vmatpush1.bf16.msra.mxu0 %v3765
        %4270 = vmatprep.subr.bf16.mxu0 %v3759
        %4271 = vmatpush1.bf16.msra.mxu0 %v3758
        %4272 = vmatprep.subr.bf16.mxu0 %v3752
        %4273 = vmatpush1.bf16.msra.mxu0 %v3751
        %4274 = vmatprep.subr.bf16.mxu0 %v3745
        %4275 = vmatpush1.bf16.msra.mxu0 %v3744
        %4276 = vmatprep.subr.bf16.mxu0 %v3738
        %4277 = vmatpush1.bf16.msra.mxu0 %v3737
        %4278 = vmatprep.subr.bf16.mxu0 %v3731
        %4279 = vmatpush1.bf16.msra.mxu0 %v3730
        %4280 = vmatprep.subr.bf16.mxu0 %v3724
        %4281 = vmatpush1.bf16.msra.mxu0 %v3723
        %4282 = vmatprep.subr.bf16.mxu0 %v3717
        %4283 = vmatpush1.bf16.msra.mxu0 %v3716
        %4284 = vmatprep.subr.bf16.mxu0 %v3822
        %4285 = vmatpush2.bf16.msra.mxu0 %v3821
        %4286 = vmatprep.subr.bf16.mxu0 %v3815
        %4287 = vmatpush2.bf16.msra.mxu0 %v3814
        %4288 = vmatprep.subr.bf16.mxu0 %v3808
        %4289 = vmatpush2.bf16.msra.mxu0 %v3807
        %4290 = vmatprep.subr.bf16.mxu0 %v3801
        %4291 = vmatpush2.bf16.msra.mxu0 %v3800
        %4292 = vmatprep.subr.bf16.mxu0 %v3794
        %4293 = vmatpush2.bf16.msra.mxu0 %v3793
        %4294 = vmatprep.subr.bf16.mxu0 %v3787
        %4295 = vmatpush2.bf16.msra.mxu0 %v3786
        %4296 = vmatprep.subr.bf16.mxu0 %v3780
        %4297 = vmatpush2.bf16.msra.mxu0 %v3779
        %4298 = vmatprep.subr.bf16.mxu0 %v3773
        %4299 = vmatpush2.bf16.msra.mxu0 %v3772
        %4300 = vmatprep.mubr.bf16.mxu0 %v2710
        %4301 = vmatmul.mubr.bf16.gmra.mxu0 %v2709
        %v4302 = vpop.f32.mrf.mxu0
        %v4303 = vadd.f32 %v2986, %v4302
        %v4304 = vpop.f32.mrf.mxu0
        %v4305 = vadd.f32 %v2990, %v4304
        %v4306 = vpop.f32.mrf.mxu0
        %v4307 = vadd.f32 %v2986, %v4306
        %v4308 = vpop.f32.mrf.mxu0
        %v4309 = vadd.f32 %v2990, %v4308
        %4310 = vmatprep.mubr.bf16.mxu0 %v2714
        %4311 = vmatmul.mubr.bf16.gmra.mxu0 %v2713
        %v4312 = vpop.f32.mrf.mxu0
        %v4313 = vadd.f32 %v2986, %v4312
        %v4314 = vpop.f32.mrf.mxu0
        %v4315 = vadd.f32 %v2990, %v4314
        %v4316 = vpop.f32.mrf.mxu0
        %v4317 = vadd.f32 %v2986, %v4316
        %v4318 = vpop.f32.mrf.mxu0
        %v4319 = vadd.f32 %v2990, %v4318
        %4320 = vdwg.mxu0
        %4321 = vmatprep.subr.bf16.mxu0 %v3878
        %4322 = vmatpush1.bf16.msra.mxu0 %v3877
        %4323 = vmatprep.subr.bf16.mxu0 %v3871
        %4324 = vmatpush1.bf16.msra.mxu0 %v3870
        %4325 = vmatprep.subr.bf16.mxu0 %v3864
        %4326 = vmatpush1.bf16.msra.mxu0 %v3863
        %4327 = vmatprep.subr.bf16.mxu0 %v3857
        %4328 = vmatpush1.bf16.msra.mxu0 %v3856
        %4329 = vmatprep.subr.bf16.mxu0 %v3850
        %4330 = vmatpush1.bf16.msra.mxu0 %v3849
        %4331 = vmatprep.subr.bf16.mxu0 %v3843
        %4332 = vmatpush1.bf16.msra.mxu0 %v3842
        %4333 = vmatprep.subr.bf16.mxu0 %v3836
        %4334 = vmatpush1.bf16.msra.mxu0 %v3835
        %4335 = vmatprep.subr.bf16.mxu0 %v3829
        %4336 = vmatpush1.bf16.msra.mxu0 %v3828
        %4337 = vmatprep.subr.bf16.mxu0 %v3934
        %4338 = vmatpush2.bf16.msra.mxu0 %v3933
        %4339 = vmatprep.subr.bf16.mxu0 %v3927
        %4340 = vmatpush2.bf16.msra.mxu0 %v3926
        %4341 = vmatprep.subr.bf16.mxu0 %v3920
        %4342 = vmatpush2.bf16.msra.mxu0 %v3919
        %4343 = vmatprep.subr.bf16.mxu0 %v3913
        %4344 = vmatpush2.bf16.msra.mxu0 %v3912
        %4345 = vmatprep.subr.bf16.mxu0 %v3906
        %4346 = vmatpush2.bf16.msra.mxu0 %v3905
        %4347 = vmatprep.subr.bf16.mxu0 %v3899
        %4348 = vmatpush2.bf16.msra.mxu0 %v3898
        %4349 = vmatprep.subr.bf16.mxu0 %v3892
        %4350 = vmatpush2.bf16.msra.mxu0 %v3891
        %4351 = vmatprep.subr.bf16.mxu0 %v3885
        %4352 = vmatpush2.bf16.msra.mxu0 %v3884
        %4353 = vmatprep.mubr.bf16.mxu0 %v2712
        %4354 = vmatmul.mubr.bf16.gmra.mxu0 %v2711
        %v4355 = vpop.f32.mrf.mxu0
        %v4356 = vadd.f32 %v4303, %v4355
        %v4357 = vpop.f32.mrf.mxu0
        %v4358 = vadd.f32 %v4305, %v4357
        %v4359 = vpop.f32.mrf.mxu0
        %v4360 = vadd.f32 %v4307, %v4359
        %v4361 = vpop.f32.mrf.mxu0
        %v4362 = vadd.f32 %v4309, %v4361
        %4363 = vmatprep.mubr.bf16.mxu0 %v2716
        %4364 = vmatmul.mubr.bf16.gmra.mxu0 %v2715
        %v4365 = vpop.f32.mrf.mxu0
        %v4366 = vadd.f32 %v4313, %v4365
        %v4367 = vpop.f32.mrf.mxu0
        %v4368 = vadd.f32 %v4315, %v4367
        %v4369 = vpop.f32.mrf.mxu0
        %v4370 = vadd.f32 %v4317, %v4369
        %v4371 = vpop.f32.mrf.mxu0
        %v4372 = vadd.f32 %v4319, %v4371
        %4373 = vdwg.mxu0
        %4374 = vmatprep.subr.bf16.mxu0 %v3768
        %4375 = vmatpush1.bf16.msra.mxu0 %v3767
        %4376 = vmatprep.subr.bf16.mxu0 %v3761
        %4377 = vmatpush1.bf16.msra.mxu0 %v3760
        %4378 = vmatprep.subr.bf16.mxu0 %v3754
        %4379 = vmatpush1.bf16.msra.mxu0 %v3753
        %4380 = vmatprep.subr.bf16.mxu0 %v3747
        %4381 = vmatpush1.bf16.msra.mxu0 %v3746
        %4382 = vmatprep.subr.bf16.mxu0 %v3740
        %4383 = vmatpush1.bf16.msra.mxu0 %v3739
        %4384 = vmatprep.subr.bf16.mxu0 %v3733
        %4385 = vmatpush1.bf16.msra.mxu0 %v3732
        %4386 = vmatprep.subr.bf16.mxu0 %v3726
        %4387 = vmatpush1.bf16.msra.mxu0 %v3725
        %4388 = vmatprep.subr.bf16.mxu0 %v3719
        %4389 = vmatpush1.bf16.msra.mxu0 %v3718
        %4390 = vmatprep.subr.bf16.mxu0 %v3824
        %4391 = vmatpush2.bf16.msra.mxu0 %v3823
        %4392 = vmatprep.subr.bf16.mxu0 %v3817
        %4393 = vmatpush2.bf16.msra.mxu0 %v3816
        %4394 = vmatprep.subr.bf16.mxu0 %v3810
        %4395 = vmatpush2.bf16.msra.mxu0 %v3809
        %4396 = vmatprep.subr.bf16.mxu0 %v3803
        %4397 = vmatpush2.bf16.msra.mxu0 %v3802
        %4398 = vmatprep.subr.bf16.mxu0 %v3796
        %4399 = vmatpush2.bf16.msra.mxu0 %v3795
        %4400 = vmatprep.subr.bf16.mxu0 %v3789
        %4401 = vmatpush2.bf16.msra.mxu0 %v3788
        %4402 = vmatprep.subr.bf16.mxu0 %v3782
        %4403 = vmatpush2.bf16.msra.mxu0 %v3781
        %4404 = vmatprep.subr.bf16.mxu0 %v3775
        %4405 = vmatpush2.bf16.msra.mxu0 %v3774
        %4406 = vmatprep.mubr.bf16.mxu0 %v2710
        %4407 = vmatmul.mubr.bf16.gmra.mxu0 %v2709
        %v4408 = vpop.f32.mrf.mxu0
        %v4409 = vadd.f32 %v2994, %v4408
        %v4410 = vpop.f32.mrf.mxu0
        %v4411 = vadd.f32 %v2998, %v4410
        %v4412 = vpop.f32.mrf.mxu0
        %v4413 = vadd.f32 %v2994, %v4412
        %v4414 = vpop.f32.mrf.mxu0
        %v4415 = vadd.f32 %v2998, %v4414
        %4416 = vmatprep.mubr.bf16.mxu0 %v2714
        %4417 = vmatmul.mubr.bf16.gmra.mxu0 %v2713
        %v4418 = vpop.f32.mrf.mxu0
        %v4419 = vadd.f32 %v2994, %v4418
        %v4420 = vpop.f32.mrf.mxu0
        %v4421 = vadd.f32 %v2998, %v4420
        %v4422 = vpop.f32.mrf.mxu0
        %v4423 = vadd.f32 %v2994, %v4422
        %v4424 = vpop.f32.mrf.mxu0
        %v4425 = vadd.f32 %v2998, %v4424
        %4426 = vdwg.mxu0
        %4427 = vmatprep.subr.bf16.mxu0 %v3880
        %4428 = vmatpush1.bf16.msra.mxu0 %v3879
        %4429 = vmatprep.subr.bf16.mxu0 %v3873
        %4430 = vmatpush1.bf16.msra.mxu0 %v3872
        %4431 = vmatprep.subr.bf16.mxu0 %v3866
        %4432 = vmatpush1.bf16.msra.mxu0 %v3865
        %4433 = vmatprep.subr.bf16.mxu0 %v3859
        %4434 = vmatpush1.bf16.msra.mxu0 %v3858
        %4435 = vmatprep.subr.bf16.mxu0 %v3852
        %4436 = vmatpush1.bf16.msra.mxu0 %v3851
        %4437 = vmatprep.subr.bf16.mxu0 %v3845
        %4438 = vmatpush1.bf16.msra.mxu0 %v3844
        %4439 = vmatprep.subr.bf16.mxu0 %v3838
        %4440 = vmatpush1.bf16.msra.mxu0 %v3837
        %4441 = vmatprep.subr.bf16.mxu0 %v3831
        %4442 = vmatpush1.bf16.msra.mxu0 %v3830
        %4443 = vmatprep.subr.bf16.mxu0 %v3936
        %4444 = vmatpush2.bf16.msra.mxu0 %v3935
        %4445 = vmatprep.subr.bf16.mxu0 %v3929
        %4446 = vmatpush2.bf16.msra.mxu0 %v3928
        %4447 = vmatprep.subr.bf16.mxu0 %v3922
        %4448 = vmatpush2.bf16.msra.mxu0 %v3921
        %4449 = vmatprep.subr.bf16.mxu0 %v3915
        %4450 = vmatpush2.bf16.msra.mxu0 %v3914
        %4451 = vmatprep.subr.bf16.mxu0 %v3908
        %4452 = vmatpush2.bf16.msra.mxu0 %v3907
        %4453 = vmatprep.subr.bf16.mxu0 %v3901
        %4454 = vmatpush2.bf16.msra.mxu0 %v3900
        %4455 = vmatprep.subr.bf16.mxu0 %v3894
        %4456 = vmatpush2.bf16.msra.mxu0 %v3893
        %4457 = vmatprep.subr.bf16.mxu0 %v3887
        %4458 = vmatpush2.bf16.msra.mxu0 %v3886
        %4459 = vmatprep.mubr.bf16.mxu0 %v2712
        %4460 = vmatmul.mubr.bf16.gmra.mxu0 %v2711
        %v4461 = vpop.f32.mrf.mxu0
        %v4462 = vadd.f32 %v4409, %v4461
        %v4463 = vpop.f32.mrf.mxu0
        %v4464 = vadd.f32 %v4411, %v4463
        %v4465 = vpop.f32.mrf.mxu0
        %v4466 = vadd.f32 %v4413, %v4465
        %v4467 = vpop.f32.mrf.mxu0
        %v4468 = vadd.f32 %v4415, %v4467
        %4469 = vmatprep.mubr.bf16.mxu0 %v2716
        %4470 = vmatmul.mubr.bf16.gmra.mxu0 %v2715
        %v4471 = vpop.f32.mrf.mxu0
        %v4472 = vadd.f32 %v4419, %v4471
        %v4473 = vpop.f32.mrf.mxu0
        %v4474 = vadd.f32 %v4421, %v4473
        %v4475 = vpop.f32.mrf.mxu0
        %v4476 = vadd.f32 %v4423, %v4475
        %v4477 = vpop.f32.mrf.mxu0
        %v4478 = vadd.f32 %v4425, %v4477
        %4479 = vdwg.mxu0
        %4480 = vmatprep.subr.bf16.mxu0 0
        %4481 = vmatpush1.bf16.msra.mxu0 %v3769
        %4482 = vmatprep.subr.bf16.mxu0 0
        %4483 = vmatpush1.bf16.msra.mxu0 %v3762
        %4484 = vmatprep.subr.bf16.mxu0 0
        %4485 = vmatpush1.bf16.msra.mxu0 %v3755
        %4486 = vmatprep.subr.bf16.mxu0 0
        %4487 = vmatpush1.bf16.msra.mxu0 %v3748
        %4488 = vmatprep.subr.bf16.mxu0 0
        %4489 = vmatpush1.bf16.msra.mxu0 %v3741
        %4490 = vmatprep.subr.bf16.mxu0 0
        %4491 = vmatpush1.bf16.msra.mxu0 %v3734
        %4492 = vmatprep.subr.bf16.mxu0 0
        %4493 = vmatpush1.bf16.msra.mxu0 %v3727
        %4494 = vmatprep.subr.bf16.mxu0 0
        %4495 = vmatpush1.bf16.msra.mxu0 %v3720
        %4496 = vmatprep.subr.bf16.mxu0 0
        %4497 = vmatpush2.bf16.msra.mxu0 %v3825
        %4498 = vmatprep.subr.bf16.mxu0 0
        %4499 = vmatpush2.bf16.msra.mxu0 %v3818
        %4500 = vmatprep.subr.bf16.mxu0 0
        %4501 = vmatpush2.bf16.msra.mxu0 %v3811
        %4502 = vmatprep.subr.bf16.mxu0 0
        %4503 = vmatpush2.bf16.msra.mxu0 %v3804
        %4504 = vmatprep.subr.bf16.mxu0 0
        %4505 = vmatpush2.bf16.msra.mxu0 %v3797
        %4506 = vmatprep.subr.bf16.mxu0 0
        %4507 = vmatpush2.bf16.msra.mxu0 %v3790
        %4508 = vmatprep.subr.bf16.mxu0 0
        %4509 = vmatpush2.bf16.msra.mxu0 %v3783
        %4510 = vmatprep.subr.bf16.mxu0 0
        %4511 = vmatpush2.bf16.msra.mxu0 %v3776
        %4512 = vmatprep.mubr.bf16.mxu0 %v2710
        %4513 = vmatmul.mubr.bf16.gmra.mxu0 %v2709
        %v4514 = vpop.f32.mrf.mxu0
        %v4515 = vadd.f32 %v3002, %v4514
        %v4516 = vpop.f32.mrf.mxu0
        %v4517 = vpop.f32.mrf.mxu0
        %v4518 = vadd.f32 %v3002, %v4517
        %v4519 = vpop.f32.mrf.mxu0
        %4520 = vmatprep.mubr.bf16.mxu0 %v2714
        %4521 = vmatmul.mubr.bf16.gmra.mxu0 %v2713
        %v4522 = vpop.f32.mrf.mxu0
        %v4523 = vadd.f32 %v3002, %v4522
        %v4524 = vpop.f32.mrf.mxu0
        %v4525 = vpop.f32.mrf.mxu0
        %v4526 = vadd.f32 %v3002, %v4525
        %v4527 = vpop.f32.mrf.mxu0
        %4528 = vdwg.mxu0
        %4529 = vmatprep.subr.bf16.mxu0 0
        %4530 = vmatpush1.bf16.msra.mxu0 %v3881
        %4531 = vmatprep.subr.bf16.mxu0 0
        %4532 = vmatpush1.bf16.msra.mxu0 %v3874
        %4533 = vmatprep.subr.bf16.mxu0 0
        %4534 = vmatpush1.bf16.msra.mxu0 %v3867
        %4535 = vmatprep.subr.bf16.mxu0 0
        %4536 = vmatpush1.bf16.msra.mxu0 %v3860
        %4537 = vmatprep.subr.bf16.mxu0 0
        %4538 = vmatpush1.bf16.msra.mxu0 %v3853
        %4539 = vmatprep.subr.bf16.mxu0 0
        %4540 = vmatpush1.bf16.msra.mxu0 %v3846
        %4541 = vmatprep.subr.bf16.mxu0 0
        %4542 = vmatpush1.bf16.msra.mxu0 %v3839
        %4543 = vmatprep.subr.bf16.mxu0 0
        %4544 = vmatpush1.bf16.msra.mxu0 %v3832
        %4545 = vmatprep.subr.bf16.mxu0 0
        %4546 = vmatpush2.bf16.msra.mxu0 %v3937
        %4547 = vmatprep.subr.bf16.mxu0 0
        %4548 = vmatpush2.bf16.msra.mxu0 %v3930
        %4549 = vmatprep.subr.bf16.mxu0 0
        %4550 = vmatpush2.bf16.msra.mxu0 %v3923
        %4551 = vmatprep.subr.bf16.mxu0 0
        %4552 = vmatpush2.bf16.msra.mxu0 %v3916
        %4553 = vmatprep.subr.bf16.mxu0 0
        %4554 = vmatpush2.bf16.msra.mxu0 %v3909
        %4555 = vmatprep.subr.bf16.mxu0 0
        %4556 = vmatpush2.bf16.msra.mxu0 %v3902
        %4557 = vmatprep.subr.bf16.mxu0 0
        %4558 = vmatpush2.bf16.msra.mxu0 %v3895
        %4559 = vmatprep.subr.bf16.mxu0 0
        %4560 = vmatpush2.bf16.msra.mxu0 %v3888
        %4561 = vmatprep.mubr.bf16.mxu0 %v2712
        %4562 = vmatmul.mubr.bf16.gmra.mxu0 %v2711
        %v4563 = vpop.f32.mrf.mxu0
        %v4564 = vadd.f32 %v4515, %v4563
        %v4565 = vpop.f32.mrf.mxu0
        %v4566 = vpop.f32.mrf.mxu0
        %v4567 = vadd.f32 %v4518, %v4566
        %v4568 = vpop.f32.mrf.mxu0
        %4569 = vmatprep.mubr.bf16.mxu0 %v2716
        %4570 = vmatmul.mubr.bf16.gmra.mxu0 %v2715
        %v4571 = vpop.f32.mrf.mxu0
        %v4572 = vadd.f32 %v4523, %v4571
        %v4573 = vpop.f32.mrf.mxu0
        %v4574 = vpop.f32.mrf.mxu0
        %v4575 = vadd.f32 %v4526, %v4574
        %v4576 = vpop.f32.mrf.mxu0
        %4577 = vdwg.mxu0
        %v4578 = vxor.u32 %v4250, 2147483648
        %v4579 = vxor.u32 %v4252, 2147483648
        %v4580 = vxor.u32 %v4356, 2147483648
        %v4581 = vxor.u32 %v4358, 2147483648
        %v4582 = vxor.u32 %v4462, 2147483648
        %v4583 = vxor.u32 %v4464, 2147483648
        %v4584 = vxor.u32 %v4564, 2147483648
        %v4585 = vxor.u32 %v4254, 2147483648
        %v4586 = vxor.u32 %v4256, 2147483648
        %v4587 = vxor.u32 %v4360, 2147483648
        %v4588 = vxor.u32 %v4362, 2147483648
        %v4589 = vxor.u32 %v4466, 2147483648
        %v4590 = vxor.u32 %v4468, 2147483648
        %v4591 = vxor.u32 %v4567, 2147483648
        %v4592 = vxor.u32 %v4260, 2147483648
        %v4593 = vxor.u32 %v4262, 2147483648
        %v4594 = vxor.u32 %v4366, 2147483648
        %v4595 = vxor.u32 %v4368, 2147483648
        %v4596 = vxor.u32 %v4472, 2147483648
        %v4597 = vxor.u32 %v4474, 2147483648
        %v4598 = vxor.u32 %v4572, 2147483648
        %v4599 = vxor.u32 %v4264, 2147483648
        %v4600 = vxor.u32 %v4266, 2147483648
        %v4601 = vxor.u32 %v4370, 2147483648
        %v4602 = vxor.u32 %v4372, 2147483648
        %v4603 = vxor.u32 %v4476, 2147483648
        %v4604 = vxor.u32 %v4478, 2147483648
        %v4605 = vxor.u32 %v4575, 2147483648
        %v4606 = vmul.f32 %v4578, 1.442695
        %v4607 = vpow.pop %v4606
        %v4608 = vmul.f32 %v4579, 1.442695
        %v4609 = vpow.pop %v4608
        %v4610 = vmul.f32 %v4580, 1.442695
        %v4611 = vpow.pop %v4610
        %v4612 = vmul.f32 %v4581, 1.442695
        %v4613 = vpow.pop %v4612
        %v4614 = vmul.f32 %v4582, 1.442695
        %v4615 = vpow.pop %v4614
        %v4616 = vmul.f32 %v4583, 1.442695
        %v4617 = vpow.pop %v4616
        %v4618 = vmul.f32 %v4584, 1.442695
        %v4619 = vpow.pop %v4618
        %v4620 = vmul.f32 %v4585, 1.442695
        %v4621 = vpow.pop %v4620
        %v4622 = vmul.f32 %v4586, 1.442695
        %v4623 = vpow.pop %v4622
        %v4624 = vmul.f32 %v4587, 1.442695
        %v4625 = vpow.pop %v4624
        %v4626 = vmul.f32 %v4588, 1.442695
        %v4627 = vpow.pop %v4626
        %v4628 = vmul.f32 %v4589, 1.442695
        %v4629 = vpow.pop %v4628
        %v4630 = vmul.f32 %v4590, 1.442695
        %v4631 = vpow.pop %v4630
        %v4632 = vmul.f32 %v4591, 1.442695
        %v4633 = vpow.pop %v4632
        %v4634 = vmul.f32 %v4592, 1.442695
        %v4635 = vpow.pop %v4634
        %v4636 = vmul.f32 %v4593, 1.442695
        %v4637 = vpow.pop %v4636
        %v4638 = vmul.f32 %v4594, 1.442695
        %v4639 = vpow.pop %v4638
        %v4640 = vmul.f32 %v4595, 1.442695
        %v4641 = vpow.pop %v4640
        %v4642 = vmul.f32 %v4596, 1.442695
        %v4643 = vpow.pop %v4642
        %v4644 = vmul.f32 %v4597, 1.442695
        %v4645 = vpow.pop %v4644
        %v4646 = vmul.f32 %v4598, 1.442695
        %v4647 = vpow.pop %v4646
        %v4648 = vmul.f32 %v4599, 1.442695
        %v4649 = vpow.pop %v4648
        %v4650 = vmul.f32 %v4600, 1.442695
        %v4651 = vpow.pop %v4650
        %v4652 = vmul.f32 %v4601, 1.442695
        %v4653 = vpow.pop %v4652
        %v4654 = vmul.f32 %v4602, 1.442695
        %v4655 = vpow.pop %v4654
        %v4656 = vmul.f32 %v4603, 1.442695
        %v4657 = vpow.pop %v4656
        %v4658 = vmul.f32 %v4604, 1.442695
        %v4659 = vpow.pop %v4658
        %v4660 = vmul.f32 %v4605, 1.442695
        %v4661 = vpow.pop %v4660
        %v4662 = vadd.f32 %v4607, 1.0
        %v4663 = vadd.f32 %v4609, 1.0
        %v4664 = vadd.f32 %v4611, 1.0
        %v4665 = vadd.f32 %v4613, 1.0
        %v4666 = vadd.f32 %v4615, 1.0
        %v4667 = vadd.f32 %v4617, 1.0
        %v4668 = vadd.f32 %v4619, 1.0
        %v4669 = vadd.f32 %v4621, 1.0
        %v4670 = vadd.f32 %v4623, 1.0
        %v4671 = vadd.f32 %v4625, 1.0
        %v4672 = vadd.f32 %v4627, 1.0
        %v4673 = vadd.f32 %v4629, 1.0
        %v4674 = vadd.f32 %v4631, 1.0
        %v4675 = vadd.f32 %v4633, 1.0
        %v4676 = vadd.f32 %v4635, 1.0
        %v4677 = vadd.f32 %v4637, 1.0
        %v4678 = vadd.f32 %v4639, 1.0
        %v4679 = vadd.f32 %v4641, 1.0
        %v4680 = vadd.f32 %v4643, 1.0
        %v4681 = vadd.f32 %v4645, 1.0
        %v4682 = vadd.f32 %v4647, 1.0
        %v4683 = vadd.f32 %v4649, 1.0
        %v4684 = vadd.f32 %v4651, 1.0
        %v4685 = vadd.f32 %v4653, 1.0
        %v4686 = vadd.f32 %v4655, 1.0
        %v4687 = vadd.f32 %v4657, 1.0
        %v4688 = vadd.f32 %v4659, 1.0
        %v4689 = vadd.f32 %v4661, 1.0
        %v4690 = vrcp.pop %v4662
        %v4691 = vmul.f32 1.0, %v4690
        %v4692 = vrcp.pop %v4663
        %v4693 = vmul.f32 1.0, %v4692
        %v4694 = vrcp.pop %v4664
        %v4695 = vmul.f32 1.0, %v4694
        %v4696 = vrcp.pop %v4665
        %v4697 = vmul.f32 1.0, %v4696
        %v4698 = vrcp.pop %v4666
        %v4699 = vmul.f32 1.0, %v4698
        %v4700 = vrcp.pop %v4667
        %v4701 = vmul.f32 1.0, %v4700
        %v4702 = vrcp.pop %v4668
        %v4703 = vmul.f32 1.0, %v4702
        %v4704 = vrcp.pop %v4669
        %v4705 = vmul.f32 1.0, %v4704
        %v4706 = vrcp.pop %v4670
        %v4707 = vmul.f32 1.0, %v4706
        %v4708 = vrcp.pop %v4671
        %v4709 = vmul.f32 1.0, %v4708
        %v4710 = vrcp.pop %v4672
        %v4711 = vmul.f32 1.0, %v4710
        %v4712 = vrcp.pop %v4673
        %v4713 = vmul.f32 1.0, %v4712
        %v4714 = vrcp.pop %v4674
        %v4715 = vmul.f32 1.0, %v4714
        %v4716 = vrcp.pop %v4675
        %v4717 = vmul.f32 1.0, %v4716
        %v4718 = vrcp.pop %v4676
        %v4719 = vmul.f32 1.0, %v4718
        %v4720 = vrcp.pop %v4677
        %v4721 = vmul.f32 1.0, %v4720
        %v4722 = vrcp.pop %v4678
        %v4723 = vmul.f32 1.0, %v4722
        %v4724 = vrcp.pop %v4679
        %v4725 = vmul.f32 1.0, %v4724
        %v4726 = vrcp.pop %v4680
        %v4727 = vmul.f32 1.0, %v4726
        %v4728 = vrcp.pop %v4681
        %v4729 = vmul.f32 1.0, %v4728
        %v4730 = vrcp.pop %v4682
        %v4731 = vmul.f32 1.0, %v4730
        %v4732 = vrcp.pop %v4683
        %v4733 = vmul.f32 1.0, %v4732
        %v4734 = vrcp.pop %v4684
        %v4735 = vmul.f32 1.0, %v4734
        %v4736 = vrcp.pop %v4685
        %v4737 = vmul.f32 1.0, %v4736
        %v4738 = vrcp.pop %v4686
        %v4739 = vmul.f32 1.0, %v4738
        %v4740 = vrcp.pop %v4687
        %v4741 = vmul.f32 1.0, %v4740
        %v4742 = vrcp.pop %v4688
        %v4743 = vmul.f32 1.0, %v4742
        %v4744 = vrcp.pop %v4689
        %v4745 = vmul.f32 1.0, %v4744
        %4746 = vst [vmem:[%s399] sm:$0xff] %v4691
        %4747 = vst [vmem:[%s399 + $0x8] sm:$0xff] %v4693
        %4748 = vst [vmem:[%s399 + $0x10] sm:$0xff] %v4695
        %4749 = vst [vmem:[%s399 + $0x18] sm:$0xff] %v4697
        %4750 = vst [vmem:[%s399 + $0x20] sm:$0xff] %v4699
        %4751 = vst [vmem:[%s399 + $0x28] sm:$0xff] %v4701
        %4752 = vst.msk [vmem:[%s399 + $0x30] sm:$0xff] %vm1668, %v4703
        %4753 = vst [vmem:[%s399 + $0x38] sm:$0xff] %v4705
        %4754 = vst [vmem:[%s399 + $0x40] sm:$0xff] %v4707
        %4755 = vst [vmem:[%s399 + $0x48] sm:$0xff] %v4709
        %4756 = vst [vmem:[%s399 + $0x50] sm:$0xff] %v4711
        %4757 = vst [vmem:[%s399 + $0x58] sm:$0xff] %v4713
        %4758 = vst [vmem:[%s399 + $0x60] sm:$0xff] %v4715
        %4759 = vst.msk [vmem:[%s399 + $0x68] sm:$0xff] %vm1668, %v4717
        %4760 = vst [vmem:[%s399 + $0x70] sm:$0xff] %v4719
        %4761 = vst [vmem:[%s399 + $0x78] sm:$0xff] %v4721
        %4762 = vst [vmem:[%s399 + $0x80] sm:$0xff] %v4723
        %4763 = vst [vmem:[%s399 + $0x88] sm:$0xff] %v4725
        %4764 = vst [vmem:[%s399 + $0x90] sm:$0xff] %v4727
        %4765 = vst [vmem:[%s399 + $0x98] sm:$0xff] %v4729
        %4766 = vst.msk [vmem:[%s399 + $0xa0] sm:$0xff] %vm1668, %v4731
        %4767 = vst [vmem:[%s399 + $0xa8] sm:$0xff] %v4733
        %4768 = vst [vmem:[%s399 + $0xb0] sm:$0xff] %v4735
        %4769 = vst [vmem:[%s399 + $0xb8] sm:$0xff] %v4737
        %4770 = vst [vmem:[%s399 + $0xc0] sm:$0xff] %v4739
        %4771 = vst [vmem:[%s399 + $0xc8] sm:$0xff] %v4741
        %4772 = vst [vmem:[%s399 + $0xd0] sm:$0xff] %v4743
        %4773 = vst.msk [vmem:[%s399 + $0xd8] sm:$0xff] %vm1668, %v4745
        %vm4774 = vcmask 64512
        %4775 = vst.msk [vmem:[%s425] sm:$0xff] %vm4774, %v2470
        %4776 = vst.msk [vmem:[%s425 + $0x8] sm:$0xff] %vm4774, %v2473
        %4777 = vst.msk [vmem:[%s425 + $0x10] sm:$0xff] %vm4774, %v2478
        %4778 = vst.msk [vmem:[%s425 + $0x18] sm:$0xff] %vm4774, %v2481
        %s4779 = sand.u32 %s254, 1
        %s4780 = scalar_lea.sflag [#allocation3], %s4779
        %s4781 = sand.u32 %s254, 1
        %s4782 = smul.addr %s4781, 224
        %s4783 = scalar_lea.vmem [#allocation2], %s4782
        %s4784 = smul.u32 4, %s26
        %p4785 = scmp.lt.s32.totalorder %s4784, 7
        %s4786 = scalar_select %p4785, %s4784, 7
        %s4787 = smul.addr %s4786, 8
        %s4788 = scalar_lea.vmem %s11, %s4787
        // Predicated region
        $region61: #{tpu_custom_call.1} parent=59 // pred_check
          %p4789 = pneg %p264
        $region62: #{tpu_custom_call.1} parent=59 // pred_check_branch
          %4791 = sbr.rel (%p4789) target = $region64
        $region63: #{tpu_custom_call.1} parent=59 // pred_region
          %s4792 = smul.u32 4, %s26
          %s4794 = ssub.s32 3584, 3584
          %4795 = vsyncadd %s4780, %s4794
          %s4796 = smul.addr %s4792, 7
          %s4797 = smul.addr %s4796, 128
          %s4798 = scalar_lea.hbm %s10, %s4797
          %s4799 = sshll.u32 %s4783, 4
          %s4800 = int_to_ptr.vmem [resolvable:$true] %s4799
          %4805 = dma.vmem_to_hbm [thread:$0]  %s4800, 3584, %s4798, %s4780, 896, 896, 56
        $region64: #{tpu_custom_call.1} parent=59 // pred_fallthru
          _
        // Predicated region
        $region65: #{tpu_custom_call.1} parent=59 // pred_check
          %p4806 = pneg %p290
        $region66: #{tpu_custom_call.1} parent=59 // pred_check_branch
          %4808 = sbr.rel (%p4806) target = $region68
        $region67: #{tpu_custom_call.1} parent=59 // pred_region
          %s4809 = smul.u32 4, %s26
        $region68: #{tpu_custom_call.1} parent=59 // pred_fallthru
          _
      $region60: #{tpu_custom_call.1} parent=5 // pred_fallthru
        _
      %p4810 = scmp.le.s32.totalorder 2, %s21
      // Predicated region
      $region69: #{tpu_custom_call.1} parent=5 // pred_check
        %p4811 = pneg %p4810
      $region70: #{tpu_custom_call.1} parent=5 // pred_check_branch
        %4813 = sbr.rel (%p4811) target = $region72
      $region71: #{tpu_custom_call.1} parent=5 // pred_region
        %s4814 = ssub.s32 %s21, 2
        // Predicated region
        $region73: #{tpu_custom_call.1} parent=71 // pred_check
          %p4815 = pneg %p270
        $region74: #{tpu_custom_call.1} parent=71 // pred_check_branch
          %4817 = sbr.rel (%p4815) target = $region76
        $region75: #{tpu_custom_call.1} parent=71 // pred_region
          %s4818 = sand.u32 %s255, 1
          %s4819 = scalar_lea.sflag [#allocation3], %s4818
          %s4820 = sand.u32 %s255, 1
          %s4821 = smul.addr %s4820, 224
          %s4822 = scalar_lea.vmem [#allocation2], %s4821
          %4823 = dma.done %s4819, 3584
        $region76: #{tpu_custom_call.1} parent=71 // pred_fallthru
          _
        // Predicated region
        $region77: #{tpu_custom_call.1} parent=71 // pred_check
          %p4824 = pneg %p296
        $region78: #{tpu_custom_call.1} parent=71 // pred_check_branch
          %4826 = sbr.rel (%p4824) target = $region80
        $region79: #{tpu_custom_call.1} parent=71 // pred_region
          %s4827 = smul.u32 4, %s27
          %p4828 = scmp.lt.s32.totalorder %s4827, 7
          %s4829 = scalar_select %p4828, %s4827, 7
          %s4830 = smul.addr %s4829, 8
          %s4831 = scalar_lea.vmem %s11, %s4830
        $region80: #{tpu_custom_call.1} parent=71 // pred_fallthru
          _
      $region72: #{tpu_custom_call.1} parent=5 // pred_fallthru
        _
    $region6: #{tpu_custom_call.1} parent=1 // loop_footer
      %s25 = sadd.s32 1, %s21
    $region7: #{tpu_custom_call.1} parent=1 // loop_footer_branch
      %20 = sbr.rel target = $region3
    $region8: #{tpu_custom_call.1} parent=1 // loop_exit
      _
    %4832 = vsyncpa [#allocation3], 1
    %s4833 = scalar_lea.sflag [#allocation3], 1
    %4834 = vsyncpa %s4833, 1

</llo_original>
